<compile_context>
chip_gen: v5e
topology: v5e:2x2
jax: 0.10.0
libtpu: 0.0.40
codegen_flags: <defaults>
</compile_context>

<pallas_src>
import functools

import jax
import jax.numpy as jnp
from jax.experimental import pallas as pl
from jax.experimental.pallas import tpu as pltpu

_LN_EPS = 1e-5
_NEG_INF = -1e30


def _round_up(x, m):
    return (x + m - 1) // m * m


# ----------------------------- in-kernel helpers -----------------------------

def _layernorm(x, gamma, beta):
    """PyTorch-style LayerNorm over the last dim (biased variance, eps=1e-5)."""
    mean = jnp.mean(x, axis=-1, keepdims=True)
    xc = x - mean
    var = jnp.mean(xc * xc, axis=-1, keepdims=True)
    return xc * jax.lax.rsqrt(var + _LN_EPS) * gamma + beta


def _gelu_tanh(x):
    # TODO(synk): PyTorch nn.GELU() defaults to the exact erf form; the tanh approximation
    # is used because erf has no guaranteed Mosaic lowering (the JAX reference matches it).
    c = 0.7978845608028654  # sqrt(2/pi)
    return 0.5 * x * (1.0 + jnp.tanh(c * (x + 0.044715 * x * x * x)))


# --------------------------------- kernels -----------------------------------

def _embed_tokens_kernel(patches_ref, g1_ref, b1_ref, w_ref, bw_ref, g2_ref, b2_ref,
                         cls_ref, pos_ref, o_ref, *, batch, seq_pad, seq_real,
                         compute_dtype):
    """to_patch_embedding (LN->Linear->LN) + cls token + pos embedding + sublane pad.

    `patches_ref` is (B*S_pad, P), already row-aligned with the token layout: row 0 of
    every per-batch block (the cls slot) and rows seq_real.. (sublane pad) are zeros, so
    the epilogue needs only iota/where selects (no unaligned sublane concats).
    """
    h = _layernorm(patches_ref[...], g1_ref[...], b1_ref[...])
    h = jnp.dot(h.astype(compute_dtype), w_ref[...],
                preferred_element_type=jnp.float32) + bw_ref[...]
    emb = _layernorm(h, g2_ref[...], b2_ref[...])                        # (B*S_pad, E)
    e = emb.shape[-1]
    emb = emb.reshape(batch, seq_pad, e)
    tok_idx = jax.lax.broadcasted_iota(jnp.int32, (batch, seq_pad, e), 1)
    tok = jnp.where(tok_idx == 0, cls_ref[...].reshape(1, 1, e), emb)    # cls row
    tok = jnp.where(tok_idx < seq_real, tok, 0.0)                        # zero pad rows
    tok = tok + pos_ref[...][None, :, :]                                 # pos (pad rows 0)
    o_ref[...] = tok.reshape(batch * seq_pad, e)


def _transformer_kernel(x0_ref, ng_ref, nb_ref, hw_ref, hb_ref,
                        wqkv_ref, bqkv_ref, wout_ref, bout_ref,
                        mg_ref, mb_ref, w1_ref, b1_ref, w2_ref, b2_ref,
                        o_ref, x_acc,
                        *, batch, num_heads, seq_pad, seq_real, scale, compute_dtype):
    """One transformer layer per grid step (grid=(depth,)); classifier head fused in.

    x_acc is a VMEM-resident (B*S_pad, E) f32 accumulator that carries the residual
    stream across the whole depth loop -- activations never round-trip through HBM.
    """
    @pl.when(pl.program_id(0) == 0)
    def _():
        x_acc[...] = x0_ref[...]

    x = x_acc[...]                                    # (R, E) f32
    r, e = x.shape
    dh = e // num_heads
    ng, nb = ng_ref[...], nb_ref[...]

    # ---- MHA: shared pre-norm -> fused QKV -> per-head SDPA with fused out-projection ----
    h = _layernorm(x, ng, nb)
    qkv = jnp.dot(h.astype(compute_dtype), wqkv_ref[...],
                  preferred_element_type=jnp.float32) + bqkv_ref[...]     # (R, 3E) f32
    w_out = wout_ref[...]                                                 # (E, E)

    key_valid = jax.lax.broadcasted_iota(jnp.int32, (1, 1, seq_pad), 2) < seq_real

    attn_out = jnp.zeros((r, e), jnp.float32)
    for hh in range(num_heads):                       # static unroll; ctx never leaves VMEM
        q = qkv[:, hh * dh:(hh + 1) * dh].reshape(batch, seq_pad, dh)
        k = qkv[:, e + hh * dh:e + (hh + 1) * dh].reshape(batch, seq_pad, dh)
        v = qkv[:, 2 * e + hh * dh:2 * e + (hh + 1) * dh].reshape(batch, seq_pad, dh)
        # attention core kept in f32: tiny (S_pad x dh) matmuls, latency-not-MXU bound here
        s = jnp.einsum("bsd,btd->bst", q, k, preferred_element_type=jnp.float32) * scale
        s = jnp.where(key_valid, s, _NEG_INF)         # mask sublane-pad keys
        s = s - jnp.max(s, axis=-1, keepdims=True)
        p = jnp.exp(s)
        p = p / jnp.sum(p, axis=-1, keepdims=True)    # exact division (parity with PyTorch)
        ctx = jnp.einsum("bst,btd->bsd", p, v,
                         preferred_element_type=jnp.float32).reshape(r, dh)
        # fused out-projection slice: the only attention-path result is lane-dense (R, E)
        attn_out = attn_out + jnp.dot(ctx.astype(compute_dtype),
                                      w_out[hh * dh:(hh + 1) * dh, :],
                                      preferred_element_type=jnp.float32)
    x = x + attn_out + bout_ref[...]

    # ---- MLP: shared pre-norm -> MLP's own LN -> Linear -> GELU -> Linear ----
    h = _layernorm(x, ng, nb)
    h = _layernorm(h, mg_ref[...], mb_ref[...])
    h = jnp.dot(h.astype(compute_dtype), w1_ref[...],
                preferred_element_type=jnp.float32) + b1_ref[...]
    h = _gelu_tanh(h)
    h = jnp.dot(h.astype(compute_dtype), w2_ref[...],
                preferred_element_type=jnp.float32) + b2_ref[...]
    x = x + h
    x_acc[...] = x

    # ---- final shared LN + cls pooling + classifier head.  Written every step (a couple
    #      of 2-row ops); only the last depth step's value survives in the output block. ----
    cls_rows = x.reshape(batch, seq_pad, e)[:, 0, :]
    z = _layernorm(cls_rows, ng, nb)
    o_ref[...] = jnp.dot(z.astype(compute_dtype), hw_ref[...],
                         preferred_element_type=jnp.float32) + hb_ref[...]


# ------------------------------ pallas_call glue ------------------------------

def _const_spec(shape):
    """Full-array block that maps to the origin for every grid step."""
    shape = tuple(int(d) for d in shape)
    zeros = (0,) * len(shape)
    return pl.BlockSpec(shape, lambda *_: zeros)


def _layer_spec(shape):
    """Stacked (depth, ...) weights: squeeze the depth dim, step it with the grid."""
    inner = tuple(int(d) for d in shape[1:])
    zeros = (0,) * len(inner)
    return pl.BlockSpec((None,) + inner, lambda d: (d,) + zeros)


# ------------------------------- full forward ---------------------------------

def vit_forward_pallas(params, x, *, num_heads, patch_size, compute_dtype=jnp.bfloat16):
    """ViTForCIFAR10 forward.  x: (B, C, H, W) float32 -> logits (B, num_classes)."""
    B, C, H, W = x.shape
    ph, pw = patch_size
    nph, npw = H // ph, W // pw
    N = nph * npw
    P = C * ph * pw
    E = params["patch_w"].shape[1]
    Dh = E // num_heads
    S = N + 1
    S_pad = _round_up(S, 8)          # sublane-align the sequence (17 -> 24); pad keys masked
    R = B * S_pad
    depth = len(params["layers"])
    mlp_dim = params["layers"][0]["w1"].shape[1]
    num_classes = params["head_w"].shape[1]
    scale = float(Dh) ** -0.5
    cd = compute_dtype

    def row(v):
        return v.reshape(1, -1)

    # Patch extraction (pure layout plumbing, mirrors the torch reshape/permute).  The cls
    # slot (row 0 of every batch block) and the sublane-pad rows are inserted here as zero
    # rows so the kernels never need unaligned sublane concatenations.
    patches = x.reshape(B, C, nph, ph, npw, pw)
    patches = jnp.transpose(patches, (0, 2, 4, 3, 5, 1)).reshape(B, N, P)
    patches = jnp.pad(patches, ((0, 0), (1, S_pad - S), (0, 0))).reshape(R, P)
    pos = jnp.pad(params["pos"].reshape(S, E), ((0, S_pad - S), (0, 0)))

    # ---- pallas_call #1: patch embedding + cls + pos + pad, all rows in one step ----
    embed_inputs = [
        patches,
        row(params["patch_ln1_g"]), row(params["patch_ln1_b"]),
        params["patch_w"].astype(cd), row(params["patch_b"]),
        row(params["patch_ln2_g"]), row(params["patch_ln2_b"]),
        params["cls"].reshape(1, E), pos,
    ]
    tokens = pl.pallas_call(
        functools.partial(_embed_tokens_kernel, batch=B, seq_pad=S_pad, seq_real=S,
                          compute_dtype=cd),
        out_shape=jax.ShapeDtypeStruct((R, E), jnp.float32),
        grid_spec=pltpu.PrefetchScalarGridSpec(
            num_scalar_prefetch=0, grid=(1,),
            in_specs=[_const_spec(a.shape) for a in embed_inputs],
            out_specs=_const_spec((R, E))),
        compiler_params=pltpu.CompilerParams(dimension_semantics=("arbitrary",)),
    )(*embed_inputs)

    # ---- pallas_call #2: whole transformer + head, grid=(depth,), stacked weights ----
    def stack(name):
        return jnp.stack([lyr[name] for lyr in params["layers"]], axis=0)

    w_qkv = stack("w_qkv").astype(cd)                           # (depth, E, 3E)
    b_qkv = stack("b_qkv").reshape(depth, 1, 3 * E)
    w_out = stack("w_out").astype(cd)                           # (depth, E, E)
    b_out = stack("b_out").reshape(depth, 1, E)
    mlp_g = stack("mlp_ln_g").reshape(depth, 1, E)
    mlp_b = stack("mlp_ln_b").reshape(depth, 1, E)
    w1 = stack("w1").astype(cd)                                 # (depth, E, mlp_dim)
    b1 = stack("b1").reshape(depth, 1, mlp_dim)
    w2 = stack("w2").astype(cd)                                 # (depth, mlp_dim, E)
    b2 = stack("b2").reshape(depth, 1, E)

    tr_inputs = [
        tokens,
        row(params["norm_g"]), row(params["norm_b"]),
        params["head_w"].astype(cd), row(params["head_b"]),
        w_qkv, b_qkv, w_out, b_out, mlp_g, mlp_b, w1, b1, w2, b2,
    ]
    shared_count = 5
    tr_specs = ([_const_spec(a.shape) for a in tr_inputs[:shared_count]]
                + [_layer_spec(a.shape) for a in tr_inputs[shared_count:]])

    # NOTE: for v7x (2 TCs) a 'parallel' batch/row grid axis would use the second core; when
    # scaling batch/seq, switch to 256-512-row BlockSpec tiles + vmem_limit_bytes instead of
    # the fully-VMEM-resident single-row-block design used at this toy size.
    logits = pl.pallas_call(
        functools.partial(_transformer_kernel, batch=B, num_heads=num_heads,
                          seq_pad=S_pad, seq_real=S, scale=scale, compute_dtype=cd),
        out_shape=jax.ShapeDtypeStruct((B, num_classes), jnp.float32),
        grid_spec=pltpu.PrefetchScalarGridSpec(
            num_scalar_prefetch=0, grid=(depth,),
            in_specs=tr_specs,
            out_specs=_const_spec((B, num_classes)),
            scratch_shapes=[pltpu.VMEM((R, E), jnp.float32)]),
        compiler_params=pltpu.CompilerParams(
            dimension_semantics=("arbitrary",)),   # depth steps carry the residual stream
    )(*tr_inputs)
    return logits


# ------------------------- pure-JAX reference (no Pallas) ----------------------

def vit_forward_reference(params, x, *, num_heads, patch_size):
    """Mirrors the PyTorch forward exactly (same tanh-GELU), highest matmul precision."""
    hp = jax.lax.Precision.HIGHEST
    B, C, H, W = x.shape
    ph, pw = patch_size
    nph, npw = H // ph, W // pw
    N = nph * npw
    E = params["patch_w"].shape[1]
    D = E // num_heads
    S = N + 1

    def ln(v, g, b):
        m = jnp.mean(v, axis=-1, keepdims=True)
        vc = v - m
        var = jnp.mean(vc * vc, axis=-1, keepdims=True)
        return vc / jnp.sqrt(var + _LN_EPS) * g + b

    def gelu(v):
        c = 0.7978845608028654
        return 0.5 * v * (1.0 + jnp.tanh(c * (v + 0.044715 * v ** 3)))

    p = x.reshape(B, C, nph, ph, npw, pw)
    p = jnp.transpose(p, (0, 2, 4, 3, 5, 1)).reshape(B, N, C * ph * pw)
    h = ln(p, params["patch_ln1_g"], params["patch_ln1_b"])
    h = jnp.matmul(h, params["patch_w"], precision=hp) + params["patch_b"]
    h = ln(h, params["patch_ln2_g"], params["patch_ln2_b"])
    z = jnp.concatenate([jnp.broadcast_to(params["cls"], (B, 1, E)), h], axis=1)
    z = z + params["pos"][:, :S]
    for lyr in params["layers"]:
        zn = ln(z, params["norm_g"], params["norm_b"])
        qkv = jnp.matmul(zn, lyr["w_qkv"], precision=hp) + lyr["b_qkv"]
        qkv = jnp.transpose(qkv.reshape(B, S, 3, num_heads, D), (2, 0, 3, 1, 4))
        q, k, v = qkv[0], qkv[1], qkv[2]
        att = jnp.einsum("bhsd,bhtd->bhst", q, k, precision=hp) * (float(D) ** -0.5)
        att = jax.nn.softmax(att, axis=-1)
        ctx = jnp.einsum("bhst,bhtd->bhsd", att, v, precision=hp)
        ctx = jnp.transpose(ctx, (0, 2, 1, 3)).reshape(B, S, E)
        z = z + jnp.matmul(ctx, lyr["w_out"], precision=hp) + lyr["b_out"]
        m = ln(z, params["norm_g"], params["norm_b"])
        m = ln(m, lyr["mlp_ln_g"], lyr["mlp_ln_b"])
        m = gelu(jnp.matmul(m, lyr["w1"], precision=hp) + lyr["b1"])
        m = jnp.matmul(m, lyr["w2"], precision=hp) + lyr["b2"]
        z = z + m
    z = ln(z, params["norm_g"], params["norm_b"])
    cls_out = z[:, 0]
    return jnp.matmul(cls_out, params["head_w"], precision=hp) + params["head_b"]


# ------------------------------ parameter init ---------------------------------

def init_params(key, *, patch_dim, dim, depth, mlp_dim, num_patches, num_classes):
    keys = iter(jax.random.split(key, 12 + depth * 10))

    def linear_w(fan_in, fan_out):
        return jax.random.normal(next(keys), (fan_in, fan_out), jnp.float32) * (fan_in ** -0.5)

    def vec(n, scl):
        return jax.random.normal(next(keys), (n,), jnp.float32) * scl

    params = {
        "patch_ln1_g": 1.0 + vec(patch_dim, 0.1),
        "patch_ln1_b": vec(patch_dim, 0.1),
        "patch_w": linear_w(patch_dim, dim),
        "patch_b": vec(dim, 0.02),
        "patch_ln2_g": 1.0 + vec(dim, 0.1),
        "patch_ln2_b": vec(dim, 0.1),
        "cls": jax.random.normal(next(keys), (1, 1, dim), jnp.float32) * 0.02,
        "pos": jax.random.normal(next(keys), (1, num_patches + 1, dim), jnp.float32) * 0.02,
        "norm_g": 1.0 + vec(dim, 0.1),
        "norm_b": vec(dim, 0.1),
        "head_w": linear_w(dim, num_classes),
        "head_b": vec(num_classes, 0.02),
        "layers": [],
    }
    for _ in range(depth):
        params["layers"].append({
            "w_qkv": linear_w(dim, 3 * dim),
            "b_qkv": vec(3 * dim, 0.02),
            "w_out": linear_w(dim, dim),
            "b_out": vec(dim, 0.02),
            "mlp_ln_g": 1.0 + vec(dim, 0.1),
            "mlp_ln_b": vec(dim, 0.1),
            "w1": linear_w(dim, mlp_dim),
            "b1": vec(mlp_dim, 0.02),
            "w2": linear_w(mlp_dim, dim),
            "b2": vec(dim, 0.02),
        })
    return params


if __name__ == "__main__":
    # Small-but-lane-dense ViT config consistent with the module:
    #   2 x 3 x 16 x 16 images, 4x4 patches -> 16 patches (+ cls => S = 17, padded to 24),
    #   dim=128, depth=2, 4 heads (head_dim=32), mlp_dim=256, 10 classes.
    B, C, IMG = 2, 3, 16
    PATCH = (4, 4)
    DIM, DEPTH, HEADS, MLP_DIM, CLASSES = 128, 2, 4, 256, 10
    NPATCH = (IMG // PATCH[0]) * (IMG // PATCH[1])

    key = jax.random.PRNGKey(0)
    kx, kp = jax.random.split(key)
    x = jax.random.normal(kx, (B, C, IMG, IMG), dtype=jnp.float32)
    params = init_params(kp, patch_dim=C * PATCH[0] * PATCH[1], dim=DIM, depth=DEPTH,
                         mlp_dim=MLP_DIM, num_patches=NPATCH, num_classes=CLASSES)

    ref = vit_forward_reference(params, x, num_heads=HEADS, patch_size=PATCH)

    # f32-compute path: tight(er) numerical check against the PyTorch-mirroring reference.
    fwd_f32 = jax.jit(functools.partial(vit_forward_pallas, num_heads=HEADS,
                                        patch_size=PATCH, compute_dtype=jnp.float32))
    out_f32 = jax.block_until_ready(fwd_f32(params, x))
    assert out_f32.shape == (B, CLASSES)
    assert jnp.allclose(out_f32, ref, atol=2e-2, rtol=2e-2), "f32 kernel mismatch vs reference"

    # bf16-MXU-operand path (the performance configuration per the review): looser check.
    fwd_bf16 = jax.jit(functools.partial(vit_forward_pallas, num_heads=HEADS,
                                         patch_size=PATCH, compute_dtype=jnp.bfloat16))
    out_bf16 = jax.block_until_ready(fwd_bf16(params, x))
    assert out_bf16.shape == (B, CLASSES)
    assert jnp.allclose(out_bf16, ref, atol=1.5e-1, rtol=1.5e-1), "bf16 kernel mismatch vs reference"

    print("KERNEL_OK")
</pallas_src>

<mosaic_0001>
module attributes {stable_mosaic.version = 11 : i64} {
  func.func @_embed_tokens_kernel(%arg0: i32, %arg1: memref<48x48xf32, #tpu.memory_space<vmem>>, %arg2: memref<1x48xf32, #tpu.memory_space<vmem>>, %arg3: memref<1x48xf32, #tpu.memory_space<vmem>>, %arg4: memref<48x128xf32, #tpu.memory_space<vmem>>, %arg5: memref<1x128xf32, #tpu.memory_space<vmem>>, %arg6: memref<1x128xf32, #tpu.memory_space<vmem>>, %arg7: memref<1x128xf32, #tpu.memory_space<vmem>>, %arg8: memref<1x128xf32, #tpu.memory_space<vmem>>, %arg9: memref<24x128xf32, #tpu.memory_space<vmem>>, %arg10: memref<48x128xf32, #tpu.memory_space<vmem>>) attributes {dimension_semantics = [#tpu.dimension_semantics<arbitrary>], iteration_bounds = array<i64: 1>, scalar_prefetch = 0 : i64, scratch_operands = 0 : i64, tpu.core_type = #tpu.core_type<tc>, window_params = [{pipeline_mode = #tpu.pipeline_mode<synchronous>, transform_indices = @transform_0, window_bounds = array<i64: 48, 48>}, {pipeline_mode = #tpu.pipeline_mode<synchronous>, transform_indices = @transform_1, window_bounds = array<i64: 1, 48>}, {pipeline_mode = #tpu.pipeline_mode<synchronous>, transform_indices = @transform_2, window_bounds = array<i64: 1, 48>}, {pipeline_mode = #tpu.pipeline_mode<synchronous>, transform_indices = @transform_3, window_bounds = array<i64: 48, 128>}, {pipeline_mode = #tpu.pipeline_mode<synchronous>, transform_indices = @transform_4, window_bounds = array<i64: 1, 128>}, {pipeline_mode = #tpu.pipeline_mode<synchronous>, transform_indices = @transform_5, window_bounds = array<i64: 1, 128>}, {pipeline_mode = #tpu.pipeline_mode<synchronous>, transform_indices = @transform_6, window_bounds = array<i64: 1, 128>}, {pipeline_mode = #tpu.pipeline_mode<synchronous>, transform_indices = @transform_7, window_bounds = array<i64: 1, 128>}, {pipeline_mode = #tpu.pipeline_mode<synchronous>, transform_indices = @transform_8, window_bounds = array<i64: 24, 128>}, {pipeline_mode = #tpu.pipeline_mode<synchronous>, transform_indices = @transform_9, window_bounds = array<i64: 48, 128>}]} {
    %c0 = arith.constant 0 : index
    %c0_0 = arith.constant 0 : index
    %0 = vector.load %arg1[%c0, %c0_0] : memref<48x48xf32, #tpu.memory_space<vmem>>, vector<48x48xf32>
    %c0_1 = arith.constant 0 : index
    %c0_2 = arith.constant 0 : index
    %1 = vector.load %arg2[%c0_1, %c0_2] : memref<1x48xf32, #tpu.memory_space<vmem>>, vector<1x48xf32>
    %c0_3 = arith.constant 0 : index
    %c0_4 = arith.constant 0 : index
    %2 = vector.load %arg3[%c0_3, %c0_4] : memref<1x48xf32, #tpu.memory_space<vmem>>, vector<1x48xf32>
    %cst = arith.constant dense<0.000000e+00> : vector<48xf32>
    %3 = vector.multi_reduction <add>, %0, %cst [1] : vector<48x48xf32> to vector<48xf32>
    %4 = vector.shape_cast %3 : vector<48xf32> to vector<48x1xf32>
    %cst_5 = arith.constant 4.800000e+01 : f32
    %5 = vector.broadcast %cst_5 : f32 to vector<48x1xf32>
    %6 = arith.divf %4, %5 : vector<48x1xf32>
    %7 = vector.broadcast %6 : vector<48x1xf32> to vector<48x48xf32>
    %8 = arith.subf %0, %7 : vector<48x48xf32>
    %9 = arith.mulf %8, %8 : vector<48x48xf32>
    %cst_6 = arith.constant dense<0.000000e+00> : vector<48xf32>
    %10 = vector.multi_reduction <add>, %9, %cst_6 [1] : vector<48x48xf32> to vector<48xf32>
    %11 = vector.shape_cast %10 : vector<48xf32> to vector<48x1xf32>
    %cst_7 = arith.constant 4.800000e+01 : f32
    %12 = vector.broadcast %cst_7 : f32 to vector<48x1xf32>
    %13 = arith.divf %11, %12 : vector<48x1xf32>
    %cst_8 = arith.constant 9.99999974E-6 : f32
    %14 = vector.broadcast %cst_8 : f32 to vector<48x1xf32>
    %15 = arith.addf %13, %14 : vector<48x1xf32>
    %16 = math.rsqrt %15 : vector<48x1xf32>
    %17 = vector.broadcast %16 : vector<48x1xf32> to vector<48x48xf32>
    %18 = arith.mulf %8, %17 : vector<48x48xf32>
    %19 = vector.broadcast %1 : vector<1x48xf32> to vector<48x48xf32>
    %20 = arith.mulf %18, %19 : vector<48x48xf32>
    %21 = vector.broadcast %2 : vector<1x48xf32> to vector<48x48xf32>
    %22 = arith.addf %20, %21 : vector<48x48xf32>
    %c0_9 = arith.constant 0 : index
    %c0_10 = arith.constant 0 : index
    %23 = vector.load %arg4[%c0_9, %c0_10] : memref<48x128xf32, #tpu.memory_space<vmem>>, vector<48x128xf32>
    %cst_11 = arith.constant dense<0.000000e+00> : vector<48x128xf32>
    %24 = tpu.matmul %22, %23, %cst_11 {dimension_numbers = #tpu.dot_dimension_numbers<[1], [0], [0], [1], [0, 0, 1, 1], [], []>} : vector<48x48xf32>, vector<48x128xf32>, vector<48x128xf32> -> vector<48x128xf32>
    %c0_12 = arith.constant 0 : index
    %c0_13 = arith.constant 0 : index
    %25 = vector.load %arg5[%c0_12, %c0_13] : memref<1x128xf32, #tpu.memory_space<vmem>>, vector<1x128xf32>
    %26 = vector.broadcast %25 : vector<1x128xf32> to vector<48x128xf32>
    %27 = arith.addf %24, %26 : vector<48x128xf32>
    %c0_14 = arith.constant 0 : index
    %c0_15 = arith.constant 0 : index
    %28 = vector.load %arg6[%c0_14, %c0_15] : memref<1x128xf32, #tpu.memory_space<vmem>>, vector<1x128xf32>
    %c0_16 = arith.constant 0 : index
    %c0_17 = arith.constant 0 : index
    %29 = vector.load %arg7[%c0_16, %c0_17] : memref<1x128xf32, #tpu.memory_space<vmem>>, vector<1x128xf32>
    %cst_18 = arith.constant dense<0.000000e+00> : vector<48xf32>
    %30 = vector.multi_reduction <add>, %27, %cst_18 [1] : vector<48x128xf32> to vector<48xf32>
    %31 = vector.shape_cast %30 : vector<48xf32> to vector<48x1xf32>
    %cst_19 = arith.constant 1.280000e+02 : f32
    %32 = vector.broadcast %cst_19 : f32 to vector<48x1xf32>
    %33 = arith.divf %31, %32 : vector<48x1xf32>
    %34 = vector.broadcast %33 : vector<48x1xf32> to vector<48x128xf32>
    %35 = arith.subf %27, %34 : vector<48x128xf32>
    %36 = arith.mulf %35, %35 : vector<48x128xf32>
    %cst_20 = arith.constant dense<0.000000e+00> : vector<48xf32>
    %37 = vector.multi_reduction <add>, %36, %cst_20 [1] : vector<48x128xf32> to vector<48xf32>
    %38 = vector.shape_cast %37 : vector<48xf32> to vector<48x1xf32>
    %cst_21 = arith.constant 1.280000e+02 : f32
    %39 = vector.broadcast %cst_21 : f32 to vector<48x1xf32>
    %40 = arith.divf %38, %39 : vector<48x1xf32>
    %cst_22 = arith.constant 9.99999974E-6 : f32
    %41 = vector.broadcast %cst_22 : f32 to vector<48x1xf32>
    %42 = arith.addf %40, %41 : vector<48x1xf32>
    %43 = math.rsqrt %42 : vector<48x1xf32>
    %44 = vector.broadcast %43 : vector<48x1xf32> to vector<48x128xf32>
    %45 = arith.mulf %35, %44 : vector<48x128xf32>
    %46 = vector.broadcast %28 : vector<1x128xf32> to vector<48x128xf32>
    %47 = arith.mulf %45, %46 : vector<48x128xf32>
    %48 = vector.broadcast %29 : vector<1x128xf32> to vector<48x128xf32>
    %49 = arith.addf %47, %48 : vector<48x128xf32>
    %50 = vector.shape_cast %49 : vector<48x128xf32> to vector<2x24x128xf32>
    %51 = tpu.iota {dimensions = array<i32: 1>} : vector<2x24x128xi32>
    %c0_i32 = arith.constant 0 : i32
    %52 = vector.broadcast %c0_i32 : i32 to vector<2x24x128xi32>
    %53 = arith.cmpi eq, %51, %52 : vector<2x24x128xi32>
    %c0_23 = arith.constant 0 : index
    %c0_24 = arith.constant 0 : index
    %54 = vector.load %arg8[%c0_23, %c0_24] : memref<1x128xf32, #tpu.memory_space<vmem>>, vector<1x128xf32>
    %55 = vector.shape_cast %54 : vector<1x128xf32> to vector<1x1x128xf32>
    %56 = vector.shape_cast %55 : vector<1x1x128xf32> to vector<1x1x128xf32>
    %57 = vector.broadcast %56 : vector<1x1x128xf32> to vector<2x24x128xf32>
    %58 = arith.select %53, %57, %50 : vector<2x24x128xi1>, vector<2x24x128xf32>
    %c17_i32 = arith.constant 17 : i32
    %59 = vector.broadcast %c17_i32 : i32 to vector<2x24x128xi32>
    %60 = arith.cmpi slt, %51, %59 : vector<2x24x128xi32>
    %cst_25 = arith.constant 0.000000e+00 : f32
    %61 = vector.broadcast %cst_25 : f32 to vector<2x24x128xf32>
    %62 = arith.select %60, %58, %61 : vector<2x24x128xi1>, vector<2x24x128xf32>
    %c0_26 = arith.constant 0 : index
    %c0_27 = arith.constant 0 : index
    %63 = vector.load %arg9[%c0_26, %c0_27] : memref<24x128xf32, #tpu.memory_space<vmem>>, vector<24x128xf32>
    %64 = vector.shape_cast %63 : vector<24x128xf32> to vector<1x24x128xf32>
    %65 = vector.broadcast %64 : vector<1x24x128xf32> to vector<2x24x128xf32>
    %66 = arith.addf %62, %65 : vector<2x24x128xf32>
    %67 = vector.shape_cast %66 : vector<2x24x128xf32> to vector<48x128xf32>
    %c0_28 = arith.constant 0 : index
    %c0_29 = arith.constant 0 : index
    %68 = vector.load %arg10[%c0_28, %c0_29] : memref<48x128xf32, #tpu.memory_space<vmem>>, vector<48x128xf32>
    tpu.vector_store %arg10[%c0_28, %c0_29], %67 {strides = array<i32>} : memref<48x128xf32, #tpu.memory_space<vmem>>, vector<48x128xf32>,
    return
  }
  func.func @transform_0(%arg0: i32) -> (i32, i32) {
    %c0_i32 = arith.constant 0 : i32
    %c0_i32_0 = arith.constant 0 : i32
    %c0_i32_1 = arith.constant 0 : i32
    return %c0_i32, %c0_i32_0 : i32, i32
  }
  func.func @transform_1(%arg0: i32) -> (i32, i32) {
    %c0_i32 = arith.constant 0 : i32
    %c0_i32_0 = arith.constant 0 : i32
    %c0_i32_1 = arith.constant 0 : i32
    return %c0_i32, %c0_i32_0 : i32, i32
  }
  func.func @transform_2(%arg0: i32) -> (i32, i32) {
    %c0_i32 = arith.constant 0 : i32
    %c0_i32_0 = arith.constant 0 : i32
    %c0_i32_1 = arith.constant 0 : i32
    return %c0_i32, %c0_i32_0 : i32, i32
  }
  func.func @transform_3(%arg0: i32) -> (i32, i32) {
    %c0_i32 = arith.constant 0 : i32
    %c0_i32_0 = arith.constant 0 : i32
    %c0_i32_1 = arith.constant 0 : i32
    return %c0_i32, %c0_i32_0 : i32, i32
  }
  func.func @transform_4(%arg0: i32) -> (i32, i32) {
    %c0_i32 = arith.constant 0 : i32
    %c0_i32_0 = arith.constant 0 : i32
    %c0_i32_1 = arith.constant 0 : i32
    return %c0_i32, %c0_i32_0 : i32, i32
  }
  func.func @transform_5(%arg0: i32) -> (i32, i32) {
    %c0_i32 = arith.constant 0 : i32
    %c0_i32_0 = arith.constant 0 : i32
    %c0_i32_1 = arith.constant 0 : i32
    return %c0_i32, %c0_i32_0 : i32, i32
  }
  func.func @transform_6(%arg0: i32) -> (i32, i32) {
    %c0_i32 = arith.constant 0 : i32
    %c0_i32_0 = arith.constant 0 : i32
    %c0_i32_1 = arith.constant 0 : i32
    return %c0_i32, %c0_i32_0 : i32, i32
  }
  func.func @transform_7(%arg0: i32) -> (i32, i32) {
    %c0_i32 = arith.constant 0 : i32
    %c0_i32_0 = arith.constant 0 : i32
    %c0_i32_1 = arith.constant 0 : i32
    return %c0_i32, %c0_i32_0 : i32, i32
  }
  func.func @transform_8(%arg0: i32) -> (i32, i32) {
    %c0_i32 = arith.constant 0 : i32
    %c0_i32_0 = arith.constant 0 : i32
    %c0_i32_1 = arith.constant 0 : i32
    return %c0_i32, %c0_i32_0 : i32, i32
  }
  func.func @transform_9(%arg0: i32) -> (i32, i32) {
    %c0_i32 = arith.constant 0 : i32
    %c0_i32_0 = arith.constant 0 : i32
    %c0_i32_1 = arith.constant 0 : i32
    return %c0_i32, %c0_i32_0 : i32, i32
  }
}

module attributes {stable_mosaic.version = 11 : i64} {
  func.func @_transformer_kernel(%arg0: i32, %arg1: memref<48x128xf32, #tpu.memory_space<vmem>>, %arg2: memref<1x128xf32, #tpu.memory_space<vmem>>, %arg3: memref<1x128xf32, #tpu.memory_space<vmem>>, %arg4: memref<128x10xf32, #tpu.memory_space<vmem>>, %arg5: memref<1x10xf32, #tpu.memory_space<vmem>>, %arg6: memref<1x128x384xf32, #tpu.memory_space<vmem>>, %arg7: memref<1x1x384xf32, #tpu.memory_space<vmem>>, %arg8: memref<1x128x128xf32, #tpu.memory_space<vmem>>, %arg9: memref<1x1x128xf32, #tpu.memory_space<vmem>>, %arg10: memref<1x1x128xf32, #tpu.memory_space<vmem>>, %arg11: memref<1x1x128xf32, #tpu.memory_space<vmem>>, %arg12: memref<1x128x256xf32, #tpu.memory_space<vmem>>, %arg13: memref<1x1x256xf32, #tpu.memory_space<vmem>>, %arg14: memref<1x256x128xf32, #tpu.memory_space<vmem>>, %arg15: memref<1x1x128xf32, #tpu.memory_space<vmem>>, %arg16: memref<2x10xf32, #tpu.memory_space<vmem>>, %arg17: memref<48x128xf32, #tpu.memory_space<vmem>>) attributes {dimension_semantics = [#tpu.dimension_semantics<arbitrary>], iteration_bounds = array<i64: 2>, scalar_prefetch = 0 : i64, scratch_operands = 1 : i64, tpu.core_type = #tpu.core_type<tc>, window_params = [{pipeline_mode = #tpu.pipeline_mode<synchronous>, transform_indices = @transform_0, window_bounds = array<i64: 48, 128>}, {pipeline_mode = #tpu.pipeline_mode<synchronous>, transform_indices = @transform_1, window_bounds = array<i64: 1, 128>}, {pipeline_mode = #tpu.pipeline_mode<synchronous>, transform_indices = @transform_2, window_bounds = array<i64: 1, 128>}, {pipeline_mode = #tpu.pipeline_mode<synchronous>, transform_indices = @transform_3, window_bounds = array<i64: 128, 10>}, {pipeline_mode = #tpu.pipeline_mode<synchronous>, transform_indices = @transform_4, window_bounds = array<i64: 1, 10>}, {transform_indices = @transform_5, window_bounds = array<i64: 1, 128, 384>}, {transform_indices = @transform_6, window_bounds = array<i64: 1, 1, 384>}, {transform_indices = @transform_7, window_bounds = array<i64: 1, 128, 128>}, {transform_indices = @transform_8, window_bounds = array<i64: 1, 1, 128>}, {transform_indices = @transform_9, window_bounds = array<i64: 1, 1, 128>}, {transform_indices = @transform_10, window_bounds = array<i64: 1, 1, 128>}, {transform_indices = @transform_11, window_bounds = array<i64: 1, 128, 256>}, {transform_indices = @transform_12, window_bounds = array<i64: 1, 1, 256>}, {transform_indices = @transform_13, window_bounds = array<i64: 1, 256, 128>}, {transform_indices = @transform_14, window_bounds = array<i64: 1, 1, 128>}, {pipeline_mode = #tpu.pipeline_mode<synchronous>, transform_indices = @transform_15, window_bounds = array<i64: 2, 10>}]} {
    %c0_i32 = arith.constant 0 : i32
    %0 = arith.cmpi eq, %arg0, %c0_i32 : i32
    %1 = arith.extui %0 : i1 to i32
    %c0_i32_0 = arith.constant 0 : i32
    %2 = arith.cmpi ne, %1, %c0_i32_0 : i32
    scf.if %2 {
      %c0_100 = arith.constant 0 : index
      %c0_101 = arith.constant 0 : index
      %254 = vector.load %arg1[%c0_100, %c0_101] : memref<48x128xf32, #tpu.memory_space<vmem>>, vector<48x128xf32>
      %c0_102 = arith.constant 0 : index
      %c0_103 = arith.constant 0 : index
      %255 = vector.load %arg17[%c0_102, %c0_103] : memref<48x128xf32, #tpu.memory_space<vmem>>, vector<48x128xf32>
      tpu.vector_store %arg17[%c0_102, %c0_103], %254 {strides = array<i32>} : memref<48x128xf32, #tpu.memory_space<vmem>>, vector<48x128xf32>,
    } else {
    }
    %c0 = arith.constant 0 : index
    %c0_1 = arith.constant 0 : index
    %3 = vector.load %arg17[%c0, %c0_1] : memref<48x128xf32, #tpu.memory_space<vmem>>, vector<48x128xf32>
    %c0_2 = arith.constant 0 : index
    %c0_3 = arith.constant 0 : index
    %4 = vector.load %arg2[%c0_2, %c0_3] : memref<1x128xf32, #tpu.memory_space<vmem>>, vector<1x128xf32>
    %c0_4 = arith.constant 0 : index
    %c0_5 = arith.constant 0 : index
    %5 = vector.load %arg3[%c0_4, %c0_5] : memref<1x128xf32, #tpu.memory_space<vmem>>, vector<1x128xf32>
    %cst = arith.constant dense<0.000000e+00> : vector<48xf32>
    %6 = vector.multi_reduction <add>, %3, %cst [1] : vector<48x128xf32> to vector<48xf32>
    %7 = vector.shape_cast %6 : vector<48xf32> to vector<48x1xf32>
    %cst_6 = arith.constant 1.280000e+02 : f32
    %8 = vector.broadcast %cst_6 : f32 to vector<48x1xf32>
    %9 = arith.divf %7, %8 : vector<48x1xf32>
    %10 = vector.broadcast %9 : vector<48x1xf32> to vector<48x128xf32>
    %11 = arith.subf %3, %10 : vector<48x128xf32>
    %12 = arith.mulf %11, %11 : vector<48x128xf32>
    %cst_7 = arith.constant dense<0.000000e+00> : vector<48xf32>
    %13 = vector.multi_reduction <add>, %12, %cst_7 [1] : vector<48x128xf32> to vector<48xf32>
    %14 = vector.shape_cast %13 : vector<48xf32> to vector<48x1xf32>
    %cst_8 = arith.constant 1.280000e+02 : f32
    %15 = vector.broadcast %cst_8 : f32 to vector<48x1xf32>
    %16 = arith.divf %14, %15 : vector<48x1xf32>
    %cst_9 = arith.constant 9.99999974E-6 : f32
    %17 = vector.broadcast %cst_9 : f32 to vector<48x1xf32>
    %18 = arith.addf %16, %17 : vector<48x1xf32>
    %19 = math.rsqrt %18 : vector<48x1xf32>
    %20 = vector.broadcast %19 : vector<48x1xf32> to vector<48x128xf32>
    %21 = arith.mulf %11, %20 : vector<48x128xf32>
    %22 = vector.broadcast %4 : vector<1x128xf32> to vector<48x128xf32>
    %23 = arith.mulf %21, %22 : vector<48x128xf32>
    %24 = vector.broadcast %5 : vector<1x128xf32> to vector<48x128xf32>
    %25 = arith.addf %23, %24 : vector<48x128xf32>
    %c0_10 = arith.constant 0 : index
    %c0_11 = arith.constant 0 : index
    %c0_12 = arith.constant 0 : index
    %26 = vector.load %arg6[%c0_10, %c0_11, %c0_12] : memref<1x128x384xf32, #tpu.memory_space<vmem>>, vector<1x128x384xf32>
    %27 = vector.shape_cast %26 : vector<1x128x384xf32> to vector<128x384xf32>
    %cst_13 = arith.constant dense<0.000000e+00> : vector<48x384xf32>
    %28 = tpu.matmul %25, %27, %cst_13 {dimension_numbers = #tpu.dot_dimension_numbers<[1], [0], [0], [1], [0, 0, 1, 1], [], []>} : vector<48x128xf32>, vector<128x384xf32>, vector<48x384xf32> -> vector<48x384xf32>
    %c0_14 = arith.constant 0 : index
    %c0_15 = arith.constant 0 : index
    %c0_16 = arith.constant 0 : index
    %29 = vector.load %arg7[%c0_14, %c0_15, %c0_16] : memref<1x1x384xf32, #tpu.memory_space<vmem>>, vector<1x1x384xf32>
    %30 = vector.shape_cast %29 : vector<1x1x384xf32> to vector<1x384xf32>
    %31 = vector.broadcast %30 : vector<1x384xf32> to vector<48x384xf32>
    %32 = arith.addf %28, %31 : vector<48x384xf32>
    %c0_17 = arith.constant 0 : index
    %c0_18 = arith.constant 0 : index
    %c0_19 = arith.constant 0 : index
    %33 = vector.load %arg8[%c0_17, %c0_18, %c0_19] : memref<1x128x128xf32, #tpu.memory_space<vmem>>, vector<1x128x128xf32>
    %34 = vector.shape_cast %33 : vector<1x128x128xf32> to vector<128x128xf32>
    %35 = tpu.iota {dimensions = array<i32: 2>} : vector<1x1x24xi32>
    %c17_i32 = arith.constant 17 : i32
    %36 = vector.broadcast %c17_i32 : i32 to vector<1x1x24xi32>
    %37 = arith.cmpi slt, %35, %36 : vector<1x1x24xi32>
    %cst_20 = arith.constant 0.000000e+00 : f32
    %38 = vector.broadcast %cst_20 : f32 to vector<48x128xf32>
    %39 = vector.extract_strided_slice %32 {offsets = [0, 0], sizes = [48, 32], strides = [1, 1]} : vector<48x384xf32> to vector<48x32xf32>
    %40 = vector.shape_cast %39 : vector<48x32xf32> to vector<2x24x32xf32>
    %41 = vector.extract_strided_slice %32 {offsets = [0, 128], sizes = [48, 32], strides = [1, 1]} : vector<48x384xf32> to vector<48x32xf32>
    %42 = vector.shape_cast %41 : vector<48x32xf32> to vector<2x24x32xf32>
    %43 = vector.extract_strided_slice %32 {offsets = [0, 256], sizes = [48, 32], strides = [1, 1]} : vector<48x384xf32> to vector<48x32xf32>
    %44 = vector.shape_cast %43 : vector<48x32xf32> to vector<2x24x32xf32>
    "tpu.trace_start"() <{level = 10 : i32, message = "bsd,btd->bst"}> : () -> ()
    %cst_21 = arith.constant dense<0.000000e+00> : vector<2x24x24xf32>
    %45 = tpu.matmul %40, %42, %cst_21 {dimension_numbers = #tpu.dot_dimension_numbers<[2], [2], [1], [1], [0, 0, 0, 1, 1, 1], [0], [0]>} : vector<2x24x32xf32>, vector<2x24x32xf32>, vector<2x24x24xf32> -> vector<2x24x24xf32>
    "tpu.trace_stop"() : () -> ()
    %cst_22 = arith.constant 0.176776692 : f32
    %46 = vector.broadcast %cst_22 : f32 to vector<2x24x24xf32>
    %47 = arith.mulf %45, %46 : vector<2x24x24xf32>
    %cst_23 = arith.constant -1.000000e+30 : f32
    %48 = vector.shape_cast %37 : vector<1x1x24xi1> to vector<1x1x24xi1>
    %49 = vector.broadcast %48 : vector<1x1x24xi1> to vector<2x24x24xi1>
    %50 = vector.broadcast %cst_23 : f32 to vector<2x24x24xf32>
    %51 = arith.select %49, %47, %50 : vector<2x24x24xi1>, vector<2x24x24xf32>
    %cst_24 = arith.constant dense<0xFF800000> : vector<2x24xf32>
    %52 = vector.multi_reduction <maximumf>, %51, %cst_24 [2] : vector<2x24x24xf32> to vector<2x24xf32>
    %53 = vector.shape_cast %52 : vector<2x24xf32> to vector<2x24x1xf32>
    %54 = vector.broadcast %53 : vector<2x24x1xf32> to vector<2x24x24xf32>
    %55 = arith.subf %51, %54 : vector<2x24x24xf32>
    %56 = math.exp %55 : vector<2x24x24xf32>
    %cst_25 = arith.constant dense<0.000000e+00> : vector<2x24xf32>
    %57 = vector.multi_reduction <add>, %56, %cst_25 [2] : vector<2x24x24xf32> to vector<2x24xf32>
    %58 = vector.shape_cast %57 : vector<2x24xf32> to vector<2x24x1xf32>
    %59 = vector.broadcast %58 : vector<2x24x1xf32> to vector<2x24x24xf32>
    %60 = arith.divf %56, %59 : vector<2x24x24xf32>
    "tpu.trace_start"() <{level = 10 : i32, message = "bst,btd->bsd"}> : () -> ()
    %cst_26 = arith.constant dense<0.000000e+00> : vector<2x24x32xf32>
    %61 = tpu.matmul %60, %44, %cst_26 {dimension_numbers = #tpu.dot_dimension_numbers<[2], [1], [1], [2], [0, 0, 0, 1, 1, 2], [0], [0]>} : vector<2x24x24xf32>, vector<2x24x32xf32>, vector<2x24x32xf32> -> vector<2x24x32xf32>
    "tpu.trace_stop"() : () -> ()
    %62 = vector.shape_cast %61 : vector<2x24x32xf32> to vector<48x32xf32>
    %63 = vector.extract_strided_slice %34 {offsets = [0, 0], sizes = [32, 128], strides = [1, 1]} : vector<128x128xf32> to vector<32x128xf32>
    %cst_27 = arith.constant dense<0.000000e+00> : vector<48x128xf32>
    %64 = tpu.matmul %62, %63, %cst_27 {dimension_numbers = #tpu.dot_dimension_numbers<[1], [0], [0], [1], [0, 0, 1, 1], [], []>} : vector<48x32xf32>, vector<32x128xf32>, vector<48x128xf32> -> vector<48x128xf32>
    %65 = arith.addf %38, %64 : vector<48x128xf32>
    %66 = vector.extract_strided_slice %32 {offsets = [0, 32], sizes = [48, 32], strides = [1, 1]} : vector<48x384xf32> to vector<48x32xf32>
    %67 = vector.shape_cast %66 : vector<48x32xf32> to vector<2x24x32xf32>
    %68 = vector.extract_strided_slice %32 {offsets = [0, 160], sizes = [48, 32], strides = [1, 1]} : vector<48x384xf32> to vector<48x32xf32>
    %69 = vector.shape_cast %68 : vector<48x32xf32> to vector<2x24x32xf32>
    %70 = vector.extract_strided_slice %32 {offsets = [0, 288], sizes = [48, 32], strides = [1, 1]} : vector<48x384xf32> to vector<48x32xf32>
    %71 = vector.shape_cast %70 : vector<48x32xf32> to vector<2x24x32xf32>
    "tpu.trace_start"() <{level = 10 : i32, message = "bsd,btd->bst"}> : () -> ()
    %cst_28 = arith.constant dense<0.000000e+00> : vector<2x24x24xf32>
    %72 = tpu.matmul %67, %69, %cst_28 {dimension_numbers = #tpu.dot_dimension_numbers<[2], [2], [1], [1], [0, 0, 0, 1, 1, 1], [0], [0]>} : vector<2x24x32xf32>, vector<2x24x32xf32>, vector<2x24x24xf32> -> vector<2x24x24xf32>
    "tpu.trace_stop"() : () -> ()
    %cst_29 = arith.constant 0.176776692 : f32
    %73 = vector.broadcast %cst_29 : f32 to vector<2x24x24xf32>
    %74 = arith.mulf %72, %73 : vector<2x24x24xf32>
    %cst_30 = arith.constant -1.000000e+30 : f32
    %75 = vector.shape_cast %37 : vector<1x1x24xi1> to vector<1x1x24xi1>
    %76 = vector.broadcast %75 : vector<1x1x24xi1> to vector<2x24x24xi1>
    %77 = vector.broadcast %cst_30 : f32 to vector<2x24x24xf32>
    %78 = arith.select %76, %74, %77 : vector<2x24x24xi1>, vector<2x24x24xf32>
    %cst_31 = arith.constant dense<0xFF800000> : vector<2x24xf32>
    %79 = vector.multi_reduction <maximumf>, %78, %cst_31 [2] : vector<2x24x24xf32> to vector<2x24xf32>
    %80 = vector.shape_cast %79 : vector<2x24xf32> to vector<2x24x1xf32>
    %81 = vector.broadcast %80 : vector<2x24x1xf32> to vector<2x24x24xf32>
    %82 = arith.subf %78, %81 : vector<2x24x24xf32>
    %83 = math.exp %82 : vector<2x24x24xf32>
    %cst_32 = arith.constant dense<0.000000e+00> : vector<2x24xf32>
    %84 = vector.multi_reduction <add>, %83, %cst_32 [2] : vector<2x24x24xf32> to vector<2x24xf32>
    %85 = vector.shape_cast %84 : vector<2x24xf32> to vector<2x24x1xf32>
    %86 = vector.broadcast %85 : vector<2x24x1xf32> to vector<2x24x24xf32>
    %87 = arith.divf %83, %86 : vector<2x24x24xf32>
    "tpu.trace_start"() <{level = 10 : i32, message = "bst,btd->bsd"}> : () -> ()
    %cst_33 = arith.constant dense<0.000000e+00> : vector<2x24x32xf32>
    %88 = tpu.matmul %87, %71, %cst_33 {dimension_numbers = #tpu.dot_dimension_numbers<[2], [1], [1], [2], [0, 0, 0, 1, 1, 2], [0], [0]>} : vector<2x24x24xf32>, vector<2x24x32xf32>, vector<2x24x32xf32> -> vector<2x24x32xf32>
    "tpu.trace_stop"() : () -> ()
    %89 = vector.shape_cast %88 : vector<2x24x32xf32> to vector<48x32xf32>
    %90 = vector.extract_strided_slice %34 {offsets = [32, 0], sizes = [32, 128], strides = [1, 1]} : vector<128x128xf32> to vector<32x128xf32>
    %cst_34 = arith.constant dense<0.000000e+00> : vector<48x128xf32>
    %91 = tpu.matmul %89, %90, %cst_34 {dimension_numbers = #tpu.dot_dimension_numbers<[1], [0], [0], [1], [0, 0, 1, 1], [], []>} : vector<48x32xf32>, vector<32x128xf32>, vector<48x128xf32> -> vector<48x128xf32>
    %92 = arith.addf %65, %91 : vector<48x128xf32>
    %93 = vector.extract_strided_slice %32 {offsets = [0, 64], sizes = [48, 32], strides = [1, 1]} : vector<48x384xf32> to vector<48x32xf32>
    %94 = vector.shape_cast %93 : vector<48x32xf32> to vector<2x24x32xf32>
    %95 = vector.extract_strided_slice %32 {offsets = [0, 192], sizes = [48, 32], strides = [1, 1]} : vector<48x384xf32> to vector<48x32xf32>
    %96 = vector.shape_cast %95 : vector<48x32xf32> to vector<2x24x32xf32>
    %97 = vector.extract_strided_slice %32 {offsets = [0, 320], sizes = [48, 32], strides = [1, 1]} : vector<48x384xf32> to vector<48x32xf32>
    %98 = vector.shape_cast %97 : vector<48x32xf32> to vector<2x24x32xf32>
    "tpu.trace_start"() <{level = 10 : i32, message = "bsd,btd->bst"}> : () -> ()
    %cst_35 = arith.constant dense<0.000000e+00> : vector<2x24x24xf32>
    %99 = tpu.matmul %94, %96, %cst_35 {dimension_numbers = #tpu.dot_dimension_numbers<[2], [2], [1], [1], [0, 0, 0, 1, 1, 1], [0], [0]>} : vector<2x24x32xf32>, vector<2x24x32xf32>, vector<2x24x24xf32> -> vector<2x24x24xf32>
    "tpu.trace_stop"() : () -> ()
    %cst_36 = arith.constant 0.176776692 : f32
    %100 = vector.broadcast %cst_36 : f32 to vector<2x24x24xf32>
    %101 = arith.mulf %99, %100 : vector<2x24x24xf32>
    %cst_37 = arith.constant -1.000000e+30 : f32
    %102 = vector.shape_cast %37 : vector<1x1x24xi1> to vector<1x1x24xi1>
    %103 = vector.broadcast %102 : vector<1x1x24xi1> to vector<2x24x24xi1>
    %104 = vector.broadcast %cst_37 : f32 to vector<2x24x24xf32>
    %105 = arith.select %103, %101, %104 : vector<2x24x24xi1>, vector<2x24x24xf32>
    %cst_38 = arith.constant dense<0xFF800000> : vector<2x24xf32>
    %106 = vector.multi_reduction <maximumf>, %105, %cst_38 [2] : vector<2x24x24xf32> to vector<2x24xf32>
    %107 = vector.shape_cast %106 : vector<2x24xf32> to vector<2x24x1xf32>
    %108 = vector.broadcast %107 : vector<2x24x1xf32> to vector<2x24x24xf32>
    %109 = arith.subf %105, %108 : vector<2x24x24xf32>
    %110 = math.exp %109 : vector<2x24x24xf32>
    %cst_39 = arith.constant dense<0.000000e+00> : vector<2x24xf32>
    %111 = vector.multi_reduction <add>, %110, %cst_39 [2] : vector<2x24x24xf32> to vector<2x24xf32>
    %112 = vector.shape_cast %111 : vector<2x24xf32> to vector<2x24x1xf32>
    %113 = vector.broadcast %112 : vector<2x24x1xf32> to vector<2x24x24xf32>
    %114 = arith.divf %110, %113 : vector<2x24x24xf32>
    "tpu.trace_start"() <{level = 10 : i32, message = "bst,btd->bsd"}> : () -> ()
    %cst_40 = arith.constant dense<0.000000e+00> : vector<2x24x32xf32>
    %115 = tpu.matmul %114, %98, %cst_40 {dimension_numbers = #tpu.dot_dimension_numbers<[2], [1], [1], [2], [0, 0, 0, 1, 1, 2], [0], [0]>} : vector<2x24x24xf32>, vector<2x24x32xf32>, vector<2x24x32xf32> -> vector<2x24x32xf32>
    "tpu.trace_stop"() : () -> ()
    %116 = vector.shape_cast %115 : vector<2x24x32xf32> to vector<48x32xf32>
    %117 = vector.extract_strided_slice %34 {offsets = [64, 0], sizes = [32, 128], strides = [1, 1]} : vector<128x128xf32> to vector<32x128xf32>
    %cst_41 = arith.constant dense<0.000000e+00> : vector<48x128xf32>
    %118 = tpu.matmul %116, %117, %cst_41 {dimension_numbers = #tpu.dot_dimension_numbers<[1], [0], [0], [1], [0, 0, 1, 1], [], []>} : vector<48x32xf32>, vector<32x128xf32>, vector<48x128xf32> -> vector<48x128xf32>
    %119 = arith.addf %92, %118 : vector<48x128xf32>
    %120 = vector.extract_strided_slice %32 {offsets = [0, 96], sizes = [48, 32], strides = [1, 1]} : vector<48x384xf32> to vector<48x32xf32>
    %121 = vector.shape_cast %120 : vector<48x32xf32> to vector<2x24x32xf32>
    %122 = vector.extract_strided_slice %32 {offsets = [0, 224], sizes = [48, 32], strides = [1, 1]} : vector<48x384xf32> to vector<48x32xf32>
    %123 = vector.shape_cast %122 : vector<48x32xf32> to vector<2x24x32xf32>
    %124 = vector.extract_strided_slice %32 {offsets = [0, 352], sizes = [48, 32], strides = [1, 1]} : vector<48x384xf32> to vector<48x32xf32>
    %125 = vector.shape_cast %124 : vector<48x32xf32> to vector<2x24x32xf32>
    "tpu.trace_start"() <{level = 10 : i32, message = "bsd,btd->bst"}> : () -> ()
    %cst_42 = arith.constant dense<0.000000e+00> : vector<2x24x24xf32>
    %126 = tpu.matmul %121, %123, %cst_42 {dimension_numbers = #tpu.dot_dimension_numbers<[2], [2], [1], [1], [0, 0, 0, 1, 1, 1], [0], [0]>} : vector<2x24x32xf32>, vector<2x24x32xf32>, vector<2x24x24xf32> -> vector<2x24x24xf32>
    "tpu.trace_stop"() : () -> ()
    %cst_43 = arith.constant 0.176776692 : f32
    %127 = vector.broadcast %cst_43 : f32 to vector<2x24x24xf32>
    %128 = arith.mulf %126, %127 : vector<2x24x24xf32>
    %cst_44 = arith.constant -1.000000e+30 : f32
    %129 = vector.shape_cast %37 : vector<1x1x24xi1> to vector<1x1x24xi1>
    %130 = vector.broadcast %129 : vector<1x1x24xi1> to vector<2x24x24xi1>
    %131 = vector.broadcast %cst_44 : f32 to vector<2x24x24xf32>
    %132 = arith.select %130, %128, %131 : vector<2x24x24xi1>, vector<2x24x24xf32>
    %cst_45 = arith.constant dense<0xFF800000> : vector<2x24xf32>
    %133 = vector.multi_reduction <maximumf>, %132, %cst_45 [2] : vector<2x24x24xf32> to vector<2x24xf32>
    %134 = vector.shape_cast %133 : vector<2x24xf32> to vector<2x24x1xf32>
    %135 = vector.broadcast %134 : vector<2x24x1xf32> to vector<2x24x24xf32>
    %136 = arith.subf %132, %135 : vector<2x24x24xf32>
    %137 = math.exp %136 : vector<2x24x24xf32>
    %cst_46 = arith.constant dense<0.000000e+00> : vector<2x24xf32>
    %138 = vector.multi_reduction <add>, %137, %cst_46 [2] : vector<2x24x24xf32> to vector<2x24xf32>
    %139 = vector.shape_cast %138 : vector<2x24xf32> to vector<2x24x1xf32>
    %140 = vector.broadcast %139 : vector<2x24x1xf32> to vector<2x24x24xf32>
    %141 = arith.divf %137, %140 : vector<2x24x24xf32>
    "tpu.trace_start"() <{level = 10 : i32, message = "bst,btd->bsd"}> : () -> ()
    %cst_47 = arith.constant dense<0.000000e+00> : vector<2x24x32xf32>
    %142 = tpu.matmul %141, %125, %cst_47 {dimension_numbers = #tpu.dot_dimension_numbers<[2], [1], [1], [2], [0, 0, 0, 1, 1, 2], [0], [0]>} : vector<2x24x24xf32>, vector<2x24x32xf32>, vector<2x24x32xf32> -> vector<2x24x32xf32>
    "tpu.trace_stop"() : () -> ()
    %143 = vector.shape_cast %142 : vector<2x24x32xf32> to vector<48x32xf32>
    %144 = vector.extract_strided_slice %34 {offsets = [96, 0], sizes = [32, 128], strides = [1, 1]} : vector<128x128xf32> to vector<32x128xf32>
    %cst_48 = arith.constant dense<0.000000e+00> : vector<48x128xf32>
    %145 = tpu.matmul %143, %144, %cst_48 {dimension_numbers = #tpu.dot_dimension_numbers<[1], [0], [0], [1], [0, 0, 1, 1], [], []>} : vector<48x32xf32>, vector<32x128xf32>, vector<48x128xf32> -> vector<48x128xf32>
    %146 = arith.addf %119, %145 : vector<48x128xf32>
    %147 = arith.addf %3, %146 : vector<48x128xf32>
    %c0_49 = arith.constant 0 : index
    %c0_50 = arith.constant 0 : index
    %c0_51 = arith.constant 0 : index
    %148 = vector.load %arg9[%c0_49, %c0_50, %c0_51] : memref<1x1x128xf32, #tpu.memory_space<vmem>>, vector<1x1x128xf32>
    %149 = vector.shape_cast %148 : vector<1x1x128xf32> to vector<1x128xf32>
    %150 = vector.broadcast %149 : vector<1x128xf32> to vector<48x128xf32>
    %151 = arith.addf %147, %150 : vector<48x128xf32>
    %cst_52 = arith.constant dense<0.000000e+00> : vector<48xf32>
    %152 = vector.multi_reduction <add>, %151, %cst_52 [1] : vector<48x128xf32> to vector<48xf32>
    %153 = vector.shape_cast %152 : vector<48xf32> to vector<48x1xf32>
    %cst_53 = arith.constant 1.280000e+02 : f32
    %154 = vector.broadcast %cst_53 : f32 to vector<48x1xf32>
    %155 = arith.divf %153, %154 : vector<48x1xf32>
    %156 = vector.broadcast %155 : vector<48x1xf32> to vector<48x128xf32>
    %157 = arith.subf %151, %156 : vector<48x128xf32>
    %158 = arith.mulf %157, %157 : vector<48x128xf32>
    %cst_54 = arith.constant dense<0.000000e+00> : vector<48xf32>
    %159 = vector.multi_reduction <add>, %158, %cst_54 [1] : vector<48x128xf32> to vector<48xf32>
    %160 = vector.shape_cast %159 : vector<48xf32> to vector<48x1xf32>
    %cst_55 = arith.constant 1.280000e+02 : f32
    %161 = vector.broadcast %cst_55 : f32 to vector<48x1xf32>
    %162 = arith.divf %160, %161 : vector<48x1xf32>
    %cst_56 = arith.constant 9.99999974E-6 : f32
    %163 = vector.broadcast %cst_56 : f32 to vector<48x1xf32>
    %164 = arith.addf %162, %163 : vector<48x1xf32>
    %165 = math.rsqrt %164 : vector<48x1xf32>
    %166 = vector.broadcast %165 : vector<48x1xf32> to vector<48x128xf32>
    %167 = arith.mulf %157, %166 : vector<48x128xf32>
    %168 = vector.broadcast %4 : vector<1x128xf32> to vector<48x128xf32>
    %169 = arith.mulf %167, %168 : vector<48x128xf32>
    %170 = vector.broadcast %5 : vector<1x128xf32> to vector<48x128xf32>
    %171 = arith.addf %169, %170 : vector<48x128xf32>
    %c0_57 = arith.constant 0 : index
    %c0_58 = arith.constant 0 : index
    %c0_59 = arith.constant 0 : index
    %172 = vector.load %arg10[%c0_57, %c0_58, %c0_59] : memref<1x1x128xf32, #tpu.memory_space<vmem>>, vector<1x1x128xf32>
    %173 = vector.shape_cast %172 : vector<1x1x128xf32> to vector<1x128xf32>
    %c0_60 = arith.constant 0 : index
    %c0_61 = arith.constant 0 : index
    %c0_62 = arith.constant 0 : index
    %174 = vector.load %arg11[%c0_60, %c0_61, %c0_62] : memref<1x1x128xf32, #tpu.memory_space<vmem>>, vector<1x1x128xf32>
    %175 = vector.shape_cast %174 : vector<1x1x128xf32> to vector<1x128xf32>
    %cst_63 = arith.constant dense<0.000000e+00> : vector<48xf32>
    %176 = vector.multi_reduction <add>, %171, %cst_63 [1] : vector<48x128xf32> to vector<48xf32>
    %177 = vector.shape_cast %176 : vector<48xf32> to vector<48x1xf32>
    %cst_64 = arith.constant 1.280000e+02 : f32
    %178 = vector.broadcast %cst_64 : f32 to vector<48x1xf32>
    %179 = arith.divf %177, %178 : vector<48x1xf32>
    %180 = vector.broadcast %179 : vector<48x1xf32> to vector<48x128xf32>
    %181 = arith.subf %171, %180 : vector<48x128xf32>
    %182 = arith.mulf %181, %181 : vector<48x128xf32>
    %cst_65 = arith.constant dense<0.000000e+00> : vector<48xf32>
    %183 = vector.multi_reduction <add>, %182, %cst_65 [1] : vector<48x128xf32> to vector<48xf32>
    %184 = vector.shape_cast %183 : vector<48xf32> to vector<48x1xf32>
    %cst_66 = arith.constant 1.280000e+02 : f32
    %185 = vector.broadcast %cst_66 : f32 to vector<48x1xf32>
    %186 = arith.divf %184, %185 : vector<48x1xf32>
    %cst_67 = arith.constant 9.99999974E-6 : f32
    %187 = vector.broadcast %cst_67 : f32 to vector<48x1xf32>
    %188 = arith.addf %186, %187 : vector<48x1xf32>
    %189 = math.rsqrt %188 : vector<48x1xf32>
    %190 = vector.broadcast %189 : vector<48x1xf32> to vector<48x128xf32>
    %191 = arith.mulf %181, %190 : vector<48x128xf32>
    %192 = vector.broadcast %173 : vector<1x128xf32> to vector<48x128xf32>
    %193 = arith.mulf %191, %192 : vector<48x128xf32>
    %194 = vector.broadcast %175 : vector<1x128xf32> to vector<48x128xf32>
    %195 = arith.addf %193, %194 : vector<48x128xf32>
    %c0_68 = arith.constant 0 : index
    %c0_69 = arith.constant 0 : index
    %c0_70 = arith.constant 0 : index
    %196 = vector.load %arg12[%c0_68, %c0_69, %c0_70] : memref<1x128x256xf32, #tpu.memory_space<vmem>>, vector<1x128x256xf32>
    %197 = vector.shape_cast %196 : vector<1x128x256xf32> to vector<128x256xf32>
    %cst_71 = arith.constant dense<0.000000e+00> : vector<48x256xf32>
    %198 = tpu.matmul %195, %197, %cst_71 {dimension_numbers = #tpu.dot_dimension_numbers<[1], [0], [0], [1], [0, 0, 1, 1], [], []>} : vector<48x128xf32>, vector<128x256xf32>, vector<48x256xf32> -> vector<48x256xf32>
    %c0_72 = arith.constant 0 : index
    %c0_73 = arith.constant 0 : index
    %c0_74 = arith.constant 0 : index
    %199 = vector.load %arg13[%c0_72, %c0_73, %c0_74] : memref<1x1x256xf32, #tpu.memory_space<vmem>>, vector<1x1x256xf32>
    %200 = vector.shape_cast %199 : vector<1x1x256xf32> to vector<1x256xf32>
    %201 = vector.broadcast %200 : vector<1x256xf32> to vector<48x256xf32>
    %202 = arith.addf %198, %201 : vector<48x256xf32>
    %cst_75 = arith.constant 5.000000e-01 : f32
    %203 = vector.broadcast %cst_75 : f32 to vector<48x256xf32>
    %204 = arith.mulf %203, %202 : vector<48x256xf32>
    %cst_76 = arith.constant 4.471500e-02 : f32
    %205 = vector.broadcast %cst_76 : f32 to vector<48x256xf32>
    %206 = arith.mulf %205, %202 : vector<48x256xf32>
    %207 = arith.mulf %206, %202 : vector<48x256xf32>
    %208 = arith.mulf %207, %202 : vector<48x256xf32>
    %209 = arith.addf %202, %208 : vector<48x256xf32>
    %cst_77 = arith.constant 0.797884583 : f32
    %210 = vector.broadcast %cst_77 : f32 to vector<48x256xf32>
    %211 = arith.mulf %210, %209 : vector<48x256xf32>
    %212 = math.tanh %211 : vector<48x256xf32>
    %cst_78 = arith.constant 1.000000e+00 : f32
    %213 = vector.broadcast %cst_78 : f32 to vector<48x256xf32>
    %214 = arith.addf %213, %212 : vector<48x256xf32>
    %215 = arith.mulf %204, %214 : vector<48x256xf32>
    %c0_79 = arith.constant 0 : index
    %c0_80 = arith.constant 0 : index
    %c0_81 = arith.constant 0 : index
    %216 = vector.load %arg14[%c0_79, %c0_80, %c0_81] : memref<1x256x128xf32, #tpu.memory_space<vmem>>, vector<1x256x128xf32>
    %217 = vector.shape_cast %216 : vector<1x256x128xf32> to vector<256x128xf32>
    %cst_82 = arith.constant dense<0.000000e+00> : vector<48x128xf32>
    %218 = tpu.matmul %215, %217, %cst_82 {dimension_numbers = #tpu.dot_dimension_numbers<[1], [0], [0], [1], [0, 0, 1, 1], [], []>} : vector<48x256xf32>, vector<256x128xf32>, vector<48x128xf32> -> vector<48x128xf32>
    %c0_83 = arith.constant 0 : index
    %c0_84 = arith.constant 0 : index
    %c0_85 = arith.constant 0 : index
    %219 = vector.load %arg15[%c0_83, %c0_84, %c0_85] : memref<1x1x128xf32, #tpu.memory_space<vmem>>, vector<1x1x128xf32>
    %220 = vector.shape_cast %219 : vector<1x1x128xf32> to vector<1x128xf32>
    %221 = vector.broadcast %220 : vector<1x128xf32> to vector<48x128xf32>
    %222 = arith.addf %218, %221 : vector<48x128xf32>
    %223 = arith.addf %151, %222 : vector<48x128xf32>
    %c0_86 = arith.constant 0 : index
    %c0_87 = arith.constant 0 : index
    %224 = vector.load %arg17[%c0_86, %c0_87] : memref<48x128xf32, #tpu.memory_space<vmem>>, vector<48x128xf32>
    tpu.vector_store %arg17[%c0_86, %c0_87], %223 {strides = array<i32>} : memref<48x128xf32, #tpu.memory_space<vmem>>, vector<48x128xf32>,
    %225 = vector.shape_cast %223 : vector<48x128xf32> to vector<2x24x128xf32>
    %226 = vector.extract_strided_slice %225 {offsets = [0, 0, 0], sizes = [2, 1, 128], strides = [1, 1, 1]} : vector<2x24x128xf32> to vector<2x1x128xf32>
    %227 = vector.shape_cast %226 : vector<2x1x128xf32> to vector<2x128xf32>
    %cst_88 = arith.constant dense<0.000000e+00> : vector<2xf32>
    %228 = vector.multi_reduction <add>, %227, %cst_88 [1] : vector<2x128xf32> to vector<2xf32>
    %229 = vector.shape_cast %228 : vector<2xf32> to vector<2x1xf32>
    %cst_89 = arith.constant 1.280000e+02 : f32
    %230 = vector.broadcast %cst_89 : f32 to vector<2x1xf32>
    %231 = arith.divf %229, %230 : vector<2x1xf32>
    %232 = vector.broadcast %231 : vector<2x1xf32> to vector<2x128xf32>
    %233 = arith.subf %227, %232 : vector<2x128xf32>
    %234 = arith.mulf %233, %233 : vector<2x128xf32>
    %cst_90 = arith.constant dense<0.000000e+00> : vector<2xf32>
    %235 = vector.multi_reduction <add>, %234, %cst_90 [1] : vector<2x128xf32> to vector<2xf32>
    %236 = vector.shape_cast %235 : vector<2xf32> to vector<2x1xf32>
    %cst_91 = arith.constant 1.280000e+02 : f32
    %237 = vector.broadcast %cst_91 : f32 to vector<2x1xf32>
    %238 = arith.divf %236, %237 : vector<2x1xf32>
    %cst_92 = arith.constant 9.99999974E-6 : f32
    %239 = vector.broadcast %cst_92 : f32 to vector<2x1xf32>
    %240 = arith.addf %238, %239 : vector<2x1xf32>
    %241 = math.rsqrt %240 : vector<2x1xf32>
    %242 = vector.broadcast %241 : vector<2x1xf32> to vector<2x128xf32>
    %243 = arith.mulf %233, %242 : vector<2x128xf32>
    %244 = vector.broadcast %4 : vector<1x128xf32> to vector<2x128xf32>
    %245 = arith.mulf %243, %244 : vector<2x128xf32>
    %246 = vector.broadcast %5 : vector<1x128xf32> to vector<2x128xf32>
    %247 = arith.addf %245, %246 : vector<2x128xf32>
    %c0_93 = arith.constant 0 : index
    %c0_94 = arith.constant 0 : index
    %248 = vector.load %arg4[%c0_93, %c0_94] : memref<128x10xf32, #tpu.memory_space<vmem>>, vector<128x10xf32>
    %cst_95 = arith.constant dense<0.000000e+00> : vector<2x10xf32>
    %249 = tpu.matmul %247, %248, %cst_95 {dimension_numbers = #tpu.dot_dimension_numbers<[1], [0], [0], [1], [0, 0, 1, 1], [], []>} : vector<2x128xf32>, vector<128x10xf32>, vector<2x10xf32> -> vector<2x10xf32>
    %c0_96 = arith.constant 0 : index
    %c0_97 = arith.constant 0 : index
    %250 = vector.load %arg5[%c0_96, %c0_97] : memref<1x10xf32, #tpu.memory_space<vmem>>, vector<1x10xf32>
    %251 = vector.broadcast %250 : vector<1x10xf32> to vector<2x10xf32>
    %252 = arith.addf %249, %251 : vector<2x10xf32>
    %c0_98 = arith.constant 0 : index
    %c0_99 = arith.constant 0 : index
    %253 = vector.load %arg16[%c0_98, %c0_99] : memref<2x10xf32, #tpu.memory_space<vmem>>, vector<2x10xf32>
    tpu.vector_store %arg16[%c0_98, %c0_99], %252 {strides = array<i32>} : memref<2x10xf32, #tpu.memory_space<vmem>>, vector<2x10xf32>,
    return
  }
  func.func @transform_0(%arg0: i32) -> (i32, i32) {
    %c0_i32 = arith.constant 0 : i32
    %c0_i32_0 = arith.constant 0 : i32
    %c0_i32_1 = arith.constant 0 : i32
    return %c0_i32, %c0_i32_0 : i32, i32
  }
  func.func @transform_1(%arg0: i32) -> (i32, i32) {
    %c0_i32 = arith.constant 0 : i32
    %c0_i32_0 = arith.constant 0 : i32
    %c0_i32_1 = arith.constant 0 : i32
    return %c0_i32, %c0_i32_0 : i32, i32
  }
  func.func @transform_2(%arg0: i32) -> (i32, i32) {
    %c0_i32 = arith.constant 0 : i32
    %c0_i32_0 = arith.constant 0 : i32
    %c0_i32_1 = arith.constant 0 : i32
    return %c0_i32, %c0_i32_0 : i32, i32
  }
  func.func @transform_3(%arg0: i32) -> (i32, i32) {
    %c0_i32 = arith.constant 0 : i32
    %c0_i32_0 = arith.constant 0 : i32
    %c0_i32_1 = arith.constant 0 : i32
    return %c0_i32, %c0_i32_0 : i32, i32
  }
  func.func @transform_4(%arg0: i32) -> (i32, i32) {
    %c0_i32 = arith.constant 0 : i32
    %c0_i32_0 = arith.constant 0 : i32
    %c0_i32_1 = arith.constant 0 : i32
    return %c0_i32, %c0_i32_0 : i32, i32
  }
  func.func @transform_5(%arg0: i32) -> (i32, i32, i32) {
    %c0_i32 = arith.constant 0 : i32
    %c0_i32_0 = arith.constant 0 : i32
    %c0_i32_1 = arith.constant 0 : i32
    return %arg0, %c0_i32, %c0_i32_0 : i32, i32, i32
  }
  func.func @transform_6(%arg0: i32) -> (i32, i32, i32) {
    %c0_i32 = arith.constant 0 : i32
    %c0_i32_0 = arith.constant 0 : i32
    %c0_i32_1 = arith.constant 0 : i32
    return %arg0, %c0_i32, %c0_i32_0 : i32, i32, i32
  }
  func.func @transform_7(%arg0: i32) -> (i32, i32, i32) {
    %c0_i32 = arith.constant 0 : i32
    %c0_i32_0 = arith.constant 0 : i32
    %c0_i32_1 = arith.constant 0 : i32
    return %arg0, %c0_i32, %c0_i32_0 : i32, i32, i32
  }
  func.func @transform_8(%arg0: i32) -> (i32, i32, i32) {
    %c0_i32 = arith.constant 0 : i32
    %c0_i32_0 = arith.constant 0 : i32
    %c0_i32_1 = arith.constant 0 : i32
    return %arg0, %c0_i32, %c0_i32_0 : i32, i32, i32
  }
  func.func @transform_9(%arg0: i32) -> (i32, i32, i32) {
    %c0_i32 = arith.constant 0 : i32
    %c0_i32_0 = arith.constant 0 : i32
    %c0_i32_1 = arith.constant 0 : i32
    return %arg0, %c0_i32, %c0_i32_0 : i32, i32, i32
  }
  func.func @transform_10(%arg0: i32) -> (i32, i32, i32) {
    %c0_i32 = arith.constant 0 : i32
    %c0_i32_0 = arith.constant 0 : i32
    %c0_i32_1 = arith.constant 0 : i32
    return %arg0, %c0_i32, %c0_i32_0 : i32, i32, i32
  }
  func.func @transform_11(%arg0: i32) -> (i32, i32, i32) {
    %c0_i32 = arith.constant 0 : i32
    %c0_i32_0 = arith.constant 0 : i32
    %c0_i32_1 = arith.constant 0 : i32
    return %arg0, %c0_i32, %c0_i32_0 : i32, i32, i32
  }
  func.func @transform_12(%arg0: i32) -> (i32, i32, i32) {
    %c0_i32 = arith.constant 0 : i32
    %c0_i32_0 = arith.constant 0 : i32
    %c0_i32_1 = arith.constant 0 : i32
    return %arg0, %c0_i32, %c0_i32_0 : i32, i32, i32
  }
  func.func @transform_13(%arg0: i32) -> (i32, i32, i32) {
    %c0_i32 = arith.constant 0 : i32
    %c0_i32_0 = arith.constant 0 : i32
    %c0_i32_1 = arith.constant 0 : i32
    return %arg0, %c0_i32, %c0_i32_0 : i32, i32, i32
  }
  func.func @transform_14(%arg0: i32) -> (i32, i32, i32) {
    %c0_i32 = arith.constant 0 : i32
    %c0_i32_0 = arith.constant 0 : i32
    %c0_i32_1 = arith.constant 0 : i32
    return %arg0, %c0_i32, %c0_i32_0 : i32, i32, i32
  }
  func.func @transform_15(%arg0: i32) -> (i32, i32) {
    %c0_i32 = arith.constant 0 : i32
    %c0_i32_0 = arith.constant 0 : i32
    %c0_i32_1 = arith.constant 0 : i32
    return %c0_i32, %c0_i32_0 : i32, i32
  }
}

</mosaic_0001>

<llo_original>
// kernel: vit_forward_pallas.2
$region0: #{vit_forward_pallas.2}
  #allocation0 [shape = 'u32[]', space=smem, size = 0x4, offset = 0x4, fixed_abs, tag = 'smem constant byte address 0x4 - core index']
  #allocation1 [shape = 'u32[72,128]{1,0:T(1,128)}', space=vmem, size = 0x9000, scoped, tag = 'internal scratch']
  %s0 = inlined_call_operand.vmem [shape: f32[48,48], index: 0, kind: input, shape index: {}]
  %s1 = inlined_call_operand.vmem [shape: f32[1,48], index: 1, kind: input, shape index: {}]
  %s2 = inlined_call_operand.vmem [shape: f32[1,48], index: 2, kind: input, shape index: {}]
  %s3 = inlined_call_operand.vmem [shape: f32[48,128], index: 3, kind: input, shape index: {}]
  %s4 = inlined_call_operand.vmem [shape: f32[1,128], index: 4, kind: input, shape index: {}]
  %s5 = inlined_call_operand.vmem [shape: f32[1,128], index: 5, kind: input, shape index: {}]
  %s6 = inlined_call_operand.vmem [shape: f32[1,128], index: 6, kind: input, shape index: {}]
  %s7 = inlined_call_operand.vmem [shape: f32[1,128], index: 7, kind: input, shape index: {}]
  %s8 = inlined_call_operand.vmem [shape: f32[24,128], index: 8, kind: input, shape index: {}]
  %s9 = inlined_call_operand.vmem [shape: f32[48,128], index: 9, kind: output, shape index: {}]
  %s10 = sld [smem:[#allocation0]]
  $region46: #{vit_forward_pallas.2} parent=0
    _
  %s12 = ssub.s32 1, %s10
  %s13 = scalar_select 0, %s12, %s10
  // Predicated region
  $region2: #{vit_forward_pallas.2} parent=0 // pred_check
    _
  $region3: #{vit_forward_pallas.2} parent=0 // pred_check_branch
    %15 = sbr.rel (0) target = $region5
  $region4: #{vit_forward_pallas.2} parent=0 // pred_region
    _
  $region5: #{vit_forward_pallas.2} parent=0 // pred_fallthru
    _
  // Predicated region
  $region6: #{vit_forward_pallas.2} parent=0 // pred_check
    _
  $region7: #{vit_forward_pallas.2} parent=0 // pred_check_branch
    %17 = sbr.rel (0) target = $region9
  $region8: #{vit_forward_pallas.2} parent=0 // pred_region
    _
  $region9: #{vit_forward_pallas.2} parent=0 // pred_fallthru
    _
  // Predicated region
  $region10: #{vit_forward_pallas.2} parent=0 // pred_check
    _
  $region11: #{vit_forward_pallas.2} parent=0 // pred_check_branch
    %19 = sbr.rel (0) target = $region13
  $region12: #{vit_forward_pallas.2} parent=0 // pred_region
    _
  $region13: #{vit_forward_pallas.2} parent=0 // pred_fallthru
    _
  // Predicated region
  $region14: #{vit_forward_pallas.2} parent=0 // pred_check
    _
  $region15: #{vit_forward_pallas.2} parent=0 // pred_check_branch
    %21 = sbr.rel (0) target = $region17
  $region16: #{vit_forward_pallas.2} parent=0 // pred_region
    _
  $region17: #{vit_forward_pallas.2} parent=0 // pred_fallthru
    _
  // Predicated region
  $region18: #{vit_forward_pallas.2} parent=0 // pred_check
    _
  $region19: #{vit_forward_pallas.2} parent=0 // pred_check_branch
    %23 = sbr.rel (0) target = $region21
  $region20: #{vit_forward_pallas.2} parent=0 // pred_region
    _
  $region21: #{vit_forward_pallas.2} parent=0 // pred_fallthru
    _
  // Predicated region
  $region22: #{vit_forward_pallas.2} parent=0 // pred_check
    _
  $region23: #{vit_forward_pallas.2} parent=0 // pred_check_branch
    %25 = sbr.rel (0) target = $region25
  $region24: #{vit_forward_pallas.2} parent=0 // pred_region
    _
  $region25: #{vit_forward_pallas.2} parent=0 // pred_fallthru
    _
  // Predicated region
  $region26: #{vit_forward_pallas.2} parent=0 // pred_check
    _
  $region27: #{vit_forward_pallas.2} parent=0 // pred_check_branch
    %27 = sbr.rel (0) target = $region29
  $region28: #{vit_forward_pallas.2} parent=0 // pred_region
    _
  $region29: #{vit_forward_pallas.2} parent=0 // pred_fallthru
    _
  // Predicated region
  $region30: #{vit_forward_pallas.2} parent=0 // pred_check
    _
  $region31: #{vit_forward_pallas.2} parent=0 // pred_check_branch
    %29 = sbr.rel (0) target = $region33
  $region32: #{vit_forward_pallas.2} parent=0 // pred_region
    _
  $region33: #{vit_forward_pallas.2} parent=0 // pred_fallthru
    _
  // Predicated region
  $region34: #{vit_forward_pallas.2} parent=0 // pred_check
    _
  $region35: #{vit_forward_pallas.2} parent=0 // pred_check_branch
    %31 = sbr.rel (0) target = $region37
  $region36: #{vit_forward_pallas.2} parent=0 // pred_region
    _
  $region37: #{vit_forward_pallas.2} parent=0 // pred_fallthru
    _
  %v32 = vld [vmem:[%s0] sm:$0xff]
  %v33 = vld [vmem:[%s0 + $0x8] sm:$0xff]
  %v34 = vld [vmem:[%s0 + $0x10] sm:$0xff]
  %v35 = vld [vmem:[%s0 + $0x18] sm:$0xff]
  %v36 = vld [vmem:[%s0 + $0x20] sm:$0xff]
  %v37 = vld [vmem:[%s0 + $0x28] sm:$0xff]
  %v38 = vld [vmem:[%s1] sm:$0x1]
  %v39 = vld [vmem:[%s2] sm:$0x1]
  %vm40 = vcmask 392192
  %v41 = vsel %vm40, %v32, 0.0
  %42 = vadd.xlane.f32.xlu0 %v41
  %v43 = vpop.xlane.xlu0 %42
  %v44 = vsel %vm40, %v33, 0.0
  %45 = vadd.xlane.f32.xlu0 %v44
  %v46 = vpop.xlane.xlu0 %45
  %v47 = vsel %vm40, %v34, 0.0
  %48 = vadd.xlane.f32.xlu0 %v47
  %v49 = vpop.xlane.xlu0 %48
  %v50 = vsel %vm40, %v35, 0.0
  %51 = vadd.xlane.f32.xlu0 %v50
  %v52 = vpop.xlane.xlu0 %51
  %v53 = vsel %vm40, %v36, 0.0
  %54 = vadd.xlane.f32.xlu0 %v53
  %v55 = vpop.xlane.xlu0 %54
  %v56 = vsel %vm40, %v37, 0.0
  %57 = vadd.xlane.f32.xlu0 %v56
  %v58 = vpop.xlane.xlu0 %57
  %v59 = vrcp.pop 48.0
  %v60 = vmul.f32 48.0, %v59
  %v61 = vsub.f32 1.0, %v60
  %v62 = vmul.f32 %v59, %v61
  %v63 = vadd.f32 %v59, %v62
  %vm64 = vweird.f32 %v59
  %v65 = vsel %vm64, %v59, %v63
  %v66 = vmul.f32 %v43, %v65
  %v67 = vmul.f32 %v46, %v65
  %v68 = vmul.f32 %v49, %v65
  %v69 = vmul.f32 %v52, %v65
  %v70 = vmul.f32 %v55, %v65
  %v71 = vmul.f32 %v58, %v65
  %v72 = vsub.f32 %v32, %v66
  %v73 = vsub.f32 %v33, %v67
  %v74 = vsub.f32 %v34, %v68
  %v75 = vsub.f32 %v35, %v69
  %v76 = vsub.f32 %v36, %v70
  %v77 = vsub.f32 %v37, %v71
  %v78 = vmul.f32 %v72, %v72
  %v79 = vmul.f32 %v73, %v73
  %v80 = vmul.f32 %v74, %v74
  %v81 = vmul.f32 %v75, %v75
  %v82 = vmul.f32 %v76, %v76
  %v83 = vmul.f32 %v77, %v77
  %v84 = vsel %vm40, %v78, 0.0
  %85 = vadd.xlane.f32.xlu0 %v84
  %v86 = vpop.xlane.xlu0 %85
  %v87 = vsel %vm40, %v79, 0.0
  %88 = vadd.xlane.f32.xlu0 %v87
  %v89 = vpop.xlane.xlu0 %88
  %v90 = vsel %vm40, %v80, 0.0
  %91 = vadd.xlane.f32.xlu0 %v90
  %v92 = vpop.xlane.xlu0 %91
  %v93 = vsel %vm40, %v81, 0.0
  %94 = vadd.xlane.f32.xlu0 %v93
  %v95 = vpop.xlane.xlu0 %94
  %v96 = vsel %vm40, %v82, 0.0
  %97 = vadd.xlane.f32.xlu0 %v96
  %v98 = vpop.xlane.xlu0 %97
  %v99 = vsel %vm40, %v83, 0.0
  %100 = vadd.xlane.f32.xlu0 %v99
  %v101 = vpop.xlane.xlu0 %100
  %v102 = vmul.f32 %v86, %v65
  %v103 = vmul.f32 %v89, %v65
  %v104 = vmul.f32 %v92, %v65
  %v105 = vmul.f32 %v95, %v65
  %v106 = vmul.f32 %v98, %v65
  %v107 = vmul.f32 %v101, %v65
  %v108 = vadd.f32 %v102, 1e-05
  %v109 = vadd.f32 %v103, 1e-05
  %v110 = vadd.f32 %v104, 1e-05
  %v111 = vadd.f32 %v105, 1e-05
  %v112 = vadd.f32 %v106, 1e-05
  %v113 = vadd.f32 %v107, 1e-05
  %v114 = vrsqrt.pop %v108
  %v115 = vmul.f32 %v114, %v108
  %v116 = vmul.f32 %v115, %v114
  %v117 = vmul.f32 0.5, %v116
  %v118 = vsub.f32 1.5, %v117
  %v119 = vmul.f32 %v114, %v118
  %vm120 = vweird.f32 %v108
  %vm121 = vweird.f32 %v114
  %vm122 = vmor %vm120, %vm121
  %v123 = vsel %vm122, %v114, %v119
  %v124 = vrsqrt.pop %v109
  %v125 = vmul.f32 %v124, %v109
  %v126 = vmul.f32 %v125, %v124
  %v127 = vmul.f32 0.5, %v126
  %v128 = vsub.f32 1.5, %v127
  %v129 = vmul.f32 %v124, %v128
  %vm130 = vweird.f32 %v109
  %vm131 = vweird.f32 %v124
  %vm132 = vmor %vm130, %vm131
  %v133 = vsel %vm132, %v124, %v129
  %v134 = vrsqrt.pop %v110
  %v135 = vmul.f32 %v134, %v110
  %v136 = vmul.f32 %v135, %v134
  %v137 = vmul.f32 0.5, %v136
  %v138 = vsub.f32 1.5, %v137
  %v139 = vmul.f32 %v134, %v138
  %vm140 = vweird.f32 %v110
  %vm141 = vweird.f32 %v134
  %vm142 = vmor %vm140, %vm141
  %v143 = vsel %vm142, %v134, %v139
  %v144 = vrsqrt.pop %v111
  %v145 = vmul.f32 %v144, %v111
  %v146 = vmul.f32 %v145, %v144
  %v147 = vmul.f32 0.5, %v146
  %v148 = vsub.f32 1.5, %v147
  %v149 = vmul.f32 %v144, %v148
  %vm150 = vweird.f32 %v111
  %vm151 = vweird.f32 %v144
  %vm152 = vmor %vm150, %vm151
  %v153 = vsel %vm152, %v144, %v149
  %v154 = vrsqrt.pop %v112
  %v155 = vmul.f32 %v154, %v112
  %v156 = vmul.f32 %v155, %v154
  %v157 = vmul.f32 0.5, %v156
  %v158 = vsub.f32 1.5, %v157
  %v159 = vmul.f32 %v154, %v158
  %vm160 = vweird.f32 %v112
  %vm161 = vweird.f32 %v154
  %vm162 = vmor %vm160, %vm161
  %v163 = vsel %vm162, %v154, %v159
  %v164 = vrsqrt.pop %v113
  %v165 = vmul.f32 %v164, %v113
  %v166 = vmul.f32 %v165, %v164
  %v167 = vmul.f32 0.5, %v166
  %v168 = vsub.f32 1.5, %v167
  %v169 = vmul.f32 %v164, %v168
  %vm170 = vweird.f32 %v113
  %vm171 = vweird.f32 %v164
  %vm172 = vmor %vm170, %vm171
  %v173 = vsel %vm172, %v164, %v169
  %v174 = vmul.f32 %v72, %v123
  %v175 = vmul.f32 %v73, %v133
  %v176 = vmul.f32 %v74, %v143
  %v177 = vmul.f32 %v75, %v153
  %v178 = vmul.f32 %v76, %v163
  %v179 = vmul.f32 %v77, %v173
  %v181 = vperm.slane %v38, 0
  %v183 = vmul.f32 %v174, %v181
  %v184 = vmul.f32 %v175, %v181
  %v185 = vmul.f32 %v176, %v181
  %v186 = vmul.f32 %v177, %v181
  %v187 = vmul.f32 %v178, %v181
  %v188 = vmul.f32 %v179, %v181
  %v190 = vperm.slane %v39, 0
  %v192 = vadd.f32 %v183, %v190
  %v193 = vadd.f32 %v184, %v190
  %v194 = vadd.f32 %v185, %v190
  %v195 = vadd.f32 %v186, %v190
  %v196 = vadd.f32 %v187, %v190
  %v197 = vadd.f32 %v188, %v190
  %v198 = vld [vmem:[%s3] sm:$0xff]
  %v199 = vld [vmem:[%s3 + $0x8] sm:$0xff]
  %v200 = vld [vmem:[%s3 + $0x10] sm:$0xff]
  %v201 = vld [vmem:[%s3 + $0x18] sm:$0xff]
  %v202 = vld [vmem:[%s3 + $0x20] sm:$0xff]
  %v203 = vld [vmem:[%s3 + $0x28] sm:$0xff]
  %v204 = vld [vmem:[%s4] sm:$0x1]
  %v206 = vperm.slane %v204, 0
  %v209 = vsel %vm40, %v192, 0
  %v212 = vsel %vm40, %v193, 0
  %v215 = vsel %vm40, %v194, 0
  %v218 = vsel %vm40, %v195, 0
  %v221 = vsel %vm40, %v196, 0
  %v224 = vsel %vm40, %v197, 0
  %226 = vmatpush.msra.mxu0 0.0
  %227 = vmatpush.msra.mxu0 0.0
  %228 = vmatpush.msra.mxu0 0.0
  %229 = vmatpush.msra.mxu0 0.0
  %230 = vmatpush.msra.mxu0 0.0
  %231 = vmatpush.msra.mxu0 0.0
  %232 = vmatpush.msra.mxu0 0.0
  %233 = vmatpush.msra.mxu0 0.0
  %234 = vmatpush.msra.mxu0 0.0
  %235 = vmatpush.msra.mxu0 0.0
  %236 = vmatpush.msra.mxu0 %v203
  %237 = vmatpush.msra.mxu0 %v202
  %238 = vmatpush.msra.mxu0 %v201
  %239 = vmatpush.msra.mxu0 %v200
  %240 = vmatpush.msra.mxu0 %v199
  %241 = vmatpush.msra.mxu0 %v198
  %242 = vmatmul.f32.gmra.mxu0 %v209
  %v243 = vpop.f32.mrf.mxu0
  %v244 = vadd.f32 %v206, %v243
  %245 = vmatmul.f32.gmra.mxu0 %v212
  %v246 = vpop.f32.mrf.mxu0
  %v247 = vadd.f32 %v206, %v246
  %248 = vmatmul.f32.gmra.mxu0 %v215
  %v249 = vpop.f32.mrf.mxu0
  %v250 = vadd.f32 %v206, %v249
  %251 = vmatmul.f32.gmra.mxu0 %v218
  %v252 = vpop.f32.mrf.mxu0
  %v253 = vadd.f32 %v206, %v252
  %254 = vmatmul.f32.gmra.mxu0 %v221
  %v255 = vpop.f32.mrf.mxu0
  %v256 = vadd.f32 %v206, %v255
  %257 = vmatmul.f32.gmra.mxu0 %v224
  %v258 = vpop.f32.mrf.mxu0
  %v259 = vadd.f32 %v206, %v258
  %260 = vdwg.mxu0
  %v261 = vld [vmem:[%s5] sm:$0x1]
  %v262 = vld [vmem:[%s6] sm:$0x1]
  %263 = vadd.xlane.f32.xlu0 %v244
  %v264 = vpop.xlane.xlu0 %263
  %265 = vadd.xlane.f32.xlu0 %v247
  %v266 = vpop.xlane.xlu0 %265
  %267 = vadd.xlane.f32.xlu0 %v250
  %v268 = vpop.xlane.xlu0 %267
  %269 = vadd.xlane.f32.xlu0 %v253
  %v270 = vpop.xlane.xlu0 %269
  %271 = vadd.xlane.f32.xlu0 %v256
  %v272 = vpop.xlane.xlu0 %271
  %273 = vadd.xlane.f32.xlu0 %v259
  %v274 = vpop.xlane.xlu0 %273
  %v275 = vrcp.pop 128.0
  %v276 = vmul.f32 128.0, %v275
  %v277 = vsub.f32 1.0, %v276
  %v278 = vmul.f32 %v275, %v277
  %v279 = vadd.f32 %v275, %v278
  %vm280 = vweird.f32 %v275
  %v281 = vsel %vm280, %v275, %v279
  %v282 = vmul.f32 %v264, %v281
  %v283 = vmul.f32 %v266, %v281
  %v284 = vmul.f32 %v268, %v281
  %v285 = vmul.f32 %v270, %v281
  %v286 = vmul.f32 %v272, %v281
  %v287 = vmul.f32 %v274, %v281
  %v288 = vsub.f32 %v244, %v282
  %v289 = vsub.f32 %v247, %v283
  %v290 = vsub.f32 %v250, %v284
  %v291 = vsub.f32 %v253, %v285
  %v292 = vsub.f32 %v256, %v286
  %v293 = vsub.f32 %v259, %v287
  %v294 = vmul.f32 %v288, %v288
  %v295 = vmul.f32 %v289, %v289
  %v296 = vmul.f32 %v290, %v290
  %v297 = vmul.f32 %v291, %v291
  %v298 = vmul.f32 %v292, %v292
  %v299 = vmul.f32 %v293, %v293
  %300 = vadd.xlane.f32.xlu0 %v294
  %v301 = vpop.xlane.xlu0 %300
  %302 = vadd.xlane.f32.xlu0 %v295
  %v303 = vpop.xlane.xlu0 %302
  %304 = vadd.xlane.f32.xlu0 %v296
  %v305 = vpop.xlane.xlu0 %304
  %306 = vadd.xlane.f32.xlu0 %v297
  %v307 = vpop.xlane.xlu0 %306
  %308 = vadd.xlane.f32.xlu0 %v298
  %v309 = vpop.xlane.xlu0 %308
  %310 = vadd.xlane.f32.xlu0 %v299
  %v311 = vpop.xlane.xlu0 %310
  %v312 = vmul.f32 %v301, %v281
  %v313 = vmul.f32 %v303, %v281
  %v314 = vmul.f32 %v305, %v281
  %v315 = vmul.f32 %v307, %v281
  %v316 = vmul.f32 %v309, %v281
  %v317 = vmul.f32 %v311, %v281
  %v318 = vadd.f32 %v312, 1e-05
  %v319 = vadd.f32 %v313, 1e-05
  %v320 = vadd.f32 %v314, 1e-05
  %v321 = vadd.f32 %v315, 1e-05
  %v322 = vadd.f32 %v316, 1e-05
  %v323 = vadd.f32 %v317, 1e-05
  %v324 = vrsqrt.pop %v318
  %v325 = vmul.f32 %v324, %v318
  %v326 = vmul.f32 %v325, %v324
  %v327 = vmul.f32 0.5, %v326
  %v328 = vsub.f32 1.5, %v327
  %v329 = vmul.f32 %v324, %v328
  %vm330 = vweird.f32 %v318
  %vm331 = vweird.f32 %v324
  %vm332 = vmor %vm330, %vm331
  %v333 = vsel %vm332, %v324, %v329
  %v334 = vrsqrt.pop %v319
  %v335 = vmul.f32 %v334, %v319
  %v336 = vmul.f32 %v335, %v334
  %v337 = vmul.f32 0.5, %v336
  %v338 = vsub.f32 1.5, %v337
  %v339 = vmul.f32 %v334, %v338
  %vm340 = vweird.f32 %v319
  %vm341 = vweird.f32 %v334
  %vm342 = vmor %vm340, %vm341
  %v343 = vsel %vm342, %v334, %v339
  %v344 = vrsqrt.pop %v320
  %v345 = vmul.f32 %v344, %v320
  %v346 = vmul.f32 %v345, %v344
  %v347 = vmul.f32 0.5, %v346
  %v348 = vsub.f32 1.5, %v347
  %v349 = vmul.f32 %v344, %v348
  %vm350 = vweird.f32 %v320
  %vm351 = vweird.f32 %v344
  %vm352 = vmor %vm350, %vm351
  %v353 = vsel %vm352, %v344, %v349
  %v354 = vrsqrt.pop %v321
  %v355 = vmul.f32 %v354, %v321
  %v356 = vmul.f32 %v355, %v354
  %v357 = vmul.f32 0.5, %v356
  %v358 = vsub.f32 1.5, %v357
  %v359 = vmul.f32 %v354, %v358
  %vm360 = vweird.f32 %v321
  %vm361 = vweird.f32 %v354
  %vm362 = vmor %vm360, %vm361
  %v363 = vsel %vm362, %v354, %v359
  %v364 = vrsqrt.pop %v322
  %v365 = vmul.f32 %v364, %v322
  %v366 = vmul.f32 %v365, %v364
  %v367 = vmul.f32 0.5, %v366
  %v368 = vsub.f32 1.5, %v367
  %v369 = vmul.f32 %v364, %v368
  %vm370 = vweird.f32 %v322
  %vm371 = vweird.f32 %v364
  %vm372 = vmor %vm370, %vm371
  %v373 = vsel %vm372, %v364, %v369
  %v374 = vrsqrt.pop %v323
  %v375 = vmul.f32 %v374, %v323
  %v376 = vmul.f32 %v375, %v374
  %v377 = vmul.f32 0.5, %v376
  %v378 = vsub.f32 1.5, %v377
  %v379 = vmul.f32 %v374, %v378
  %vm380 = vweird.f32 %v323
  %vm381 = vweird.f32 %v374
  %vm382 = vmor %vm380, %vm381
  %v383 = vsel %vm382, %v374, %v379
  %v384 = vmul.f32 %v288, %v333
  %v385 = vmul.f32 %v289, %v343
  %v386 = vmul.f32 %v290, %v353
  %v387 = vmul.f32 %v291, %v363
  %v388 = vmul.f32 %v292, %v373
  %v389 = vmul.f32 %v293, %v383
  %v391 = vperm.slane %v261, 0
  %v393 = vmul.f32 %v384, %v391
  %v394 = vmul.f32 %v385, %v391
  %v395 = vmul.f32 %v386, %v391
  %v396 = vmul.f32 %v387, %v391
  %v397 = vmul.f32 %v388, %v391
  %v398 = vmul.f32 %v389, %v391
  %v400 = vperm.slane %v262, 0
  %v402 = vadd.f32 %v393, %v400
  %v403 = vadd.f32 %v394, %v400
  %v404 = vadd.f32 %v395, %v400
  %v405 = vadd.f32 %v396, %v400
  %v406 = vadd.f32 %v397, %v400
  %v407 = vadd.f32 %v398, %v400
  %v408 = vlaneseq
  %v409 = vshrl.u32 %v408, 7
  %v410 = vadd.s32 %v409, 8
  %v411 = vadd.s32 %v409, 16
  %vm412 = vcmp.eq.s32.totalorder %v409, 0
  %vm413 = vcmp.eq.s32.totalorder %v410, 0
  %vm414 = vcmp.eq.s32.totalorder %v411, 0
  %v415 = vld [vmem:[%s7] sm:$0x1]
  %v417 = vperm.slane %v415, 0
  %v419 = vsel %vm412, %v417, %v402
  %v420 = vsel %vm413, %v417, %v403
  %v421 = vsel %vm414, %v417, %v404
  %v422 = vsel %vm412, %v417, %v405
  %v423 = vsel %vm413, %v417, %v406
  %v424 = vsel %vm414, %v417, %v407
  %vm425 = vcmp.lt.s32.totalorder %v409, 17
  %vm426 = vcmp.lt.s32.totalorder %v410, 17
  %vm427 = vcmp.lt.s32.totalorder %v411, 17
  %v428 = vsel %vm425, %v419, 0.0
  %v429 = vsel %vm426, %v420, 0.0
  %v430 = vsel %vm427, %v421, 0.0
  %v431 = vsel %vm425, %v422, 0.0
  %v432 = vsel %vm426, %v423, 0.0
  %v433 = vsel %vm427, %v424, 0.0
  %v434 = vld [vmem:[%s8] sm:$0xff]
  %v435 = vld [vmem:[%s8 + $0x8] sm:$0xff]
  %v436 = vld [vmem:[%s8 + $0x10] sm:$0xff]
  %v437 = vadd.f32 %v428, %v434
  %v438 = vadd.f32 %v429, %v435
  %v439 = vadd.f32 %v430, %v436
  %v440 = vadd.f32 %v431, %v434
  %v441 = vadd.f32 %v432, %v435
  %v442 = vadd.f32 %v433, %v436
  %443 = vst [vmem:[%s9] sm:$0xff] %v437
  %444 = vst [vmem:[%s9 + $0x8] sm:$0xff] %v438
  %445 = vst [vmem:[%s9 + $0x10] sm:$0xff] %v439
  %446 = vst [vmem:[%s9 + $0x18] sm:$0xff] %v440
  %447 = vst [vmem:[%s9 + $0x20] sm:$0xff] %v441
  %448 = vst [vmem:[%s9 + $0x28] sm:$0xff] %v442
  // Predicated region
  $region38: #{vit_forward_pallas.2} parent=0 // pred_check
    _
  $region39: #{vit_forward_pallas.2} parent=0 // pred_check_branch
    %450 = sbr.rel (0) target = $region41
  $region40: #{vit_forward_pallas.2} parent=0 // pred_region
    _
  $region41: #{vit_forward_pallas.2} parent=0 // pred_fallthru
    _
  // Predicated region
  $region42: #{vit_forward_pallas.2} parent=0 // pred_check
    _
  $region43: #{vit_forward_pallas.2} parent=0 // pred_check_branch
    %452 = sbr.rel (0) target = $region45
  $region44: #{vit_forward_pallas.2} parent=0 // pred_region
    _
  $region45: #{vit_forward_pallas.2} parent=0 // pred_fallthru
    _

// kernel: vit_forward_pallas.3
$region0: #{vit_forward_pallas.3}
  #allocation0 [shape = 'u32[]', space=smem, size = 0x4, offset = 0x4, fixed_abs, tag = 'smem constant byte address 0x4 - core index']
  #allocation1 [shape = 'u32[72,128]{1,0:T(1,128)}', space=vmem, size = 0x9000, scoped, tag = 'internal scratch']
  #allocation2 [shape = 'f32[48,128]{1,0:T(8,128)}', space=vmem, size = 0x6000, scoped, tag = 'scratch operand']
  %s0 = inlined_call_operand.vmem [shape: f32[48,128], index: 0, kind: input, shape index: {}]
  %s1 = inlined_call_operand.vmem [shape: f32[1,128], index: 1, kind: input, shape index: {}]
  %s2 = inlined_call_operand.vmem [shape: f32[1,128], index: 2, kind: input, shape index: {}]
  %s3 = inlined_call_operand.vmem [shape: f32[128,10], index: 3, kind: input, shape index: {}]
  %s4 = inlined_call_operand.vmem [shape: f32[1,10], index: 4, kind: input, shape index: {}]
  %s5 = inlined_call_operand.vmem [shape: f32[2,128,384], index: 5, kind: input, shape index: {}]
  %s6 = inlined_call_operand.vmem [shape: f32[2,1,384], index: 6, kind: input, shape index: {}]
  %s7 = inlined_call_operand.vmem [shape: f32[2,128,128], index: 7, kind: input, shape index: {}]
  %s8 = inlined_call_operand.vmem [shape: f32[2,1,128], index: 8, kind: input, shape index: {}]
  %s9 = inlined_call_operand.vmem [shape: f32[2,1,128], index: 9, kind: input, shape index: {}]
  %s10 = inlined_call_operand.vmem [shape: f32[2,1,128], index: 10, kind: input, shape index: {}]
  %s11 = inlined_call_operand.vmem [shape: f32[2,128,256], index: 11, kind: input, shape index: {}]
  %s12 = inlined_call_operand.vmem [shape: f32[2,1,256], index: 12, kind: input, shape index: {}]
  %s13 = inlined_call_operand.vmem [shape: f32[2,256,128], index: 13, kind: input, shape index: {}]
  %s14 = inlined_call_operand.vmem [shape: f32[2,1,128], index: 14, kind: input, shape index: {}]
  %s15 = inlined_call_operand.hbm [shape: f32[2,10], index: 15, kind: output, shape index: {}]
  %s16 = sld [smem:[#allocation0]]
  $region97: #{vit_forward_pallas.3} parent=0
    _
  %s18 = ssub.s32 1, %s16
  %s19 = scalar_select 0, %s18, %s16
  $region1: #{vit_forward_pallas.3} parent=0
    #allocation3 [shape = 'u8[1024]{0}', space=vmem, size = 0x400, scoped, tag = 'output window, operand 0, single buffered']
    #allocation4 [shape = 's32[2]{0}', space=sflag, size = 0x8, scoped, tag = 'scoped memory for vit_forward_pallas.3']
    %20 = vsyncpa [#allocation4], 0
    loop: start=0, step=1, limit=4
    $region2: #{vit_forward_pallas.3} parent=1 // loop_pre_header
      _
    $region3: #{vit_forward_pallas.3} parent=1 // loop_header
      %s22 = sphi 0, %s26
      %p23 = scmp.ge.s32.totalorder %s22, 4
      %s30 = sphi 0, %s30
      %s32 = sphi 0, %s30
      %s33 = sphi 0, %s32
      %s47 = sphi 0, %s33
      %s51 = sphi 0, %s51
      %s53 = sphi 0, %s51
      %s54 = sphi 0, %s53
      %s68 = sphi 0, %s54
      %s72 = sphi 0, %s72
      %s74 = sphi 0, %s72
      %s75 = sphi 0, %s74
      %s89 = sphi 0, %s75
      %s93 = sphi 0, %s93
      %s95 = sphi 0, %s93
      %s96 = sphi 0, %s95
      %s110 = sphi 0, %s96
      %s114 = sphi 0, %s114
      %s116 = sphi 0, %s114
      %s117 = sphi 0, %s116
      %s131 = sphi 0, %s117
      %s137 = sphi 0, %s139
      %s140 = sphi 0, %s137
      %s141 = sphi 0, %s140
      %s157 = sphi 0, %s141
      %s163 = sphi 0, %s165
      %s166 = sphi 0, %s163
      %s167 = sphi 0, %s166
      %s183 = sphi 0, %s167
      %s189 = sphi 0, %s191
      %s192 = sphi 0, %s189
      %s193 = sphi 0, %s192
      %s209 = sphi 0, %s193
      %s215 = sphi 0, %s217
      %s218 = sphi 0, %s215
      %s219 = sphi 0, %s218
      %s235 = sphi 0, %s219
      %s241 = sphi 0, %s243
      %s244 = sphi 0, %s241
      %s245 = sphi 0, %s244
      %s261 = sphi 0, %s245
      %s267 = sphi 0, %s269
      %s270 = sphi 0, %s267
      %s271 = sphi 0, %s270
      %s287 = sphi 0, %s271
      %s293 = sphi 0, %s295
      %s296 = sphi 0, %s293
      %s297 = sphi 0, %s296
      %s313 = sphi 0, %s297
      %s319 = sphi 0, %s321
      %s322 = sphi 0, %s319
      %s323 = sphi 0, %s322
      %s339 = sphi 0, %s323
      %s345 = sphi 0, %s347
      %s348 = sphi 0, %s345
      %s349 = sphi 0, %s348
      %s365 = sphi 0, %s349
      %s371 = sphi 0, %s373
      %s374 = sphi 0, %s371
      %s375 = sphi 0, %s374
      %s391 = sphi 0, %s375
      %s395 = sphi 0, %s395
      %s397 = sphi 0, %s395
      %s398 = sphi 0, %s397
      %s412 = sphi 0, %s398
    $region4: #{vit_forward_pallas.3} parent=1 // loop_header_branch
      %25 = sbr.rel (%p23) target = $region8
    $region5: #{vit_forward_pallas.3} parent=1 // loop_body
      %s27 = ssub.s32 %s22, 1
      %s28 = ssub.s32 %s22, 2
      %s29 = sadd.s32 %s22, 1
      %s31 = sadd.s32 %s30, 1
      %p34 = scmp.eq.s32.totalorder %s22, 1
      %p35 = scmp.ne.s32.totalorder %s30, %s32
      %p36 = scmp.eq.s32.totalorder %s22, 0
      %p37 = por %p35, %p36
      %p38 = scmp.ne.s32.totalorder %s30, %s32
      %p39 = scmp.eq.s32.totalorder %s27, 1
      %p40 = por %p38, %p39
      %p41 = scmp.ne.s32.totalorder %s32, %s33
      %p42 = scmp.eq.s32.totalorder %s27, 0
      %p43 = por %p41, %p42
      %p44 = scmp.ne.s32.totalorder %s32, %s33
      %p45 = scmp.eq.s32.totalorder %s28, 1
      %p46 = por %p44, %p45
      %p48 = scmp.ne.s32.totalorder %s33, %s47
      %p49 = scmp.eq.s32.totalorder %s28, 0
      %p50 = por %p48, %p49
      %s52 = sadd.s32 %s51, 1
      %p55 = scmp.eq.s32.totalorder %s22, 1
      %p56 = scmp.ne.s32.totalorder %s51, %s53
      %p57 = scmp.eq.s32.totalorder %s22, 0
      %p58 = por %p56, %p57
      %p59 = scmp.ne.s32.totalorder %s51, %s53
      %p60 = scmp.eq.s32.totalorder %s27, 1
      %p61 = por %p59, %p60
      %p62 = scmp.ne.s32.totalorder %s53, %s54
      %p63 = scmp.eq.s32.totalorder %s27, 0
      %p64 = por %p62, %p63
      %p65 = scmp.ne.s32.totalorder %s53, %s54
      %p66 = scmp.eq.s32.totalorder %s28, 1
      %p67 = por %p65, %p66
      %p69 = scmp.ne.s32.totalorder %s54, %s68
      %p70 = scmp.eq.s32.totalorder %s28, 0
      %p71 = por %p69, %p70
      %s73 = sadd.s32 %s72, 1
      %p76 = scmp.eq.s32.totalorder %s22, 1
      %p77 = scmp.ne.s32.totalorder %s72, %s74
      %p78 = scmp.eq.s32.totalorder %s22, 0
      %p79 = por %p77, %p78
      %p80 = scmp.ne.s32.totalorder %s72, %s74
      %p81 = scmp.eq.s32.totalorder %s27, 1
      %p82 = por %p80, %p81
      %p83 = scmp.ne.s32.totalorder %s74, %s75
      %p84 = scmp.eq.s32.totalorder %s27, 0
      %p85 = por %p83, %p84
      %p86 = scmp.ne.s32.totalorder %s74, %s75
      %p87 = scmp.eq.s32.totalorder %s28, 1
      %p88 = por %p86, %p87
      %p90 = scmp.ne.s32.totalorder %s75, %s89
      %p91 = scmp.eq.s32.totalorder %s28, 0
      %p92 = por %p90, %p91
      %s94 = sadd.s32 %s93, 1
      %p97 = scmp.eq.s32.totalorder %s22, 1
      %p98 = scmp.ne.s32.totalorder %s93, %s95
      %p99 = scmp.eq.s32.totalorder %s22, 0
      %p100 = por %p98, %p99
      %p101 = scmp.ne.s32.totalorder %s93, %s95
      %p102 = scmp.eq.s32.totalorder %s27, 1
      %p103 = por %p101, %p102
      %p104 = scmp.ne.s32.totalorder %s95, %s96
      %p105 = scmp.eq.s32.totalorder %s27, 0
      %p106 = por %p104, %p105
      %p107 = scmp.ne.s32.totalorder %s95, %s96
      %p108 = scmp.eq.s32.totalorder %s28, 1
      %p109 = por %p107, %p108
      %p111 = scmp.ne.s32.totalorder %s96, %s110
      %p112 = scmp.eq.s32.totalorder %s28, 0
      %p113 = por %p111, %p112
      %s115 = sadd.s32 %s114, 1
      %p118 = scmp.eq.s32.totalorder %s22, 1
      %p119 = scmp.ne.s32.totalorder %s114, %s116
      %p120 = scmp.eq.s32.totalorder %s22, 0
      %p121 = por %p119, %p120
      %p122 = scmp.ne.s32.totalorder %s114, %s116
      %p123 = scmp.eq.s32.totalorder %s27, 1
      %p124 = por %p122, %p123
      %p125 = scmp.ne.s32.totalorder %s116, %s117
      %p126 = scmp.eq.s32.totalorder %s27, 0
      %p127 = por %p125, %p126
      %p128 = scmp.ne.s32.totalorder %s116, %s117
      %p129 = scmp.eq.s32.totalorder %s28, 1
      %p130 = por %p128, %p129
      %p132 = scmp.ne.s32.totalorder %s117, %s131
      %p133 = scmp.eq.s32.totalorder %s28, 0
      %p134 = por %p132, %p133
      %s135 = ssub.s32 %s22, %s29
      %p136 = scmp.eq.s32.totalorder %s135, 0
      %s138 = sadd.s32 %s137, 1
      %s139 = scalar_select %p136, %s137, %s138
      %p142 = pneg %p136
      %p143 = scmp.eq.s32.totalorder %s22, 1
      %p144 = por %p142, %p143
      %p145 = scmp.ne.s32.totalorder %s137, %s140
      %p146 = scmp.eq.s32.totalorder %s22, 0
      %p147 = por %p145, %p146
      %p148 = scmp.ne.s32.totalorder %s137, %s140
      %p149 = scmp.eq.s32.totalorder %s27, 1
      %p150 = por %p148, %p149
      %p151 = scmp.ne.s32.totalorder %s140, %s141
      %p152 = scmp.eq.s32.totalorder %s27, 0
      %p153 = por %p151, %p152
      %p154 = scmp.ne.s32.totalorder %s140, %s141
      %p155 = scmp.eq.s32.totalorder %s28, 1
      %p156 = por %p154, %p155
      %p158 = scmp.ne.s32.totalorder %s141, %s157
      %p159 = scmp.eq.s32.totalorder %s28, 0
      %p160 = por %p158, %p159
      %s161 = ssub.s32 %s22, %s29
      %p162 = scmp.eq.s32.totalorder %s161, 0
      %s164 = sadd.s32 %s163, 1
      %s165 = scalar_select %p162, %s163, %s164
      %p168 = pneg %p162
      %p169 = scmp.eq.s32.totalorder %s22, 1
      %p170 = por %p168, %p169
      %p171 = scmp.ne.s32.totalorder %s163, %s166
      %p172 = scmp.eq.s32.totalorder %s22, 0
      %p173 = por %p171, %p172
      %p174 = scmp.ne.s32.totalorder %s163, %s166
      %p175 = scmp.eq.s32.totalorder %s27, 1
      %p176 = por %p174, %p175
      %p177 = scmp.ne.s32.totalorder %s166, %s167
      %p178 = scmp.eq.s32.totalorder %s27, 0
      %p179 = por %p177, %p178
      %p180 = scmp.ne.s32.totalorder %s166, %s167
      %p181 = scmp.eq.s32.totalorder %s28, 1
      %p182 = por %p180, %p181
      %p184 = scmp.ne.s32.totalorder %s167, %s183
      %p185 = scmp.eq.s32.totalorder %s28, 0
      %p186 = por %p184, %p185
      %s187 = ssub.s32 %s22, %s29
      %p188 = scmp.eq.s32.totalorder %s187, 0
      %s190 = sadd.s32 %s189, 1
      %s191 = scalar_select %p188, %s189, %s190
      %p194 = pneg %p188
      %p195 = scmp.eq.s32.totalorder %s22, 1
      %p196 = por %p194, %p195
      %p197 = scmp.ne.s32.totalorder %s189, %s192
      %p198 = scmp.eq.s32.totalorder %s22, 0
      %p199 = por %p197, %p198
      %p200 = scmp.ne.s32.totalorder %s189, %s192
      %p201 = scmp.eq.s32.totalorder %s27, 1
      %p202 = por %p200, %p201
      %p203 = scmp.ne.s32.totalorder %s192, %s193
      %p204 = scmp.eq.s32.totalorder %s27, 0
      %p205 = por %p203, %p204
      %p206 = scmp.ne.s32.totalorder %s192, %s193
      %p207 = scmp.eq.s32.totalorder %s28, 1
      %p208 = por %p206, %p207
      %p210 = scmp.ne.s32.totalorder %s193, %s209
      %p211 = scmp.eq.s32.totalorder %s28, 0
      %p212 = por %p210, %p211
      %s213 = ssub.s32 %s22, %s29
      %p214 = scmp.eq.s32.totalorder %s213, 0
      %s216 = sadd.s32 %s215, 1
      %s217 = scalar_select %p214, %s215, %s216
      %p220 = pneg %p214
      %p221 = scmp.eq.s32.totalorder %s22, 1
      %p222 = por %p220, %p221
      %p223 = scmp.ne.s32.totalorder %s215, %s218
      %p224 = scmp.eq.s32.totalorder %s22, 0
      %p225 = por %p223, %p224
      %p226 = scmp.ne.s32.totalorder %s215, %s218
      %p227 = scmp.eq.s32.totalorder %s27, 1
      %p228 = por %p226, %p227
      %p229 = scmp.ne.s32.totalorder %s218, %s219
      %p230 = scmp.eq.s32.totalorder %s27, 0
      %p231 = por %p229, %p230
      %p232 = scmp.ne.s32.totalorder %s218, %s219
      %p233 = scmp.eq.s32.totalorder %s28, 1
      %p234 = por %p232, %p233
      %p236 = scmp.ne.s32.totalorder %s219, %s235
      %p237 = scmp.eq.s32.totalorder %s28, 0
      %p238 = por %p236, %p237
      %s239 = ssub.s32 %s22, %s29
      %p240 = scmp.eq.s32.totalorder %s239, 0
      %s242 = sadd.s32 %s241, 1
      %s243 = scalar_select %p240, %s241, %s242
      %p246 = pneg %p240
      %p247 = scmp.eq.s32.totalorder %s22, 1
      %p248 = por %p246, %p247
      %p249 = scmp.ne.s32.totalorder %s241, %s244
      %p250 = scmp.eq.s32.totalorder %s22, 0
      %p251 = por %p249, %p250
      %p252 = scmp.ne.s32.totalorder %s241, %s244
      %p253 = scmp.eq.s32.totalorder %s27, 1
      %p254 = por %p252, %p253
      %p255 = scmp.ne.s32.totalorder %s244, %s245
      %p256 = scmp.eq.s32.totalorder %s27, 0
      %p257 = por %p255, %p256
      %p258 = scmp.ne.s32.totalorder %s244, %s245
      %p259 = scmp.eq.s32.totalorder %s28, 1
      %p260 = por %p258, %p259
      %p262 = scmp.ne.s32.totalorder %s245, %s261
      %p263 = scmp.eq.s32.totalorder %s28, 0
      %p264 = por %p262, %p263
      %s265 = ssub.s32 %s22, %s29
      %p266 = scmp.eq.s32.totalorder %s265, 0
      %s268 = sadd.s32 %s267, 1
      %s269 = scalar_select %p266, %s267, %s268
      %p272 = pneg %p266
      %p273 = scmp.eq.s32.totalorder %s22, 1
      %p274 = por %p272, %p273
      %p275 = scmp.ne.s32.totalorder %s267, %s270
      %p276 = scmp.eq.s32.totalorder %s22, 0
      %p277 = por %p275, %p276
      %p278 = scmp.ne.s32.totalorder %s267, %s270
      %p279 = scmp.eq.s32.totalorder %s27, 1
      %p280 = por %p278, %p279
      %p281 = scmp.ne.s32.totalorder %s270, %s271
      %p282 = scmp.eq.s32.totalorder %s27, 0
      %p283 = por %p281, %p282
      %p284 = scmp.ne.s32.totalorder %s270, %s271
      %p285 = scmp.eq.s32.totalorder %s28, 1
      %p286 = por %p284, %p285
      %p288 = scmp.ne.s32.totalorder %s271, %s287
      %p289 = scmp.eq.s32.totalorder %s28, 0
      %p290 = por %p288, %p289
      %s291 = ssub.s32 %s22, %s29
      %p292 = scmp.eq.s32.totalorder %s291, 0
      %s294 = sadd.s32 %s293, 1
      %s295 = scalar_select %p292, %s293, %s294
      %p298 = pneg %p292
      %p299 = scmp.eq.s32.totalorder %s22, 1
      %p300 = por %p298, %p299
      %p301 = scmp.ne.s32.totalorder %s293, %s296
      %p302 = scmp.eq.s32.totalorder %s22, 0
      %p303 = por %p301, %p302
      %p304 = scmp.ne.s32.totalorder %s293, %s296
      %p305 = scmp.eq.s32.totalorder %s27, 1
      %p306 = por %p304, %p305
      %p307 = scmp.ne.s32.totalorder %s296, %s297
      %p308 = scmp.eq.s32.totalorder %s27, 0
      %p309 = por %p307, %p308
      %p310 = scmp.ne.s32.totalorder %s296, %s297
      %p311 = scmp.eq.s32.totalorder %s28, 1
      %p312 = por %p310, %p311
      %p314 = scmp.ne.s32.totalorder %s297, %s313
      %p315 = scmp.eq.s32.totalorder %s28, 0
      %p316 = por %p314, %p315
      %s317 = ssub.s32 %s22, %s29
      %p318 = scmp.eq.s32.totalorder %s317, 0
      %s320 = sadd.s32 %s319, 1
      %s321 = scalar_select %p318, %s319, %s320
      %p324 = pneg %p318
      %p325 = scmp.eq.s32.totalorder %s22, 1
      %p326 = por %p324, %p325
      %p327 = scmp.ne.s32.totalorder %s319, %s322
      %p328 = scmp.eq.s32.totalorder %s22, 0
      %p329 = por %p327, %p328
      %p330 = scmp.ne.s32.totalorder %s319, %s322
      %p331 = scmp.eq.s32.totalorder %s27, 1
      %p332 = por %p330, %p331
      %p333 = scmp.ne.s32.totalorder %s322, %s323
      %p334 = scmp.eq.s32.totalorder %s27, 0
      %p335 = por %p333, %p334
      %p336 = scmp.ne.s32.totalorder %s322, %s323
      %p337 = scmp.eq.s32.totalorder %s28, 1
      %p338 = por %p336, %p337
      %p340 = scmp.ne.s32.totalorder %s323, %s339
      %p341 = scmp.eq.s32.totalorder %s28, 0
      %p342 = por %p340, %p341
      %s343 = ssub.s32 %s22, %s29
      %p344 = scmp.eq.s32.totalorder %s343, 0
      %s346 = sadd.s32 %s345, 1
      %s347 = scalar_select %p344, %s345, %s346
      %p350 = pneg %p344
      %p351 = scmp.eq.s32.totalorder %s22, 1
      %p352 = por %p350, %p351
      %p353 = scmp.ne.s32.totalorder %s345, %s348
      %p354 = scmp.eq.s32.totalorder %s22, 0
      %p355 = por %p353, %p354
      %p356 = scmp.ne.s32.totalorder %s345, %s348
      %p357 = scmp.eq.s32.totalorder %s27, 1
      %p358 = por %p356, %p357
      %p359 = scmp.ne.s32.totalorder %s348, %s349
      %p360 = scmp.eq.s32.totalorder %s27, 0
      %p361 = por %p359, %p360
      %p362 = scmp.ne.s32.totalorder %s348, %s349
      %p363 = scmp.eq.s32.totalorder %s28, 1
      %p364 = por %p362, %p363
      %p366 = scmp.ne.s32.totalorder %s349, %s365
      %p367 = scmp.eq.s32.totalorder %s28, 0
      %p368 = por %p366, %p367
      %s369 = ssub.s32 %s22, %s29
      %p370 = scmp.eq.s32.totalorder %s369, 0
      %s372 = sadd.s32 %s371, 1
      %s373 = scalar_select %p370, %s371, %s372
      %p376 = pneg %p370
      %p377 = scmp.eq.s32.totalorder %s22, 1
      %p378 = por %p376, %p377
      %p379 = scmp.ne.s32.totalorder %s371, %s374
      %p380 = scmp.eq.s32.totalorder %s22, 0
      %p381 = por %p379, %p380
      %p382 = scmp.ne.s32.totalorder %s371, %s374
      %p383 = scmp.eq.s32.totalorder %s27, 1
      %p384 = por %p382, %p383
      %p385 = scmp.ne.s32.totalorder %s374, %s375
      %p386 = scmp.eq.s32.totalorder %s27, 0
      %p387 = por %p385, %p386
      %p388 = scmp.ne.s32.totalorder %s374, %s375
      %p389 = scmp.eq.s32.totalorder %s28, 1
      %p390 = por %p388, %p389
      %p392 = scmp.ne.s32.totalorder %s375, %s391
      %p393 = scmp.eq.s32.totalorder %s28, 0
      %p394 = por %p392, %p393
      %s396 = sadd.s32 %s395, 1
      %p399 = scmp.eq.s32.totalorder %s22, 1
      %p400 = scmp.ne.s32.totalorder %s395, %s397
      %p401 = scmp.eq.s32.totalorder %s22, 0
      %p402 = por %p400, %p401
      %p403 = scmp.ne.s32.totalorder %s395, %s397
      %p404 = scmp.eq.s32.totalorder %s27, 1
      %p405 = por %p403, %p404
      %p406 = scmp.ne.s32.totalorder %s397, %s398
      %p407 = scmp.eq.s32.totalorder %s27, 0
      %p408 = por %p406, %p407
      %p409 = scmp.ne.s32.totalorder %s397, %s398
      %p410 = scmp.eq.s32.totalorder %s28, 1
      %p411 = por %p409, %p410
      %p413 = scmp.ne.s32.totalorder %s398, %s412
      %p414 = scmp.eq.s32.totalorder %s28, 0
      %p415 = por %p413, %p414
      %p416 = scmp.le.s32.totalorder 1, %s22
      %p417 = scmp.lt.s32.totalorder %s22, 3
      %p418 = pnand %p416, %p417
      %p419 = pneg %p418
      // Predicated region
      $region9: #{vit_forward_pallas.3} parent=5 // pred_check
        _
      $region10: #{vit_forward_pallas.3} parent=5 // pred_check_branch
        %421 = sbr.rel (%p418) target = $region12
      $region11: #{vit_forward_pallas.3} parent=5 // pred_region
        %s422 = ssub.s32 %s22, 1
        // Predicated region
        $region13: #{vit_forward_pallas.3} parent=11 // pred_check
          %p423 = pneg %p43
        $region14: #{vit_forward_pallas.3} parent=11 // pred_check_branch
          %425 = sbr.rel (%p423) target = $region16
        $region15: #{vit_forward_pallas.3} parent=11 // pred_region
          _
        $region16: #{vit_forward_pallas.3} parent=11 // pred_fallthru
          _
        // Predicated region
        $region17: #{vit_forward_pallas.3} parent=11 // pred_check
          %p426 = pneg %p64
        $region18: #{vit_forward_pallas.3} parent=11 // pred_check_branch
          %428 = sbr.rel (%p426) target = $region20
        $region19: #{vit_forward_pallas.3} parent=11 // pred_region
          _
        $region20: #{vit_forward_pallas.3} parent=11 // pred_fallthru
          _
        // Predicated region
        $region21: #{vit_forward_pallas.3} parent=11 // pred_check
          %p429 = pneg %p85
        $region22: #{vit_forward_pallas.3} parent=11 // pred_check_branch
          %431 = sbr.rel (%p429) target = $region24
        $region23: #{vit_forward_pallas.3} parent=11 // pred_region
          _
        $region24: #{vit_forward_pallas.3} parent=11 // pred_fallthru
          _
        // Predicated region
        $region25: #{vit_forward_pallas.3} parent=11 // pred_check
          %p432 = pneg %p106
        $region26: #{vit_forward_pallas.3} parent=11 // pred_check_branch
          %434 = sbr.rel (%p432) target = $region28
        $region27: #{vit_forward_pallas.3} parent=11 // pred_region
          _
        $region28: #{vit_forward_pallas.3} parent=11 // pred_fallthru
          _
        // Predicated region
        $region29: #{vit_forward_pallas.3} parent=11 // pred_check
          %p435 = pneg %p127
        $region30: #{vit_forward_pallas.3} parent=11 // pred_check_branch
          %437 = sbr.rel (%p435) target = $region32
        $region31: #{vit_forward_pallas.3} parent=11 // pred_region
          _
        $region32: #{vit_forward_pallas.3} parent=11 // pred_fallthru
          _
      $region12: #{vit_forward_pallas.3} parent=5 // pred_fallthru
        _
      %p438 = scmp.lt.s32.totalorder %s22, 2
      // Predicated region
      $region33: #{vit_forward_pallas.3} parent=5 // pred_check
        %p439 = pneg %p438
      $region34: #{vit_forward_pallas.3} parent=5 // pred_check_branch
        %441 = sbr.rel (%p439) target = $region36
      $region35: #{vit_forward_pallas.3} parent=5 // pred_region
        // Predicated region
        $region37: #{vit_forward_pallas.3} parent=35 // pred_check
          %p442 = pneg %p147
        $region38: #{vit_forward_pallas.3} parent=35 // pred_check_branch
          %444 = sbr.rel (%p442) target = $region40
        $region39: #{vit_forward_pallas.3} parent=35 // pred_region
          %p445 = scmp.lt.s32.totalorder %s22, 1
          %s446 = scalar_select %p445, %s22, 1
          %s447 = smul.addr %s446, 48
          %s448 = smul.addr %s447, 8
          %s449 = scalar_lea.vmem %s5, %s448
        $region40: #{vit_forward_pallas.3} parent=35 // pred_fallthru
          _
        // Predicated region
        $region41: #{vit_forward_pallas.3} parent=35 // pred_check
          %p450 = pneg %p173
        $region42: #{vit_forward_pallas.3} parent=35 // pred_check_branch
          %452 = sbr.rel (%p450) target = $region44
        $region43: #{vit_forward_pallas.3} parent=35 // pred_region
          %p453 = scmp.lt.s32.totalorder %s22, 1
          %s454 = scalar_select %p453, %s22, 1
          %s455 = smul.addr %s454, 3
          %s456 = scalar_lea.vmem %s6, %s455
        $region44: #{vit_forward_pallas.3} parent=35 // pred_fallthru
          _
        // Predicated region
        $region45: #{vit_forward_pallas.3} parent=35 // pred_check
          %p457 = pneg %p199
        $region46: #{vit_forward_pallas.3} parent=35 // pred_check_branch
          %459 = sbr.rel (%p457) target = $region48
        $region47: #{vit_forward_pallas.3} parent=35 // pred_region
          %p460 = scmp.lt.s32.totalorder %s22, 1
          %s461 = scalar_select %p460, %s22, 1
          %s462 = smul.addr %s461, 16
          %s463 = smul.addr %s462, 8
          %s464 = scalar_lea.vmem %s7, %s463
        $region48: #{vit_forward_pallas.3} parent=35 // pred_fallthru
          _
        // Predicated region
        $region49: #{vit_forward_pallas.3} parent=35 // pred_check
          %p465 = pneg %p225
        $region50: #{vit_forward_pallas.3} parent=35 // pred_check_branch
          %467 = sbr.rel (%p465) target = $region52
        $region51: #{vit_forward_pallas.3} parent=35 // pred_region
          %p468 = scmp.lt.s32.totalorder %s22, 1
          %s469 = scalar_select %p468, %s22, 1
          %s470 = scalar_lea.vmem %s8, %s469
        $region52: #{vit_forward_pallas.3} parent=35 // pred_fallthru
          _
        // Predicated region
        $region53: #{vit_forward_pallas.3} parent=35 // pred_check
          %p471 = pneg %p251
        $region54: #{vit_forward_pallas.3} parent=35 // pred_check_branch
          %473 = sbr.rel (%p471) target = $region56
        $region55: #{vit_forward_pallas.3} parent=35 // pred_region
          %p474 = scmp.lt.s32.totalorder %s22, 1
          %s475 = scalar_select %p474, %s22, 1
          %s476 = scalar_lea.vmem %s9, %s475
        $region56: #{vit_forward_pallas.3} parent=35 // pred_fallthru
          _
        // Predicated region
        $region57: #{vit_forward_pallas.3} parent=35 // pred_check
          %p477 = pneg %p277
        $region58: #{vit_forward_pallas.3} parent=35 // pred_check_branch
          %479 = sbr.rel (%p477) target = $region60
        $region59: #{vit_forward_pallas.3} parent=35 // pred_region
          %p480 = scmp.lt.s32.totalorder %s22, 1
          %s481 = scalar_select %p480, %s22, 1
          %s482 = scalar_lea.vmem %s10, %s481
        $region60: #{vit_forward_pallas.3} parent=35 // pred_fallthru
          _
        // Predicated region
        $region61: #{vit_forward_pallas.3} parent=35 // pred_check
          %p483 = pneg %p303
        $region62: #{vit_forward_pallas.3} parent=35 // pred_check_branch
          %485 = sbr.rel (%p483) target = $region64
        $region63: #{vit_forward_pallas.3} parent=35 // pred_region
          %p486 = scmp.lt.s32.totalorder %s22, 1
          %s487 = scalar_select %p486, %s22, 1
          %s488 = smul.addr %s487, 32
          %s489 = smul.addr %s488, 8
          %s490 = scalar_lea.vmem %s11, %s489
        $region64: #{vit_forward_pallas.3} parent=35 // pred_fallthru
          _
        // Predicated region
        $region65: #{vit_forward_pallas.3} parent=35 // pred_check
          %p491 = pneg %p329
        $region66: #{vit_forward_pallas.3} parent=35 // pred_check_branch
          %493 = sbr.rel (%p491) target = $region68
        $region67: #{vit_forward_pallas.3} parent=35 // pred_region
          %p494 = scmp.lt.s32.totalorder %s22, 1
          %s495 = scalar_select %p494, %s22, 1
          %s496 = smul.addr %s495, 2
          %s497 = scalar_lea.vmem %s12, %s496
        $region68: #{vit_forward_pallas.3} parent=35 // pred_fallthru
          _
        // Predicated region
        $region69: #{vit_forward_pallas.3} parent=35 // pred_check
          %p498 = pneg %p355
        $region70: #{vit_forward_pallas.3} parent=35 // pred_check_branch
          %500 = sbr.rel (%p498) target = $region72
        $region71: #{vit_forward_pallas.3} parent=35 // pred_region
          %p501 = scmp.lt.s32.totalorder %s22, 1
          %s502 = scalar_select %p501, %s22, 1
          %s503 = smul.addr %s502, 32
          %s504 = smul.addr %s503, 8
          %s505 = scalar_lea.vmem %s13, %s504
        $region72: #{vit_forward_pallas.3} parent=35 // pred_fallthru
          _
        // Predicated region
        $region73: #{vit_forward_pallas.3} parent=35 // pred_check
          %p506 = pneg %p381
        $region74: #{vit_forward_pallas.3} parent=35 // pred_check_branch
          %508 = sbr.rel (%p506) target = $region76
        $region75: #{vit_forward_pallas.3} parent=35 // pred_region
          %p509 = scmp.lt.s32.totalorder %s22, 1
          %s510 = scalar_select %p509, %s22, 1
          %s511 = scalar_lea.vmem %s14, %s510
        $region76: #{vit_forward_pallas.3} parent=35 // pred_fallthru
          _
      $region36: #{vit_forward_pallas.3} parent=5 // pred_fallthru
        _
      %p512 = scmp.le.s32.totalorder 1, %s22
      %p513 = scmp.lt.s32.totalorder %s22, 3
      %p514 = pnand %p512, %p513
      %p515 = pneg %p514
      // Predicated region
      $region77: #{vit_forward_pallas.3} parent=5 // pred_check
        _
      $region78: #{vit_forward_pallas.3} parent=5 // pred_check_branch
        %517 = sbr.rel (%p514) target = $region80
      $region79: #{vit_forward_pallas.3} parent=5 // pred_region
        %s518 = ssub.s32 %s22, 1
        %p519 = pneg %p43
        %p520 = pneg %p40
        %p521 = pneg %p64
        %p522 = pneg %p61
        %p523 = pneg %p85
        %p524 = pneg %p82
        %p525 = pneg %p106
        %p526 = pneg %p103
        %p527 = pneg %p127
        %p528 = pneg %p124
        %p529 = scmp.lt.s32.totalorder %s27, 1
        %s530 = scalar_select %p529, %s27, 1
        %s531 = smul.addr %s530, 48
        %s532 = smul.addr %s531, 8
        %s533 = scalar_lea.vmem %s5, %s532
        %p534 = pneg %p153
        %p535 = pneg %p150
        %p536 = scmp.lt.s32.totalorder %s27, 1
        %s537 = scalar_select %p536, %s27, 1
        %s538 = smul.addr %s537, 3
        %s539 = scalar_lea.vmem %s6, %s538
        %p540 = pneg %p179
        %p541 = pneg %p176
        %p542 = scmp.lt.s32.totalorder %s27, 1
        %s543 = scalar_select %p542, %s27, 1
        %s544 = smul.addr %s543, 16
        %s545 = smul.addr %s544, 8
        %s546 = scalar_lea.vmem %s7, %s545
        %p547 = pneg %p205
        %p548 = pneg %p202
        %p549 = scmp.lt.s32.totalorder %s27, 1
        %s550 = scalar_select %p549, %s27, 1
        %s551 = scalar_lea.vmem %s8, %s550
        %p552 = pneg %p231
        %p553 = pneg %p228
        %p554 = scmp.lt.s32.totalorder %s27, 1
        %s555 = scalar_select %p554, %s27, 1
        %s556 = scalar_lea.vmem %s9, %s555
        %p557 = pneg %p257
        %p558 = pneg %p254
        %p559 = scmp.lt.s32.totalorder %s27, 1
        %s560 = scalar_select %p559, %s27, 1
        %s561 = scalar_lea.vmem %s10, %s560
        %p562 = pneg %p283
        %p563 = pneg %p280
        %p564 = scmp.lt.s32.totalorder %s27, 1
        %s565 = scalar_select %p564, %s27, 1
        %s566 = smul.addr %s565, 32
        %s567 = smul.addr %s566, 8
        %s568 = scalar_lea.vmem %s11, %s567
        %p569 = pneg %p309
        %p570 = pneg %p306
        %p571 = scmp.lt.s32.totalorder %s27, 1
        %s572 = scalar_select %p571, %s27, 1
        %s573 = smul.addr %s572, 2
        %s574 = scalar_lea.vmem %s12, %s573
        %p575 = pneg %p335
        %p576 = pneg %p332
        %p577 = scmp.lt.s32.totalorder %s27, 1
        %s578 = scalar_select %p577, %s27, 1
        %s579 = smul.addr %s578, 32
        %s580 = smul.addr %s579, 8
        %s581 = scalar_lea.vmem %s13, %s580
        %p582 = pneg %p361
        %p583 = pneg %p358
        %p584 = scmp.lt.s32.totalorder %s27, 1
        %s585 = scalar_select %p584, %s27, 1
        %s586 = scalar_lea.vmem %s14, %s585
        %p587 = pneg %p387
        %p588 = pneg %p384
        %p589 = pneg %p408
        %p590 = pneg %p405
        %p591 = scmp.lt.s32.totalorder %s27, 1
        %s592 = scalar_select %p591, %s27, 1
        %s593 = smul.addr %s592, 48
        %s594 = smul.addr %s593, 8
        %s595 = scalar_lea.vmem %s5, %s594
        %p596 = scmp.lt.s32.totalorder %s27, 1
        %s597 = scalar_select %p596, %s27, 1
        %s598 = smul.addr %s597, 3
        %s599 = scalar_lea.vmem %s6, %s598
        %p600 = scmp.lt.s32.totalorder %s27, 1
        %s601 = scalar_select %p600, %s27, 1
        %s602 = smul.addr %s601, 16
        %s603 = smul.addr %s602, 8
        %s604 = scalar_lea.vmem %s7, %s603
        %p605 = scmp.lt.s32.totalorder %s27, 1
        %s606 = scalar_select %p605, %s27, 1
        %s607 = scalar_lea.vmem %s8, %s606
        %p608 = scmp.lt.s32.totalorder %s27, 1
        %s609 = scalar_select %p608, %s27, 1
        %s610 = scalar_lea.vmem %s9, %s609
        %p611 = scmp.lt.s32.totalorder %s27, 1
        %s612 = scalar_select %p611, %s27, 1
        %s613 = scalar_lea.vmem %s10, %s612
        %p614 = scmp.lt.s32.totalorder %s27, 1
        %s615 = scalar_select %p614, %s27, 1
        %s616 = smul.addr %s615, 32
        %s617 = smul.addr %s616, 8
        %s618 = scalar_lea.vmem %s11, %s617
        %p619 = scmp.lt.s32.totalorder %s27, 1
        %s620 = scalar_select %p619, %s27, 1
        %s621 = smul.addr %s620, 2
        %s622 = scalar_lea.vmem %s12, %s621
        %p623 = scmp.lt.s32.totalorder %s27, 1
        %s624 = scalar_select %p623, %s27, 1
        %s625 = smul.addr %s624, 32
        %s626 = smul.addr %s625, 8
        %s627 = scalar_lea.vmem %s13, %s626
        %p628 = scmp.lt.s32.totalorder %s27, 1
        %s629 = scalar_select %p628, %s27, 1
        %s630 = scalar_lea.vmem %s14, %s629
        %p631 = scmp.eq.s32.totalorder %s27, 0
        // Predicated region
        $region81: #{vit_forward_pallas.3} parent=79 // pred_check
          %p632 = pneg %p631
        $region82: #{vit_forward_pallas.3} parent=79 // pred_check_branch
          %634 = sbr.rel (%p632) target = $region84
        $region83: #{vit_forward_pallas.3} parent=79 // pred_region
          %v635 = vld [vmem:[%s0] sm:$0xff]
          %v636 = vld [vmem:[%s0 + $0x8] sm:$0xff]
          %v637 = vld [vmem:[%s0 + $0x10] sm:$0xff]
          %v638 = vld [vmem:[%s0 + $0x18] sm:$0xff]
          %v639 = vld [vmem:[%s0 + $0x20] sm:$0xff]
          %v640 = vld [vmem:[%s0 + $0x28] sm:$0xff]
          %641 = vst [vmem:[#allocation2] sm:$0xff] %v635
          %642 = vst [vmem:[#allocation2 + $0x8] sm:$0xff] %v636
          %643 = vst [vmem:[#allocation2 + $0x10] sm:$0xff] %v637
          %644 = vst [vmem:[#allocation2 + $0x18] sm:$0xff] %v638
          %645 = vst [vmem:[#allocation2 + $0x20] sm:$0xff] %v639
          %646 = vst [vmem:[#allocation2 + $0x28] sm:$0xff] %v640
        $region84: #{vit_forward_pallas.3} parent=79 // pred_fallthru
          _
        %v647 = vld [vmem:[#allocation2] sm:$0xff]
        %v648 = vld [vmem:[#allocation2 + $0x8] sm:$0xff]
        %v649 = vld [vmem:[#allocation2 + $0x10] sm:$0xff]
        %v650 = vld [vmem:[#allocation2 + $0x18] sm:$0xff]
        %v651 = vld [vmem:[#allocation2 + $0x20] sm:$0xff]
        %v652 = vld [vmem:[#allocation2 + $0x28] sm:$0xff]
        %v653 = vld [vmem:[%s1] sm:$0x1]
        %v654 = vld [vmem:[%s2] sm:$0x1]
        %655 = vadd.xlane.f32.xlu0 %v647
        %v656 = vpop.xlane.xlu0 %655
        %657 = vadd.xlane.f32.xlu0 %v648
        %v658 = vpop.xlane.xlu0 %657
        %659 = vadd.xlane.f32.xlu0 %v649
        %v660 = vpop.xlane.xlu0 %659
        %661 = vadd.xlane.f32.xlu0 %v650
        %v662 = vpop.xlane.xlu0 %661
        %663 = vadd.xlane.f32.xlu0 %v651
        %v664 = vpop.xlane.xlu0 %663
        %665 = vadd.xlane.f32.xlu0 %v652
        %v666 = vpop.xlane.xlu0 %665
        %v667 = vrcp.pop 128.0
        %v668 = vmul.f32 128.0, %v667
        %v669 = vsub.f32 1.0, %v668
        %v670 = vmul.f32 %v667, %v669
        %v671 = vadd.f32 %v667, %v670
        %vm672 = vweird.f32 %v667
        %v673 = vsel %vm672, %v667, %v671
        %v674 = vmul.f32 %v656, %v673
        %v675 = vmul.f32 %v658, %v673
        %v676 = vmul.f32 %v660, %v673
        %v677 = vmul.f32 %v662, %v673
        %v678 = vmul.f32 %v664, %v673
        %v679 = vmul.f32 %v666, %v673
        %v680 = vsub.f32 %v647, %v674
        %v681 = vsub.f32 %v648, %v675
        %v682 = vsub.f32 %v649, %v676
        %v683 = vsub.f32 %v650, %v677
        %v684 = vsub.f32 %v651, %v678
        %v685 = vsub.f32 %v652, %v679
        %v686 = vmul.f32 %v680, %v680
        %v687 = vmul.f32 %v681, %v681
        %v688 = vmul.f32 %v682, %v682
        %v689 = vmul.f32 %v683, %v683
        %v690 = vmul.f32 %v684, %v684
        %v691 = vmul.f32 %v685, %v685
        %692 = vadd.xlane.f32.xlu0 %v686
        %v693 = vpop.xlane.xlu0 %692
        %694 = vadd.xlane.f32.xlu0 %v687
        %v695 = vpop.xlane.xlu0 %694
        %696 = vadd.xlane.f32.xlu0 %v688
        %v697 = vpop.xlane.xlu0 %696
        %698 = vadd.xlane.f32.xlu0 %v689
        %v699 = vpop.xlane.xlu0 %698
        %700 = vadd.xlane.f32.xlu0 %v690
        %v701 = vpop.xlane.xlu0 %700
        %702 = vadd.xlane.f32.xlu0 %v691
        %v703 = vpop.xlane.xlu0 %702
        %v704 = vmul.f32 %v693, %v673
        %v705 = vmul.f32 %v695, %v673
        %v706 = vmul.f32 %v697, %v673
        %v707 = vmul.f32 %v699, %v673
        %v708 = vmul.f32 %v701, %v673
        %v709 = vmul.f32 %v703, %v673
        %v710 = vadd.f32 %v704, 1e-05
        %v711 = vadd.f32 %v705, 1e-05
        %v712 = vadd.f32 %v706, 1e-05
        %v713 = vadd.f32 %v707, 1e-05
        %v714 = vadd.f32 %v708, 1e-05
        %v715 = vadd.f32 %v709, 1e-05
        %v716 = vrsqrt.pop %v710
        %v717 = vmul.f32 %v716, %v710
        %v718 = vmul.f32 %v717, %v716
        %v719 = vmul.f32 0.5, %v718
        %v720 = vsub.f32 1.5, %v719
        %v721 = vmul.f32 %v716, %v720
        %vm722 = vweird.f32 %v710
        %vm723 = vweird.f32 %v716
        %vm724 = vmor %vm722, %vm723
        %v725 = vsel %vm724, %v716, %v721
        %v726 = vrsqrt.pop %v711
        %v727 = vmul.f32 %v726, %v711
        %v728 = vmul.f32 %v727, %v726
        %v729 = vmul.f32 0.5, %v728
        %v730 = vsub.f32 1.5, %v729
        %v731 = vmul.f32 %v726, %v730
        %vm732 = vweird.f32 %v711
        %vm733 = vweird.f32 %v726
        %vm734 = vmor %vm732, %vm733
        %v735 = vsel %vm734, %v726, %v731
        %v736 = vrsqrt.pop %v712
        %v737 = vmul.f32 %v736, %v712
        %v738 = vmul.f32 %v737, %v736
        %v739 = vmul.f32 0.5, %v738
        %v740 = vsub.f32 1.5, %v739
        %v741 = vmul.f32 %v736, %v740
        %vm742 = vweird.f32 %v712
        %vm743 = vweird.f32 %v736
        %vm744 = vmor %vm742, %vm743
        %v745 = vsel %vm744, %v736, %v741
        %v746 = vrsqrt.pop %v713
        %v747 = vmul.f32 %v746, %v713
        %v748 = vmul.f32 %v747, %v746
        %v749 = vmul.f32 0.5, %v748
        %v750 = vsub.f32 1.5, %v749
        %v751 = vmul.f32 %v746, %v750
        %vm752 = vweird.f32 %v713
        %vm753 = vweird.f32 %v746
        %vm754 = vmor %vm752, %vm753
        %v755 = vsel %vm754, %v746, %v751
        %v756 = vrsqrt.pop %v714
        %v757 = vmul.f32 %v756, %v714
        %v758 = vmul.f32 %v757, %v756
        %v759 = vmul.f32 0.5, %v758
        %v760 = vsub.f32 1.5, %v759
        %v761 = vmul.f32 %v756, %v760
        %vm762 = vweird.f32 %v714
        %vm763 = vweird.f32 %v756
        %vm764 = vmor %vm762, %vm763
        %v765 = vsel %vm764, %v756, %v761
        %v766 = vrsqrt.pop %v715
        %v767 = vmul.f32 %v766, %v715
        %v768 = vmul.f32 %v767, %v766
        %v769 = vmul.f32 0.5, %v768
        %v770 = vsub.f32 1.5, %v769
        %v771 = vmul.f32 %v766, %v770
        %vm772 = vweird.f32 %v715
        %vm773 = vweird.f32 %v766
        %vm774 = vmor %vm772, %vm773
        %v775 = vsel %vm774, %v766, %v771
        %v776 = vmul.f32 %v680, %v725
        %v777 = vmul.f32 %v681, %v735
        %v778 = vmul.f32 %v682, %v745
        %v779 = vmul.f32 %v683, %v755
        %v780 = vmul.f32 %v684, %v765
        %v781 = vmul.f32 %v685, %v775
        %v783 = vperm.slane %v653, 0
        %v785 = vmul.f32 %v776, %v783
        %v786 = vmul.f32 %v777, %v783
        %v787 = vmul.f32 %v778, %v783
        %v788 = vmul.f32 %v779, %v783
        %v789 = vmul.f32 %v780, %v783
        %v790 = vmul.f32 %v781, %v783
        %v792 = vperm.slane %v654, 0
        %v794 = vadd.f32 %v785, %v792
        %v795 = vadd.f32 %v786, %v792
        %v796 = vadd.f32 %v787, %v792
        %v797 = vadd.f32 %v788, %v792
        %v798 = vadd.f32 %v789, %v792
        %v799 = vadd.f32 %v790, %v792
        %v800 = vld [vmem:[%s595] sm:$0xff]
        %v801 = vld [vmem:[%s595 + $0x8] sm:$0xff]
        %v802 = vld [vmem:[%s595 + $0x10] sm:$0xff]
        %v803 = vld [vmem:[%s595 + $0x18] sm:$0xff]
        %v804 = vld [vmem:[%s595 + $0x20] sm:$0xff]
        %v805 = vld [vmem:[%s595 + $0x28] sm:$0xff]
        %v806 = vld [vmem:[%s595 + $0x30] sm:$0xff]
        %v807 = vld [vmem:[%s595 + $0x38] sm:$0xff]
        %v808 = vld [vmem:[%s595 + $0x40] sm:$0xff]
        %v809 = vld [vmem:[%s595 + $0x48] sm:$0xff]
        %v810 = vld [vmem:[%s595 + $0x50] sm:$0xff]
        %v811 = vld [vmem:[%s595 + $0x58] sm:$0xff]
        %v812 = vld [vmem:[%s595 + $0x60] sm:$0xff]
        %v813 = vld [vmem:[%s595 + $0x68] sm:$0xff]
        %v814 = vld [vmem:[%s595 + $0x70] sm:$0xff]
        %v815 = vld [vmem:[%s595 + $0x78] sm:$0xff]
        %v816 = vld [vmem:[%s595 + $0x80] sm:$0xff]
        %v817 = vld [vmem:[%s595 + $0x88] sm:$0xff]
        %v818 = vld [vmem:[%s595 + $0x90] sm:$0xff]
        %v819 = vld [vmem:[%s595 + $0x98] sm:$0xff]
        %v820 = vld [vmem:[%s595 + $0xa0] sm:$0xff]
        %v821 = vld [vmem:[%s595 + $0xa8] sm:$0xff]
        %v822 = vld [vmem:[%s595 + $0xb0] sm:$0xff]
        %v823 = vld [vmem:[%s595 + $0xb8] sm:$0xff]
        %v824 = vld [vmem:[%s595 + $0xc0] sm:$0xff]
        %v825 = vld [vmem:[%s595 + $0xc8] sm:$0xff]
        %v826 = vld [vmem:[%s595 + $0xd0] sm:$0xff]
        %v827 = vld [vmem:[%s595 + $0xd8] sm:$0xff]
        %v828 = vld [vmem:[%s595 + $0xe0] sm:$0xff]
        %v829 = vld [vmem:[%s595 + $0xe8] sm:$0xff]
        %v830 = vld [vmem:[%s595 + $0xf0] sm:$0xff]
        %v831 = vld [vmem:[%s595 + $0xf8] sm:$0xff]
        %v832 = vld [vmem:[%s595 + $0x100] sm:$0xff]
        %v833 = vld [vmem:[%s595 + $0x108] sm:$0xff]
        %v834 = vld [vmem:[%s595 + $0x110] sm:$0xff]
        %v835 = vld [vmem:[%s595 + $0x118] sm:$0xff]
        %v836 = vld [vmem:[%s595 + $0x120] sm:$0xff]
        %v837 = vld [vmem:[%s595 + $0x128] sm:$0xff]
        %v838 = vld [vmem:[%s595 + $0x130] sm:$0xff]
        %v839 = vld [vmem:[%s595 + $0x138] sm:$0xff]
        %v840 = vld [vmem:[%s595 + $0x140] sm:$0xff]
        %v841 = vld [vmem:[%s595 + $0x148] sm:$0xff]
        %v842 = vld [vmem:[%s595 + $0x150] sm:$0xff]
        %v843 = vld [vmem:[%s595 + $0x158] sm:$0xff]
        %v844 = vld [vmem:[%s595 + $0x160] sm:$0xff]
        %v845 = vld [vmem:[%s595 + $0x168] sm:$0xff]
        %v846 = vld [vmem:[%s595 + $0x170] sm:$0xff]
        %v847 = vld [vmem:[%s595 + $0x178] sm:$0xff]
        %v848 = vld [vmem:[%s599] sm:$0x7]
        %v850 = vperm.slane %v848, 0
        %v851 = vperm.slane %v848, 1
        %v852 = vperm.slane %v848, 2
        %856 = vmatpush.msra.mxu0 %v845
        %857 = vmatpush.msra.mxu0 %v842
        %858 = vmatpush.msra.mxu0 %v839
        %859 = vmatpush.msra.mxu0 %v836
        %860 = vmatpush.msra.mxu0 %v833
        %861 = vmatpush.msra.mxu0 %v830
        %862 = vmatpush.msra.mxu0 %v827
        %863 = vmatpush.msra.mxu0 %v824
        %864 = vmatpush.msra.mxu0 %v821
        %865 = vmatpush.msra.mxu0 %v818
        %866 = vmatpush.msra.mxu0 %v815
        %867 = vmatpush.msra.mxu0 %v812
        %868 = vmatpush.msra.mxu0 %v809
        %869 = vmatpush.msra.mxu0 %v806
        %870 = vmatpush.msra.mxu0 %v803
        %871 = vmatpush.msra.mxu0 %v800
        %872 = vmatmul.f32.gmra.mxu0 %v794
        %v873 = vpop.f32.mrf.mxu0
        %v874 = vadd.f32 %v850, %v873
        %875 = vmatmul.f32.gmra.mxu0 %v795
        %v876 = vpop.f32.mrf.mxu0
        %v877 = vadd.f32 %v850, %v876
        %878 = vmatmul.f32.gmra.mxu0 %v796
        %v879 = vpop.f32.mrf.mxu0
        %v880 = vadd.f32 %v850, %v879
        %881 = vmatmul.f32.gmra.mxu0 %v797
        %v882 = vpop.f32.mrf.mxu0
        %v883 = vadd.f32 %v850, %v882
        %884 = vmatmul.f32.gmra.mxu0 %v798
        %v885 = vpop.f32.mrf.mxu0
        %v886 = vadd.f32 %v850, %v885
        %887 = vmatmul.f32.gmra.mxu0 %v799
        %v888 = vpop.f32.mrf.mxu0
        %v889 = vadd.f32 %v850, %v888
        %890 = vdwg.mxu0
        %891 = vmatpush.msra.mxu0 %v846
        %892 = vmatpush.msra.mxu0 %v843
        %893 = vmatpush.msra.mxu0 %v840
        %894 = vmatpush.msra.mxu0 %v837
        %895 = vmatpush.msra.mxu0 %v834
        %896 = vmatpush.msra.mxu0 %v831
        %897 = vmatpush.msra.mxu0 %v828
        %898 = vmatpush.msra.mxu0 %v825
        %899 = vmatpush.msra.mxu0 %v822
        %900 = vmatpush.msra.mxu0 %v819
        %901 = vmatpush.msra.mxu0 %v816
        %902 = vmatpush.msra.mxu0 %v813
        %903 = vmatpush.msra.mxu0 %v810
        %904 = vmatpush.msra.mxu0 %v807
        %905 = vmatpush.msra.mxu0 %v804
        %906 = vmatpush.msra.mxu0 %v801
        %907 = vmatmul.f32.gmra.mxu0 %v794
        %v908 = vpop.f32.mrf.mxu0
        %v909 = vadd.f32 %v851, %v908
        %910 = vmatmul.f32.gmra.mxu0 %v795
        %v911 = vpop.f32.mrf.mxu0
        %v912 = vadd.f32 %v851, %v911
        %913 = vmatmul.f32.gmra.mxu0 %v796
        %v914 = vpop.f32.mrf.mxu0
        %v915 = vadd.f32 %v851, %v914
        %916 = vmatmul.f32.gmra.mxu0 %v797
        %v917 = vpop.f32.mrf.mxu0
        %v918 = vadd.f32 %v851, %v917
        %919 = vmatmul.f32.gmra.mxu0 %v798
        %v920 = vpop.f32.mrf.mxu0
        %v921 = vadd.f32 %v851, %v920
        %922 = vmatmul.f32.gmra.mxu0 %v799
        %v923 = vpop.f32.mrf.mxu0
        %v924 = vadd.f32 %v851, %v923
        %925 = vdwg.mxu0
        %926 = vmatpush.msra.mxu0 %v847
        %927 = vmatpush.msra.mxu0 %v844
        %928 = vmatpush.msra.mxu0 %v841
        %929 = vmatpush.msra.mxu0 %v838
        %930 = vmatpush.msra.mxu0 %v835
        %931 = vmatpush.msra.mxu0 %v832
        %932 = vmatpush.msra.mxu0 %v829
        %933 = vmatpush.msra.mxu0 %v826
        %934 = vmatpush.msra.mxu0 %v823
        %935 = vmatpush.msra.mxu0 %v820
        %936 = vmatpush.msra.mxu0 %v817
        %937 = vmatpush.msra.mxu0 %v814
        %938 = vmatpush.msra.mxu0 %v811
        %939 = vmatpush.msra.mxu0 %v808
        %940 = vmatpush.msra.mxu0 %v805
        %941 = vmatpush.msra.mxu0 %v802
        %942 = vmatmul.f32.gmra.mxu0 %v794
        %v943 = vpop.f32.mrf.mxu0
        %v944 = vadd.f32 %v852, %v943
        %945 = vmatmul.f32.gmra.mxu0 %v795
        %v946 = vpop.f32.mrf.mxu0
        %v947 = vadd.f32 %v852, %v946
        %948 = vmatmul.f32.gmra.mxu0 %v796
        %v949 = vpop.f32.mrf.mxu0
        %v950 = vadd.f32 %v852, %v949
        %951 = vmatmul.f32.gmra.mxu0 %v797
        %v952 = vpop.f32.mrf.mxu0
        %v953 = vadd.f32 %v852, %v952
        %954 = vmatmul.f32.gmra.mxu0 %v798
        %v955 = vpop.f32.mrf.mxu0
        %v956 = vadd.f32 %v852, %v955
        %957 = vmatmul.f32.gmra.mxu0 %v799
        %v958 = vpop.f32.mrf.mxu0
        %v959 = vadd.f32 %v852, %v958
        %960 = vdwg.mxu0
        %v961 = vld [vmem:[%s604] sm:$0xff]
        %v962 = vld [vmem:[%s604 + $0x8] sm:$0xff]
        %v963 = vld [vmem:[%s604 + $0x10] sm:$0xff]
        %v964 = vld [vmem:[%s604 + $0x18] sm:$0xff]
        %v965 = vld [vmem:[%s604 + $0x20] sm:$0xff]
        %v966 = vld [vmem:[%s604 + $0x28] sm:$0xff]
        %v967 = vld [vmem:[%s604 + $0x30] sm:$0xff]
        %v968 = vld [vmem:[%s604 + $0x38] sm:$0xff]
        %v969 = vld [vmem:[%s604 + $0x40] sm:$0xff]
        %v970 = vld [vmem:[%s604 + $0x48] sm:$0xff]
        %v971 = vld [vmem:[%s604 + $0x50] sm:$0xff]
        %v972 = vld [vmem:[%s604 + $0x58] sm:$0xff]
        %v973 = vld [vmem:[%s604 + $0x60] sm:$0xff]
        %v974 = vld [vmem:[%s604 + $0x68] sm:$0xff]
        %v975 = vld [vmem:[%s604 + $0x70] sm:$0xff]
        %v976 = vld [vmem:[%s604 + $0x78] sm:$0xff]
        %v977 = vlaneseq
        %v978 = vand.u32 %v977, 127
        %vm979 = vcmp.lt.s32.totalorder %v978, 17
        %vm980 = vcmask 261120
        %v982 = vsel %vm980, %v874, 0
        %v985 = vsel %vm980, %v877, 0
        %v988 = vsel %vm980, %v880, 0
        %v991 = vsel %vm980, %v909, 0
        %v994 = vsel %vm980, %v912, 0
        %v997 = vsel %vm980, %v915, 0
        %999 = vmatpush.xpose.msra.mxu0 0.0
        %1000 = vmatpush.xpose.msra.mxu0 0.0
        %1001 = vmatpush.xpose.msra.mxu0 0.0
        %1002 = vmatpush.xpose.msra.mxu0 0.0
        %1003 = vmatpush.xpose.msra.mxu0 0.0
        %1004 = vmatpush.xpose.msra.mxu0 0.0
        %1005 = vmatpush.xpose.msra.mxu0 0.0
        %1006 = vmatpush.xpose.msra.mxu0 0.0
        %1007 = vmatpush.xpose.msra.mxu0 0.0
        %1008 = vmatpush.xpose.msra.mxu0 0.0
        %1009 = vmatpush.xpose.msra.mxu0 0.0
        %1010 = vmatpush.xpose.msra.mxu0 0.0
        %1011 = vmatpush.xpose.msra.mxu0 0.0
        %1012 = vmatpush.xpose.msra.mxu0 %v997
        %1013 = vmatpush.xpose.msra.mxu0 %v994
        %1014 = vmatpush.xpose.msra.mxu0 %v991
        %1015 = vmatmul.f32.gmra.mxu0 %v982
        %v1016 = vpop.f32.mrf.mxu0
        %v1017 = vadd.f32 0.0, %v1016
        %1018 = vmatmul.f32.gmra.mxu0 %v985
        %v1019 = vpop.f32.mrf.mxu0
        %v1020 = vadd.f32 0.0, %v1019
        %1021 = vmatmul.f32.gmra.mxu0 %v988
        %v1022 = vpop.f32.mrf.mxu0
        %v1023 = vadd.f32 0.0, %v1022
        %1024 = vdwg.mxu0
        %v1026 = vsel %vm980, %v883, 0
        %v1029 = vsel %vm980, %v886, 0
        %v1032 = vsel %vm980, %v889, 0
        %v1035 = vsel %vm980, %v918, 0
        %v1038 = vsel %vm980, %v921, 0
        %v1041 = vsel %vm980, %v924, 0
        %1043 = vmatpush.xpose.msra.mxu0 0.0
        %1044 = vmatpush.xpose.msra.mxu0 0.0
        %1045 = vmatpush.xpose.msra.mxu0 0.0
        %1046 = vmatpush.xpose.msra.mxu0 0.0
        %1047 = vmatpush.xpose.msra.mxu0 0.0
        %1048 = vmatpush.xpose.msra.mxu0 0.0
        %1049 = vmatpush.xpose.msra.mxu0 0.0
        %1050 = vmatpush.xpose.msra.mxu0 0.0
        %1051 = vmatpush.xpose.msra.mxu0 0.0
        %1052 = vmatpush.xpose.msra.mxu0 0.0
        %1053 = vmatpush.xpose.msra.mxu0 0.0
        %1054 = vmatpush.xpose.msra.mxu0 0.0
        %1055 = vmatpush.xpose.msra.mxu0 0.0
        %1056 = vmatpush.xpose.msra.mxu0 %v1041
        %1057 = vmatpush.xpose.msra.mxu0 %v1038
        %1058 = vmatpush.xpose.msra.mxu0 %v1035
        %1059 = vmatmul.f32.gmra.mxu0 %v1026
        %v1060 = vpop.f32.mrf.mxu0
        %v1061 = vadd.f32 0.0, %v1060
        %1062 = vmatmul.f32.gmra.mxu0 %v1029
        %v1063 = vpop.f32.mrf.mxu0
        %v1064 = vadd.f32 0.0, %v1063
        %1065 = vmatmul.f32.gmra.mxu0 %v1032
        %v1066 = vpop.f32.mrf.mxu0
        %v1067 = vadd.f32 0.0, %v1066
        %1068 = vdwg.mxu0
        %v1069 = vmul.f32 %v1017, 0.17677669
        %v1070 = vmul.f32 %v1020, 0.17677669
        %v1071 = vmul.f32 %v1023, 0.17677669
        %v1072 = vmul.f32 %v1061, 0.17677669
        %v1073 = vmul.f32 %v1064, 0.17677669
        %v1074 = vmul.f32 %v1067, 0.17677669
        %v1075 = vsel %vm979, 1, 0
        %vm1076 = vcmp.eq.s32.totalorder %v1075, 1
        %v1077 = vsel %vm1076, %v1069, -1e+30
        %v1078 = vsel %vm1076, %v1070, -1e+30
        %v1079 = vsel %vm1076, %v1071, -1e+30
        %v1080 = vsel %vm1076, %v1072, -1e+30
        %v1081 = vsel %vm1076, %v1073, -1e+30
        %v1082 = vsel %vm1076, %v1074, -1e+30
        %vm1083 = vcmask 195584
        %v1084 = vsel %vm1083, %v1077, -inf
        %1085 = vmax.xlane.f32.xlu0 %v1084
        %v1086 = vpop.xlane.xlu0 %1085
        %v1087 = vsel %vm1083, %v1078, -inf
        %1088 = vmax.xlane.f32.xlu0 %v1087
        %v1089 = vpop.xlane.xlu0 %1088
        %v1090 = vsel %vm1083, %v1079, -inf
        %1091 = vmax.xlane.f32.xlu0 %v1090
        %v1092 = vpop.xlane.xlu0 %1091
        %v1093 = vsel %vm1083, %v1080, -inf
        %1094 = vmax.xlane.f32.xlu0 %v1093
        %v1095 = vpop.xlane.xlu0 %1094
        %v1096 = vsel %vm1083, %v1081, -inf
        %1097 = vmax.xlane.f32.xlu0 %v1096
        %v1098 = vpop.xlane.xlu0 %1097
        %v1099 = vsel %vm1083, %v1082, -inf
        %1100 = vmax.xlane.f32.xlu0 %v1099
        %v1101 = vpop.xlane.xlu0 %1100
        %v1102 = vsub.f32 %v1077, %v1086
        %v1103 = vsub.f32 %v1078, %v1089
        %v1104 = vsub.f32 %v1079, %v1092
        %v1105 = vsub.f32 %v1080, %v1095
        %v1106 = vsub.f32 %v1081, %v1098
        %v1107 = vsub.f32 %v1082, %v1101
        %v1108 = vmul.f32 %v1102, 1.442695
        %v1109 = vpow.pop %v1108
        %v1110 = vmul.f32 %v1103, 1.442695
        %v1111 = vpow.pop %v1110
        %v1112 = vmul.f32 %v1104, 1.442695
        %v1113 = vpow.pop %v1112
        %v1114 = vmul.f32 %v1105, 1.442695
        %v1115 = vpow.pop %v1114
        %v1116 = vmul.f32 %v1106, 1.442695
        %v1117 = vpow.pop %v1116
        %v1118 = vmul.f32 %v1107, 1.442695
        %v1119 = vpow.pop %v1118
        %v1120 = vsel %vm1083, %v1109, 0.0
        %1121 = vadd.xlane.f32.xlu0 %v1120
        %v1122 = vpop.xlane.xlu0 %1121
        %v1123 = vsel %vm1083, %v1111, 0.0
        %1124 = vadd.xlane.f32.xlu0 %v1123
        %v1125 = vpop.xlane.xlu0 %1124
        %v1126 = vsel %vm1083, %v1113, 0.0
        %1127 = vadd.xlane.f32.xlu0 %v1126
        %v1128 = vpop.xlane.xlu0 %1127
        %v1129 = vsel %vm1083, %v1115, 0.0
        %1130 = vadd.xlane.f32.xlu0 %v1129
        %v1131 = vpop.xlane.xlu0 %1130
        %v1132 = vsel %vm1083, %v1117, 0.0
        %1133 = vadd.xlane.f32.xlu0 %v1132
        %v1134 = vpop.xlane.xlu0 %1133
        %v1135 = vsel %vm1083, %v1119, 0.0
        %1136 = vadd.xlane.f32.xlu0 %v1135
        %v1137 = vpop.xlane.xlu0 %1136
        %v1138 = vrcp.pop %v1122
        %v1139 = vmul.f32 %v1122, %v1138
        %v1140 = vsub.f32 1.0, %v1139
        %v1141 = vmul.f32 %v1138, %v1140
        %v1142 = vadd.f32 %v1138, %v1141
        %vm1143 = vweird.f32 %v1122
        %vm1144 = vweird.f32 %v1138
        %vm1145 = vmor %vm1143, %vm1144
        %v1146 = vsel %vm1145, %v1138, %v1142
        %v1147 = vand.u32 2147483647, %v1122
        %vm1148 = vcmp.eq.f32.partialorder %v1147, 8.507059e+37
        %v1149 = vand.u32 %v1122, 2147483648
        %v1150 = vor.u32 1.1754944e-38, %v1149
        %v1151 = vsel %vm1148, %v1150, %v1146
        %v1152 = vmul.f32 %v1109, %v1151
        %v1153 = vrcp.pop %v1125
        %v1154 = vmul.f32 %v1125, %v1153
        %v1155 = vsub.f32 1.0, %v1154
        %v1156 = vmul.f32 %v1153, %v1155
        %v1157 = vadd.f32 %v1153, %v1156
        %vm1158 = vweird.f32 %v1125
        %vm1159 = vweird.f32 %v1153
        %vm1160 = vmor %vm1158, %vm1159
        %v1161 = vsel %vm1160, %v1153, %v1157
        %v1162 = vand.u32 2147483647, %v1125
        %vm1163 = vcmp.eq.f32.partialorder %v1162, 8.507059e+37
        %v1164 = vand.u32 %v1125, 2147483648
        %v1165 = vor.u32 1.1754944e-38, %v1164
        %v1166 = vsel %vm1163, %v1165, %v1161
        %v1167 = vmul.f32 %v1111, %v1166
        %v1168 = vrcp.pop %v1128
        %v1169 = vmul.f32 %v1128, %v1168
        %v1170 = vsub.f32 1.0, %v1169
        %v1171 = vmul.f32 %v1168, %v1170
        %v1172 = vadd.f32 %v1168, %v1171
        %vm1173 = vweird.f32 %v1128
        %vm1174 = vweird.f32 %v1168
        %vm1175 = vmor %vm1173, %vm1174
        %v1176 = vsel %vm1175, %v1168, %v1172
        %v1177 = vand.u32 2147483647, %v1128
        %vm1178 = vcmp.eq.f32.partialorder %v1177, 8.507059e+37
        %v1179 = vand.u32 %v1128, 2147483648
        %v1180 = vor.u32 1.1754944e-38, %v1179
        %v1181 = vsel %vm1178, %v1180, %v1176
        %v1182 = vmul.f32 %v1113, %v1181
        %v1183 = vrcp.pop %v1131
        %v1184 = vmul.f32 %v1131, %v1183
        %v1185 = vsub.f32 1.0, %v1184
        %v1186 = vmul.f32 %v1183, %v1185
        %v1187 = vadd.f32 %v1183, %v1186
        %vm1188 = vweird.f32 %v1131
        %vm1189 = vweird.f32 %v1183
        %vm1190 = vmor %vm1188, %vm1189
        %v1191 = vsel %vm1190, %v1183, %v1187
        %v1192 = vand.u32 2147483647, %v1131
        %vm1193 = vcmp.eq.f32.partialorder %v1192, 8.507059e+37
        %v1194 = vand.u32 %v1131, 2147483648
        %v1195 = vor.u32 1.1754944e-38, %v1194
        %v1196 = vsel %vm1193, %v1195, %v1191
        %v1197 = vmul.f32 %v1115, %v1196
        %v1198 = vrcp.pop %v1134
        %v1199 = vmul.f32 %v1134, %v1198
        %v1200 = vsub.f32 1.0, %v1199
        %v1201 = vmul.f32 %v1198, %v1200
        %v1202 = vadd.f32 %v1198, %v1201
        %vm1203 = vweird.f32 %v1134
        %vm1204 = vweird.f32 %v1198
        %vm1205 = vmor %vm1203, %vm1204
        %v1206 = vsel %vm1205, %v1198, %v1202
        %v1207 = vand.u32 2147483647, %v1134
        %vm1208 = vcmp.eq.f32.partialorder %v1207, 8.507059e+37
        %v1209 = vand.u32 %v1134, 2147483648
        %v1210 = vor.u32 1.1754944e-38, %v1209
        %v1211 = vsel %vm1208, %v1210, %v1206
        %v1212 = vmul.f32 %v1117, %v1211
        %v1213 = vrcp.pop %v1137
        %v1214 = vmul.f32 %v1137, %v1213
        %v1215 = vsub.f32 1.0, %v1214
        %v1216 = vmul.f32 %v1213, %v1215
        %v1217 = vadd.f32 %v1213, %v1216
        %vm1218 = vweird.f32 %v1137
        %vm1219 = vweird.f32 %v1213
        %vm1220 = vmor %vm1218, %vm1219
        %v1221 = vsel %vm1220, %v1213, %v1217
        %v1222 = vand.u32 2147483647, %v1137
        %vm1223 = vcmp.eq.f32.partialorder %v1222, 8.507059e+37
        %v1224 = vand.u32 %v1137, 2147483648
        %v1225 = vor.u32 1.1754944e-38, %v1224
        %v1226 = vsel %vm1223, %v1225, %v1221
        %v1227 = vmul.f32 %v1119, %v1226
        %v1229 = vsel %vm1083, %v1152, 0
        %v1232 = vsel %vm1083, %v1167, 0
        %v1235 = vsel %vm1083, %v1182, 0
        %1237 = vmatpush.msra.mxu0 0.0
        %1238 = vmatpush.msra.mxu0 0.0
        %1239 = vmatpush.msra.mxu0 0.0
        %1240 = vmatpush.msra.mxu0 0.0
        %1241 = vmatpush.msra.mxu0 0.0
        %1242 = vmatpush.msra.mxu0 0.0
        %1243 = vmatpush.msra.mxu0 0.0
        %1244 = vmatpush.msra.mxu0 0.0
        %1245 = vmatpush.msra.mxu0 0.0
        %1246 = vmatpush.msra.mxu0 0.0
        %1247 = vmatpush.msra.mxu0 0.0
        %1248 = vmatpush.msra.mxu0 0.0
        %1249 = vmatpush.msra.mxu0 0.0
        %1250 = vmatpush.msra.mxu0 %v950
        %1251 = vmatpush.msra.mxu0 %v947
        %1252 = vmatpush.msra.mxu0 %v944
        %1253 = vmatmul.f32.gmra.mxu0 %v1229
        %v1254 = vpop.f32.mrf.mxu0
        %v1255 = vadd.f32 0.0, %v1254
        %1256 = vmatmul.f32.gmra.mxu0 %v1232
        %v1257 = vpop.f32.mrf.mxu0
        %v1258 = vadd.f32 0.0, %v1257
        %1259 = vmatmul.f32.gmra.mxu0 %v1235
        %v1260 = vpop.f32.mrf.mxu0
        %v1261 = vadd.f32 0.0, %v1260
        %1262 = vdwg.mxu0
        %v1264 = vsel %vm1083, %v1197, 0
        %v1267 = vsel %vm1083, %v1212, 0
        %v1270 = vsel %vm1083, %v1227, 0
        %1272 = vmatpush.msra.mxu0 0.0
        %1273 = vmatpush.msra.mxu0 0.0
        %1274 = vmatpush.msra.mxu0 0.0
        %1275 = vmatpush.msra.mxu0 0.0
        %1276 = vmatpush.msra.mxu0 0.0
        %1277 = vmatpush.msra.mxu0 0.0
        %1278 = vmatpush.msra.mxu0 0.0
        %1279 = vmatpush.msra.mxu0 0.0
        %1280 = vmatpush.msra.mxu0 0.0
        %1281 = vmatpush.msra.mxu0 0.0
        %1282 = vmatpush.msra.mxu0 0.0
        %1283 = vmatpush.msra.mxu0 0.0
        %1284 = vmatpush.msra.mxu0 0.0
        %1285 = vmatpush.msra.mxu0 %v959
        %1286 = vmatpush.msra.mxu0 %v956
        %1287 = vmatpush.msra.mxu0 %v953
        %1288 = vmatmul.f32.gmra.mxu0 %v1264
        %v1289 = vpop.f32.mrf.mxu0
        %v1290 = vadd.f32 0.0, %v1289
        %1291 = vmatmul.f32.gmra.mxu0 %v1267
        %v1292 = vpop.f32.mrf.mxu0
        %v1293 = vadd.f32 0.0, %v1292
        %1294 = vmatmul.f32.gmra.mxu0 %v1270
        %v1295 = vpop.f32.mrf.mxu0
        %v1296 = vadd.f32 0.0, %v1295
        %1297 = vdwg.mxu0
        %1298 = vrot.lane.b32.xlu0 %v874, 96
        %v1299 = vpop.permute.xlu0 %1298
        %1300 = vrot.lane.b32.xlu0 %v877, 96
        %v1301 = vpop.permute.xlu0 %1300
        %1302 = vrot.lane.b32.xlu0 %v880, 96
        %v1303 = vpop.permute.xlu0 %1302
        %1304 = vrot.lane.b32.xlu0 %v909, 96
        %v1305 = vpop.permute.xlu0 %1304
        %1306 = vrot.lane.b32.xlu0 %v912, 96
        %v1307 = vpop.permute.xlu0 %1306
        %1308 = vrot.lane.b32.xlu0 %v915, 96
        %v1309 = vpop.permute.xlu0 %1308
        %v1310 = vsel %vm980, %v1299, 0
        %v1312 = vsel %vm980, %v1301, 0
        %v1314 = vsel %vm980, %v1303, 0
        %v1316 = vsel %vm980, %v1305, 0
        %v1318 = vsel %vm980, %v1307, 0
        %v1320 = vsel %vm980, %v1309, 0
        %1322 = vmatpush.xpose.msra.mxu0 0.0
        %1323 = vmatpush.xpose.msra.mxu0 0.0
        %1324 = vmatpush.xpose.msra.mxu0 0.0
        %1325 = vmatpush.xpose.msra.mxu0 0.0
        %1326 = vmatpush.xpose.msra.mxu0 0.0
        %1327 = vmatpush.xpose.msra.mxu0 0.0
        %1328 = vmatpush.xpose.msra.mxu0 0.0
        %1329 = vmatpush.xpose.msra.mxu0 0.0
        %1330 = vmatpush.xpose.msra.mxu0 0.0
        %1331 = vmatpush.xpose.msra.mxu0 0.0
        %1332 = vmatpush.xpose.msra.mxu0 0.0
        %1333 = vmatpush.xpose.msra.mxu0 0.0
        %1334 = vmatpush.xpose.msra.mxu0 0.0
        %1335 = vmatpush.xpose.msra.mxu0 %v1320
        %1336 = vmatpush.xpose.msra.mxu0 %v1318
        %1337 = vmatpush.xpose.msra.mxu0 %v1316
        %1338 = vmatmul.f32.gmra.mxu0 %v1310
        %v1339 = vpop.f32.mrf.mxu0
        %v1340 = vadd.f32 0.0, %v1339
        %1341 = vmatmul.f32.gmra.mxu0 %v1312
        %v1342 = vpop.f32.mrf.mxu0
        %v1343 = vadd.f32 0.0, %v1342
        %1344 = vmatmul.f32.gmra.mxu0 %v1314
        %v1345 = vpop.f32.mrf.mxu0
        %v1346 = vadd.f32 0.0, %v1345
        %1347 = vdwg.mxu0
        %1348 = vrot.lane.b32.xlu0 %v883, 96
        %v1349 = vpop.permute.xlu0 %1348
        %1350 = vrot.lane.b32.xlu0 %v886, 96
        %v1351 = vpop.permute.xlu0 %1350
        %1352 = vrot.lane.b32.xlu0 %v889, 96
        %v1353 = vpop.permute.xlu0 %1352
        %1354 = vrot.lane.b32.xlu0 %v918, 96
        %v1355 = vpop.permute.xlu0 %1354
        %1356 = vrot.lane.b32.xlu0 %v921, 96
        %v1357 = vpop.permute.xlu0 %1356
        %1358 = vrot.lane.b32.xlu0 %v924, 96
        %v1359 = vpop.permute.xlu0 %1358
        %v1360 = vsel %vm980, %v1349, 0
        %v1362 = vsel %vm980, %v1351, 0
        %v1364 = vsel %vm980, %v1353, 0
        %v1366 = vsel %vm980, %v1355, 0
        %v1368 = vsel %vm980, %v1357, 0
        %v1370 = vsel %vm980, %v1359, 0
        %1372 = vmatpush.xpose.msra.mxu0 0.0
        %1373 = vmatpush.xpose.msra.mxu0 0.0
        %1374 = vmatpush.xpose.msra.mxu0 0.0
        %1375 = vmatpush.xpose.msra.mxu0 0.0
        %1376 = vmatpush.xpose.msra.mxu0 0.0
        %1377 = vmatpush.xpose.msra.mxu0 0.0
        %1378 = vmatpush.xpose.msra.mxu0 0.0
        %1379 = vmatpush.xpose.msra.mxu0 0.0
        %1380 = vmatpush.xpose.msra.mxu0 0.0
        %1381 = vmatpush.xpose.msra.mxu0 0.0
        %1382 = vmatpush.xpose.msra.mxu0 0.0
        %1383 = vmatpush.xpose.msra.mxu0 0.0
        %1384 = vmatpush.xpose.msra.mxu0 0.0
        %1385 = vmatpush.xpose.msra.mxu0 %v1370
        %1386 = vmatpush.xpose.msra.mxu0 %v1368
        %1387 = vmatpush.xpose.msra.mxu0 %v1366
        %1388 = vmatmul.f32.gmra.mxu0 %v1360
        %v1389 = vpop.f32.mrf.mxu0
        %v1390 = vadd.f32 0.0, %v1389
        %1391 = vmatmul.f32.gmra.mxu0 %v1362
        %v1392 = vpop.f32.mrf.mxu0
        %v1393 = vadd.f32 0.0, %v1392
        %1394 = vmatmul.f32.gmra.mxu0 %v1364
        %v1395 = vpop.f32.mrf.mxu0
        %v1396 = vadd.f32 0.0, %v1395
        %1397 = vdwg.mxu0
        %v1398 = vmul.f32 %v1340, 0.17677669
        %v1399 = vmul.f32 %v1343, 0.17677669
        %v1400 = vmul.f32 %v1346, 0.17677669
        %v1401 = vmul.f32 %v1390, 0.17677669
        %v1402 = vmul.f32 %v1393, 0.17677669
        %v1403 = vmul.f32 %v1396, 0.17677669
        %v1404 = vsel %vm1076, %v1398, -1e+30
        %v1405 = vsel %vm1076, %v1399, -1e+30
        %v1406 = vsel %vm1076, %v1400, -1e+30
        %v1407 = vsel %vm1076, %v1401, -1e+30
        %v1408 = vsel %vm1076, %v1402, -1e+30
        %v1409 = vsel %vm1076, %v1403, -1e+30
        %v1410 = vsel %vm1083, %v1404, -inf
        %1411 = vmax.xlane.f32.xlu0 %v1410
        %v1412 = vpop.xlane.xlu0 %1411
        %v1413 = vsel %vm1083, %v1405, -inf
        %1414 = vmax.xlane.f32.xlu0 %v1413
        %v1415 = vpop.xlane.xlu0 %1414
        %v1416 = vsel %vm1083, %v1406, -inf
        %1417 = vmax.xlane.f32.xlu0 %v1416
        %v1418 = vpop.xlane.xlu0 %1417
        %v1419 = vsel %vm1083, %v1407, -inf
        %1420 = vmax.xlane.f32.xlu0 %v1419
        %v1421 = vpop.xlane.xlu0 %1420
        %v1422 = vsel %vm1083, %v1408, -inf
        %1423 = vmax.xlane.f32.xlu0 %v1422
        %v1424 = vpop.xlane.xlu0 %1423
        %v1425 = vsel %vm1083, %v1409, -inf
        %1426 = vmax.xlane.f32.xlu0 %v1425
        %v1427 = vpop.xlane.xlu0 %1426
        %v1428 = vsub.f32 %v1404, %v1412
        %v1429 = vsub.f32 %v1405, %v1415
        %v1430 = vsub.f32 %v1406, %v1418
        %v1431 = vsub.f32 %v1407, %v1421
        %v1432 = vsub.f32 %v1408, %v1424
        %v1433 = vsub.f32 %v1409, %v1427
        %v1434 = vmul.f32 %v1428, 1.442695
        %v1435 = vpow.pop %v1434
        %v1436 = vmul.f32 %v1429, 1.442695
        %v1437 = vpow.pop %v1436
        %v1438 = vmul.f32 %v1430, 1.442695
        %v1439 = vpow.pop %v1438
        %v1440 = vmul.f32 %v1431, 1.442695
        %v1441 = vpow.pop %v1440
        %v1442 = vmul.f32 %v1432, 1.442695
        %v1443 = vpow.pop %v1442
        %v1444 = vmul.f32 %v1433, 1.442695
        %v1445 = vpow.pop %v1444
        %v1446 = vsel %vm1083, %v1435, 0.0
        %1447 = vadd.xlane.f32.xlu0 %v1446
        %v1448 = vpop.xlane.xlu0 %1447
        %v1449 = vsel %vm1083, %v1437, 0.0
        %1450 = vadd.xlane.f32.xlu0 %v1449
        %v1451 = vpop.xlane.xlu0 %1450
        %v1452 = vsel %vm1083, %v1439, 0.0
        %1453 = vadd.xlane.f32.xlu0 %v1452
        %v1454 = vpop.xlane.xlu0 %1453
        %v1455 = vsel %vm1083, %v1441, 0.0
        %1456 = vadd.xlane.f32.xlu0 %v1455
        %v1457 = vpop.xlane.xlu0 %1456
        %v1458 = vsel %vm1083, %v1443, 0.0
        %1459 = vadd.xlane.f32.xlu0 %v1458
        %v1460 = vpop.xlane.xlu0 %1459
        %v1461 = vsel %vm1083, %v1445, 0.0
        %1462 = vadd.xlane.f32.xlu0 %v1461
        %v1463 = vpop.xlane.xlu0 %1462
        %v1464 = vrcp.pop %v1448
        %v1465 = vmul.f32 %v1448, %v1464
        %v1466 = vsub.f32 1.0, %v1465
        %v1467 = vmul.f32 %v1464, %v1466
        %v1468 = vadd.f32 %v1464, %v1467
        %vm1469 = vweird.f32 %v1448
        %vm1470 = vweird.f32 %v1464
        %vm1471 = vmor %vm1469, %vm1470
        %v1472 = vsel %vm1471, %v1464, %v1468
        %v1473 = vand.u32 2147483647, %v1448
        %vm1474 = vcmp.eq.f32.partialorder %v1473, 8.507059e+37
        %v1475 = vand.u32 %v1448, 2147483648
        %v1476 = vor.u32 1.1754944e-38, %v1475
        %v1477 = vsel %vm1474, %v1476, %v1472
        %v1478 = vmul.f32 %v1435, %v1477
        %v1479 = vrcp.pop %v1451
        %v1480 = vmul.f32 %v1451, %v1479
        %v1481 = vsub.f32 1.0, %v1480
        %v1482 = vmul.f32 %v1479, %v1481
        %v1483 = vadd.f32 %v1479, %v1482
        %vm1484 = vweird.f32 %v1451
        %vm1485 = vweird.f32 %v1479
        %vm1486 = vmor %vm1484, %vm1485
        %v1487 = vsel %vm1486, %v1479, %v1483
        %v1488 = vand.u32 2147483647, %v1451
        %vm1489 = vcmp.eq.f32.partialorder %v1488, 8.507059e+37
        %v1490 = vand.u32 %v1451, 2147483648
        %v1491 = vor.u32 1.1754944e-38, %v1490
        %v1492 = vsel %vm1489, %v1491, %v1487
        %v1493 = vmul.f32 %v1437, %v1492
        %v1494 = vrcp.pop %v1454
        %v1495 = vmul.f32 %v1454, %v1494
        %v1496 = vsub.f32 1.0, %v1495
        %v1497 = vmul.f32 %v1494, %v1496
        %v1498 = vadd.f32 %v1494, %v1497
        %vm1499 = vweird.f32 %v1454
        %vm1500 = vweird.f32 %v1494
        %vm1501 = vmor %vm1499, %vm1500
        %v1502 = vsel %vm1501, %v1494, %v1498
        %v1503 = vand.u32 2147483647, %v1454
        %vm1504 = vcmp.eq.f32.partialorder %v1503, 8.507059e+37
        %v1505 = vand.u32 %v1454, 2147483648
        %v1506 = vor.u32 1.1754944e-38, %v1505
        %v1507 = vsel %vm1504, %v1506, %v1502
        %v1508 = vmul.f32 %v1439, %v1507
        %v1509 = vrcp.pop %v1457
        %v1510 = vmul.f32 %v1457, %v1509
        %v1511 = vsub.f32 1.0, %v1510
        %v1512 = vmul.f32 %v1509, %v1511
        %v1513 = vadd.f32 %v1509, %v1512
        %vm1514 = vweird.f32 %v1457
        %vm1515 = vweird.f32 %v1509
        %vm1516 = vmor %vm1514, %vm1515
        %v1517 = vsel %vm1516, %v1509, %v1513
        %v1518 = vand.u32 2147483647, %v1457
        %vm1519 = vcmp.eq.f32.partialorder %v1518, 8.507059e+37
        %v1520 = vand.u32 %v1457, 2147483648
        %v1521 = vor.u32 1.1754944e-38, %v1520
        %v1522 = vsel %vm1519, %v1521, %v1517
        %v1523 = vmul.f32 %v1441, %v1522
        %v1524 = vrcp.pop %v1460
        %v1525 = vmul.f32 %v1460, %v1524
        %v1526 = vsub.f32 1.0, %v1525
        %v1527 = vmul.f32 %v1524, %v1526
        %v1528 = vadd.f32 %v1524, %v1527
        %vm1529 = vweird.f32 %v1460
        %vm1530 = vweird.f32 %v1524
        %vm1531 = vmor %vm1529, %vm1530
        %v1532 = vsel %vm1531, %v1524, %v1528
        %v1533 = vand.u32 2147483647, %v1460
        %vm1534 = vcmp.eq.f32.partialorder %v1533, 8.507059e+37
        %v1535 = vand.u32 %v1460, 2147483648
        %v1536 = vor.u32 1.1754944e-38, %v1535
        %v1537 = vsel %vm1534, %v1536, %v1532
        %v1538 = vmul.f32 %v1443, %v1537
        %v1539 = vrcp.pop %v1463
        %v1540 = vmul.f32 %v1463, %v1539
        %v1541 = vsub.f32 1.0, %v1540
        %v1542 = vmul.f32 %v1539, %v1541
        %v1543 = vadd.f32 %v1539, %v1542
        %vm1544 = vweird.f32 %v1463
        %vm1545 = vweird.f32 %v1539
        %vm1546 = vmor %vm1544, %vm1545
        %v1547 = vsel %vm1546, %v1539, %v1543
        %v1548 = vand.u32 2147483647, %v1463
        %vm1549 = vcmp.eq.f32.partialorder %v1548, 8.507059e+37
        %v1550 = vand.u32 %v1463, 2147483648
        %v1551 = vor.u32 1.1754944e-38, %v1550
        %v1552 = vsel %vm1549, %v1551, %v1547
        %v1553 = vmul.f32 %v1445, %v1552
        %1557 = vrot.lane.b32.xlu0 %v944, 96
        %v1558 = vpop.permute.xlu0 %1557
        %1559 = vrot.lane.b32.xlu0 %v947, 96
        %v1560 = vpop.permute.xlu0 %1559
        %1561 = vrot.lane.b32.xlu0 %v950, 96
        %v1562 = vpop.permute.xlu0 %1561
        %v1567 = vsel %vm1083, %v1478, 0
        %v1570 = vsel %vm1083, %v1493, 0
        %v1573 = vsel %vm1083, %v1508, 0
        %1575 = vmatpush.msra.mxu0 0.0
        %1576 = vmatpush.msra.mxu0 0.0
        %1577 = vmatpush.msra.mxu0 0.0
        %1578 = vmatpush.msra.mxu0 0.0
        %1579 = vmatpush.msra.mxu0 0.0
        %1580 = vmatpush.msra.mxu0 0.0
        %1581 = vmatpush.msra.mxu0 0.0
        %1582 = vmatpush.msra.mxu0 0.0
        %1583 = vmatpush.msra.mxu0 0.0
        %1584 = vmatpush.msra.mxu0 0.0
        %1585 = vmatpush.msra.mxu0 0.0
        %1586 = vmatpush.msra.mxu0 0.0
        %1587 = vmatpush.msra.mxu0 0.0
        %1588 = vmatpush.msra.mxu0 %v1562
        %1589 = vmatpush.msra.mxu0 %v1560
        %1590 = vmatpush.msra.mxu0 %v1558
        %1591 = vmatmul.f32.gmra.mxu0 %v1567
        %v1592 = vpop.f32.mrf.mxu0
        %v1593 = vadd.f32 0.0, %v1592
        %1594 = vmatmul.f32.gmra.mxu0 %v1570
        %v1595 = vpop.f32.mrf.mxu0
        %v1596 = vadd.f32 0.0, %v1595
        %1597 = vmatmul.f32.gmra.mxu0 %v1573
        %v1598 = vpop.f32.mrf.mxu0
        %v1599 = vadd.f32 0.0, %v1598
        %1600 = vdwg.mxu0
        %1604 = vrot.lane.b32.xlu0 %v953, 96
        %v1605 = vpop.permute.xlu0 %1604
        %1606 = vrot.lane.b32.xlu0 %v956, 96
        %v1607 = vpop.permute.xlu0 %1606
        %1608 = vrot.lane.b32.xlu0 %v959, 96
        %v1609 = vpop.permute.xlu0 %1608
        %v1614 = vsel %vm1083, %v1523, 0
        %v1617 = vsel %vm1083, %v1538, 0
        %v1620 = vsel %vm1083, %v1553, 0
        %1622 = vmatpush.msra.mxu0 0.0
        %1623 = vmatpush.msra.mxu0 0.0
        %1624 = vmatpush.msra.mxu0 0.0
        %1625 = vmatpush.msra.mxu0 0.0
        %1626 = vmatpush.msra.mxu0 0.0
        %1627 = vmatpush.msra.mxu0 0.0
        %1628 = vmatpush.msra.mxu0 0.0
        %1629 = vmatpush.msra.mxu0 0.0
        %1630 = vmatpush.msra.mxu0 0.0
        %1631 = vmatpush.msra.mxu0 0.0
        %1632 = vmatpush.msra.mxu0 0.0
        %1633 = vmatpush.msra.mxu0 0.0
        %1634 = vmatpush.msra.mxu0 0.0
        %1635 = vmatpush.msra.mxu0 %v1609
        %1636 = vmatpush.msra.mxu0 %v1607
        %1637 = vmatpush.msra.mxu0 %v1605
        %1638 = vmatmul.f32.gmra.mxu0 %v1614
        %v1639 = vpop.f32.mrf.mxu0
        %v1640 = vadd.f32 0.0, %v1639
        %1641 = vmatmul.f32.gmra.mxu0 %v1617
        %v1642 = vpop.f32.mrf.mxu0
        %v1643 = vadd.f32 0.0, %v1642
        %1644 = vmatmul.f32.gmra.mxu0 %v1620
        %v1645 = vpop.f32.mrf.mxu0
        %v1646 = vadd.f32 0.0, %v1645
        %1647 = vdwg.mxu0
        %v1649 = vsel %vm980, %v1593, 0
        %v1652 = vsel %vm980, %v1596, 0
        %v1655 = vsel %vm980, %v1599, 0
        %v1658 = vsel %vm980, %v1640, 0
        %v1661 = vsel %vm980, %v1643, 0
        %v1664 = vsel %vm980, %v1646, 0
        %1666 = vmatpush.msra.mxu0 0.0
        %1667 = vmatpush.msra.mxu0 0.0
        %1668 = vmatpush.msra.mxu0 0.0
        %1669 = vmatpush.msra.mxu0 0.0
        %1670 = vmatpush.msra.mxu0 0.0
        %1671 = vmatpush.msra.mxu0 0.0
        %1672 = vmatpush.msra.mxu0 0.0
        %1673 = vmatpush.msra.mxu0 0.0
        %1674 = vmatpush.msra.mxu0 0.0
        %1675 = vmatpush.msra.mxu0 0.0
        %1676 = vmatpush.msra.mxu0 0.0
        %1677 = vmatpush.msra.mxu0 0.0
        %1678 = vmatpush.msra.mxu0 %v968
        %1679 = vmatpush.msra.mxu0 %v967
        %1680 = vmatpush.msra.mxu0 %v966
        %1681 = vmatpush.msra.mxu0 %v965
        %1682 = vmatmul.f32.gmra.mxu0 %v1649
        %v1683 = vpop.f32.mrf.mxu0
        %v1684 = vadd.f32 0.0, %v1683
        %1685 = vmatmul.f32.gmra.mxu0 %v1652
        %v1686 = vpop.f32.mrf.mxu0
        %v1687 = vadd.f32 0.0, %v1686
        %1688 = vmatmul.f32.gmra.mxu0 %v1655
        %v1689 = vpop.f32.mrf.mxu0
        %v1690 = vadd.f32 0.0, %v1689
        %1691 = vmatmul.f32.gmra.mxu0 %v1658
        %v1692 = vpop.f32.mrf.mxu0
        %v1693 = vadd.f32 0.0, %v1692
        %1694 = vmatmul.f32.gmra.mxu0 %v1661
        %v1695 = vpop.f32.mrf.mxu0
        %v1696 = vadd.f32 0.0, %v1695
        %1697 = vmatmul.f32.gmra.mxu0 %v1664
        %v1698 = vpop.f32.mrf.mxu0
        %v1699 = vadd.f32 0.0, %v1698
        %1700 = vdwg.mxu0
        %v1702 = vsel %vm980, %v1255, 0
        %v1705 = vsel %vm980, %v1258, 0
        %v1708 = vsel %vm980, %v1261, 0
        %v1711 = vsel %vm980, %v1290, 0
        %v1714 = vsel %vm980, %v1293, 0
        %v1717 = vsel %vm980, %v1296, 0
        %1719 = vmatpush.msra.mxu0 0.0
        %1720 = vmatpush.msra.mxu0 0.0
        %1721 = vmatpush.msra.mxu0 0.0
        %1722 = vmatpush.msra.mxu0 0.0
        %1723 = vmatpush.msra.mxu0 0.0
        %1724 = vmatpush.msra.mxu0 0.0
        %1725 = vmatpush.msra.mxu0 0.0
        %1726 = vmatpush.msra.mxu0 0.0
        %1727 = vmatpush.msra.mxu0 0.0
        %1728 = vmatpush.msra.mxu0 0.0
        %1729 = vmatpush.msra.mxu0 0.0
        %1730 = vmatpush.msra.mxu0 0.0
        %1731 = vmatpush.msra.mxu0 %v964
        %1732 = vmatpush.msra.mxu0 %v963
        %1733 = vmatpush.msra.mxu0 %v962
        %1734 = vmatpush.msra.mxu0 %v961
        %1735 = vmatmul.f32.gmra.mxu0 %v1702
        %v1736 = vpop.f32.mrf.mxu0
        %v1737 = vadd.f32 %v1684, %v1736
        %1738 = vmatmul.f32.gmra.mxu0 %v1705
        %v1739 = vpop.f32.mrf.mxu0
        %v1740 = vadd.f32 %v1687, %v1739
        %1741 = vmatmul.f32.gmra.mxu0 %v1708
        %v1742 = vpop.f32.mrf.mxu0
        %v1743 = vadd.f32 %v1690, %v1742
        %1744 = vmatmul.f32.gmra.mxu0 %v1711
        %v1745 = vpop.f32.mrf.mxu0
        %v1746 = vadd.f32 %v1693, %v1745
        %1747 = vmatmul.f32.gmra.mxu0 %v1714
        %v1748 = vpop.f32.mrf.mxu0
        %v1749 = vadd.f32 %v1696, %v1748
        %1750 = vmatmul.f32.gmra.mxu0 %v1717
        %v1751 = vpop.f32.mrf.mxu0
        %v1752 = vadd.f32 %v1699, %v1751
        %1753 = vdwg.mxu0
        %1754 = vrot.lane.b32.xlu0 %v874, 64
        %v1755 = vpop.permute.xlu0 %1754
        %1756 = vrot.lane.b32.xlu0 %v877, 64
        %v1757 = vpop.permute.xlu0 %1756
        %1758 = vrot.lane.b32.xlu0 %v880, 64
        %v1759 = vpop.permute.xlu0 %1758
        %1760 = vrot.lane.b32.xlu0 %v909, 64
        %v1761 = vpop.permute.xlu0 %1760
        %1762 = vrot.lane.b32.xlu0 %v912, 64
        %v1763 = vpop.permute.xlu0 %1762
        %1764 = vrot.lane.b32.xlu0 %v915, 64
        %v1765 = vpop.permute.xlu0 %1764
        %v1766 = vsel %vm980, %v1755, 0
        %v1768 = vsel %vm980, %v1757, 0
        %v1770 = vsel %vm980, %v1759, 0
        %v1772 = vsel %vm980, %v1761, 0
        %v1774 = vsel %vm980, %v1763, 0
        %v1776 = vsel %vm980, %v1765, 0
        %1778 = vmatpush.xpose.msra.mxu0 0.0
        %1779 = vmatpush.xpose.msra.mxu0 0.0
        %1780 = vmatpush.xpose.msra.mxu0 0.0
        %1781 = vmatpush.xpose.msra.mxu0 0.0
        %1782 = vmatpush.xpose.msra.mxu0 0.0
        %1783 = vmatpush.xpose.msra.mxu0 0.0
        %1784 = vmatpush.xpose.msra.mxu0 0.0
        %1785 = vmatpush.xpose.msra.mxu0 0.0
        %1786 = vmatpush.xpose.msra.mxu0 0.0
        %1787 = vmatpush.xpose.msra.mxu0 0.0
        %1788 = vmatpush.xpose.msra.mxu0 0.0
        %1789 = vmatpush.xpose.msra.mxu0 0.0
        %1790 = vmatpush.xpose.msra.mxu0 0.0
        %1791 = vmatpush.xpose.msra.mxu0 %v1776
        %1792 = vmatpush.xpose.msra.mxu0 %v1774
        %1793 = vmatpush.xpose.msra.mxu0 %v1772
        %1794 = vmatmul.f32.gmra.mxu0 %v1766
        %v1795 = vpop.f32.mrf.mxu0
        %v1796 = vadd.f32 0.0, %v1795
        %1797 = vmatmul.f32.gmra.mxu0 %v1768
        %v1798 = vpop.f32.mrf.mxu0
        %v1799 = vadd.f32 0.0, %v1798
        %1800 = vmatmul.f32.gmra.mxu0 %v1770
        %v1801 = vpop.f32.mrf.mxu0
        %v1802 = vadd.f32 0.0, %v1801
        %1803 = vdwg.mxu0
        %1804 = vrot.lane.b32.xlu0 %v883, 64
        %v1805 = vpop.permute.xlu0 %1804
        %1806 = vrot.lane.b32.xlu0 %v886, 64
        %v1807 = vpop.permute.xlu0 %1806
        %1808 = vrot.lane.b32.xlu0 %v889, 64
        %v1809 = vpop.permute.xlu0 %1808
        %1810 = vrot.lane.b32.xlu0 %v918, 64
        %v1811 = vpop.permute.xlu0 %1810
        %1812 = vrot.lane.b32.xlu0 %v921, 64
        %v1813 = vpop.permute.xlu0 %1812
        %1814 = vrot.lane.b32.xlu0 %v924, 64
        %v1815 = vpop.permute.xlu0 %1814
        %v1816 = vsel %vm980, %v1805, 0
        %v1818 = vsel %vm980, %v1807, 0
        %v1820 = vsel %vm980, %v1809, 0
        %v1822 = vsel %vm980, %v1811, 0
        %v1824 = vsel %vm980, %v1813, 0
        %v1826 = vsel %vm980, %v1815, 0
        %1828 = vmatpush.xpose.msra.mxu0 0.0
        %1829 = vmatpush.xpose.msra.mxu0 0.0
        %1830 = vmatpush.xpose.msra.mxu0 0.0
        %1831 = vmatpush.xpose.msra.mxu0 0.0
        %1832 = vmatpush.xpose.msra.mxu0 0.0
        %1833 = vmatpush.xpose.msra.mxu0 0.0
        %1834 = vmatpush.xpose.msra.mxu0 0.0
        %1835 = vmatpush.xpose.msra.mxu0 0.0
        %1836 = vmatpush.xpose.msra.mxu0 0.0
        %1837 = vmatpush.xpose.msra.mxu0 0.0
        %1838 = vmatpush.xpose.msra.mxu0 0.0
        %1839 = vmatpush.xpose.msra.mxu0 0.0
        %1840 = vmatpush.xpose.msra.mxu0 0.0
        %1841 = vmatpush.xpose.msra.mxu0 %v1826
        %1842 = vmatpush.xpose.msra.mxu0 %v1824
        %1843 = vmatpush.xpose.msra.mxu0 %v1822
        %1844 = vmatmul.f32.gmra.mxu0 %v1816
        %v1845 = vpop.f32.mrf.mxu0
        %v1846 = vadd.f32 0.0, %v1845
        %1847 = vmatmul.f32.gmra.mxu0 %v1818
        %v1848 = vpop.f32.mrf.mxu0
        %v1849 = vadd.f32 0.0, %v1848
        %1850 = vmatmul.f32.gmra.mxu0 %v1820
        %v1851 = vpop.f32.mrf.mxu0
        %v1852 = vadd.f32 0.0, %v1851
        %1853 = vdwg.mxu0
        %v1854 = vmul.f32 %v1796, 0.17677669
        %v1855 = vmul.f32 %v1799, 0.17677669
        %v1856 = vmul.f32 %v1802, 0.17677669
        %v1857 = vmul.f32 %v1846, 0.17677669
        %v1858 = vmul.f32 %v1849, 0.17677669
        %v1859 = vmul.f32 %v1852, 0.17677669
        %v1860 = vsel %vm1076, %v1854, -1e+30
        %v1861 = vsel %vm1076, %v1855, -1e+30
        %v1862 = vsel %vm1076, %v1856, -1e+30
        %v1863 = vsel %vm1076, %v1857, -1e+30
        %v1864 = vsel %vm1076, %v1858, -1e+30
        %v1865 = vsel %vm1076, %v1859, -1e+30
        %v1866 = vsel %vm1083, %v1860, -inf
        %1867 = vmax.xlane.f32.xlu0 %v1866
        %v1868 = vpop.xlane.xlu0 %1867
        %v1869 = vsel %vm1083, %v1861, -inf
        %1870 = vmax.xlane.f32.xlu0 %v1869
        %v1871 = vpop.xlane.xlu0 %1870
        %v1872 = vsel %vm1083, %v1862, -inf
        %1873 = vmax.xlane.f32.xlu0 %v1872
        %v1874 = vpop.xlane.xlu0 %1873
        %v1875 = vsel %vm1083, %v1863, -inf
        %1876 = vmax.xlane.f32.xlu0 %v1875
        %v1877 = vpop.xlane.xlu0 %1876
        %v1878 = vsel %vm1083, %v1864, -inf
        %1879 = vmax.xlane.f32.xlu0 %v1878
        %v1880 = vpop.xlane.xlu0 %1879
        %v1881 = vsel %vm1083, %v1865, -inf
        %1882 = vmax.xlane.f32.xlu0 %v1881
        %v1883 = vpop.xlane.xlu0 %1882
        %v1884 = vsub.f32 %v1860, %v1868
        %v1885 = vsub.f32 %v1861, %v1871
        %v1886 = vsub.f32 %v1862, %v1874
        %v1887 = vsub.f32 %v1863, %v1877
        %v1888 = vsub.f32 %v1864, %v1880
        %v1889 = vsub.f32 %v1865, %v1883
        %v1890 = vmul.f32 %v1884, 1.442695
        %v1891 = vpow.pop %v1890
        %v1892 = vmul.f32 %v1885, 1.442695
        %v1893 = vpow.pop %v1892
        %v1894 = vmul.f32 %v1886, 1.442695
        %v1895 = vpow.pop %v1894
        %v1896 = vmul.f32 %v1887, 1.442695
        %v1897 = vpow.pop %v1896
        %v1898 = vmul.f32 %v1888, 1.442695
        %v1899 = vpow.pop %v1898
        %v1900 = vmul.f32 %v1889, 1.442695
        %v1901 = vpow.pop %v1900
        %v1902 = vsel %vm1083, %v1891, 0.0
        %1903 = vadd.xlane.f32.xlu0 %v1902
        %v1904 = vpop.xlane.xlu0 %1903
        %v1905 = vsel %vm1083, %v1893, 0.0
        %1906 = vadd.xlane.f32.xlu0 %v1905
        %v1907 = vpop.xlane.xlu0 %1906
        %v1908 = vsel %vm1083, %v1895, 0.0
        %1909 = vadd.xlane.f32.xlu0 %v1908
        %v1910 = vpop.xlane.xlu0 %1909
        %v1911 = vsel %vm1083, %v1897, 0.0
        %1912 = vadd.xlane.f32.xlu0 %v1911
        %v1913 = vpop.xlane.xlu0 %1912
        %v1914 = vsel %vm1083, %v1899, 0.0
        %1915 = vadd.xlane.f32.xlu0 %v1914
        %v1916 = vpop.xlane.xlu0 %1915
        %v1917 = vsel %vm1083, %v1901, 0.0
        %1918 = vadd.xlane.f32.xlu0 %v1917
        %v1919 = vpop.xlane.xlu0 %1918
        %v1920 = vrcp.pop %v1904
        %v1921 = vmul.f32 %v1904, %v1920
        %v1922 = vsub.f32 1.0, %v1921
        %v1923 = vmul.f32 %v1920, %v1922
        %v1924 = vadd.f32 %v1920, %v1923
        %vm1925 = vweird.f32 %v1904
        %vm1926 = vweird.f32 %v1920
        %vm1927 = vmor %vm1925, %vm1926
        %v1928 = vsel %vm1927, %v1920, %v1924
        %v1929 = vand.u32 2147483647, %v1904
        %vm1930 = vcmp.eq.f32.partialorder %v1929, 8.507059e+37
        %v1931 = vand.u32 %v1904, 2147483648
        %v1932 = vor.u32 1.1754944e-38, %v1931
        %v1933 = vsel %vm1930, %v1932, %v1928
        %v1934 = vmul.f32 %v1891, %v1933
        %v1935 = vrcp.pop %v1907
        %v1936 = vmul.f32 %v1907, %v1935
        %v1937 = vsub.f32 1.0, %v1936
        %v1938 = vmul.f32 %v1935, %v1937
        %v1939 = vadd.f32 %v1935, %v1938
        %vm1940 = vweird.f32 %v1907
        %vm1941 = vweird.f32 %v1935
        %vm1942 = vmor %vm1940, %vm1941
        %v1943 = vsel %vm1942, %v1935, %v1939
        %v1944 = vand.u32 2147483647, %v1907
        %vm1945 = vcmp.eq.f32.partialorder %v1944, 8.507059e+37
        %v1946 = vand.u32 %v1907, 2147483648
        %v1947 = vor.u32 1.1754944e-38, %v1946
        %v1948 = vsel %vm1945, %v1947, %v1943
        %v1949 = vmul.f32 %v1893, %v1948
        %v1950 = vrcp.pop %v1910
        %v1951 = vmul.f32 %v1910, %v1950
        %v1952 = vsub.f32 1.0, %v1951
        %v1953 = vmul.f32 %v1950, %v1952
        %v1954 = vadd.f32 %v1950, %v1953
        %vm1955 = vweird.f32 %v1910
        %vm1956 = vweird.f32 %v1950
        %vm1957 = vmor %vm1955, %vm1956
        %v1958 = vsel %vm1957, %v1950, %v1954
        %v1959 = vand.u32 2147483647, %v1910
        %vm1960 = vcmp.eq.f32.partialorder %v1959, 8.507059e+37
        %v1961 = vand.u32 %v1910, 2147483648
        %v1962 = vor.u32 1.1754944e-38, %v1961
        %v1963 = vsel %vm1960, %v1962, %v1958
        %v1964 = vmul.f32 %v1895, %v1963
        %v1965 = vrcp.pop %v1913
        %v1966 = vmul.f32 %v1913, %v1965
        %v1967 = vsub.f32 1.0, %v1966
        %v1968 = vmul.f32 %v1965, %v1967
        %v1969 = vadd.f32 %v1965, %v1968
        %vm1970 = vweird.f32 %v1913
        %vm1971 = vweird.f32 %v1965
        %vm1972 = vmor %vm1970, %vm1971
        %v1973 = vsel %vm1972, %v1965, %v1969
        %v1974 = vand.u32 2147483647, %v1913
        %vm1975 = vcmp.eq.f32.partialorder %v1974, 8.507059e+37
        %v1976 = vand.u32 %v1913, 2147483648
        %v1977 = vor.u32 1.1754944e-38, %v1976
        %v1978 = vsel %vm1975, %v1977, %v1973
        %v1979 = vmul.f32 %v1897, %v1978
        %v1980 = vrcp.pop %v1916
        %v1981 = vmul.f32 %v1916, %v1980
        %v1982 = vsub.f32 1.0, %v1981
        %v1983 = vmul.f32 %v1980, %v1982
        %v1984 = vadd.f32 %v1980, %v1983
        %vm1985 = vweird.f32 %v1916
        %vm1986 = vweird.f32 %v1980
        %vm1987 = vmor %vm1985, %vm1986
        %v1988 = vsel %vm1987, %v1980, %v1984
        %v1989 = vand.u32 2147483647, %v1916
        %vm1990 = vcmp.eq.f32.partialorder %v1989, 8.507059e+37
        %v1991 = vand.u32 %v1916, 2147483648
        %v1992 = vor.u32 1.1754944e-38, %v1991
        %v1993 = vsel %vm1990, %v1992, %v1988
        %v1994 = vmul.f32 %v1899, %v1993
        %v1995 = vrcp.pop %v1919
        %v1996 = vmul.f32 %v1919, %v1995
        %v1997 = vsub.f32 1.0, %v1996
        %v1998 = vmul.f32 %v1995, %v1997
        %v1999 = vadd.f32 %v1995, %v1998
        %vm2000 = vweird.f32 %v1919
        %vm2001 = vweird.f32 %v1995
        %vm2002 = vmor %vm2000, %vm2001
        %v2003 = vsel %vm2002, %v1995, %v1999
        %v2004 = vand.u32 2147483647, %v1919
        %vm2005 = vcmp.eq.f32.partialorder %v2004, 8.507059e+37
        %v2006 = vand.u32 %v1919, 2147483648
        %v2007 = vor.u32 1.1754944e-38, %v2006
        %v2008 = vsel %vm2005, %v2007, %v2003
        %v2009 = vmul.f32 %v1901, %v2008
        %2010 = vrot.lane.b32.xlu0 %v944, 64
        %v2011 = vpop.permute.xlu0 %2010
        %2012 = vrot.lane.b32.xlu0 %v947, 64
        %v2013 = vpop.permute.xlu0 %2012
        %2014 = vrot.lane.b32.xlu0 %v950, 64
        %v2015 = vpop.permute.xlu0 %2014
        %v2020 = vsel %vm1083, %v1934, 0
        %v2023 = vsel %vm1083, %v1949, 0
        %v2026 = vsel %vm1083, %v1964, 0
        %2028 = vmatpush.msra.mxu0 0.0
        %2029 = vmatpush.msra.mxu0 0.0
        %2030 = vmatpush.msra.mxu0 0.0
        %2031 = vmatpush.msra.mxu0 0.0
        %2032 = vmatpush.msra.mxu0 0.0
        %2033 = vmatpush.msra.mxu0 0.0
        %2034 = vmatpush.msra.mxu0 0.0
        %2035 = vmatpush.msra.mxu0 0.0
        %2036 = vmatpush.msra.mxu0 0.0
        %2037 = vmatpush.msra.mxu0 0.0
        %2038 = vmatpush.msra.mxu0 0.0
        %2039 = vmatpush.msra.mxu0 0.0
        %2040 = vmatpush.msra.mxu0 0.0
        %2041 = vmatpush.msra.mxu0 %v2015
        %2042 = vmatpush.msra.mxu0 %v2013
        %2043 = vmatpush.msra.mxu0 %v2011
        %2044 = vmatmul.f32.gmra.mxu0 %v2020
        %v2045 = vpop.f32.mrf.mxu0
        %v2046 = vadd.f32 0.0, %v2045
        %2047 = vmatmul.f32.gmra.mxu0 %v2023
        %v2048 = vpop.f32.mrf.mxu0
        %v2049 = vadd.f32 0.0, %v2048
        %2050 = vmatmul.f32.gmra.mxu0 %v2026
        %v2051 = vpop.f32.mrf.mxu0
        %v2052 = vadd.f32 0.0, %v2051
        %2053 = vdwg.mxu0
        %2054 = vrot.lane.b32.xlu0 %v953, 64
        %v2055 = vpop.permute.xlu0 %2054
        %2056 = vrot.lane.b32.xlu0 %v956, 64
        %v2057 = vpop.permute.xlu0 %2056
        %2058 = vrot.lane.b32.xlu0 %v959, 64
        %v2059 = vpop.permute.xlu0 %2058
        %v2064 = vsel %vm1083, %v1979, 0
        %v2067 = vsel %vm1083, %v1994, 0
        %v2070 = vsel %vm1083, %v2009, 0
        %2072 = vmatpush.msra.mxu0 0.0
        %2073 = vmatpush.msra.mxu0 0.0
        %2074 = vmatpush.msra.mxu0 0.0
        %2075 = vmatpush.msra.mxu0 0.0
        %2076 = vmatpush.msra.mxu0 0.0
        %2077 = vmatpush.msra.mxu0 0.0
        %2078 = vmatpush.msra.mxu0 0.0
        %2079 = vmatpush.msra.mxu0 0.0
        %2080 = vmatpush.msra.mxu0 0.0
        %2081 = vmatpush.msra.mxu0 0.0
        %2082 = vmatpush.msra.mxu0 0.0
        %2083 = vmatpush.msra.mxu0 0.0
        %2084 = vmatpush.msra.mxu0 0.0
        %2085 = vmatpush.msra.mxu0 %v2059
        %2086 = vmatpush.msra.mxu0 %v2057
        %2087 = vmatpush.msra.mxu0 %v2055
        %2088 = vmatmul.f32.gmra.mxu0 %v2064
        %v2089 = vpop.f32.mrf.mxu0
        %v2090 = vadd.f32 0.0, %v2089
        %2091 = vmatmul.f32.gmra.mxu0 %v2067
        %v2092 = vpop.f32.mrf.mxu0
        %v2093 = vadd.f32 0.0, %v2092
        %2094 = vmatmul.f32.gmra.mxu0 %v2070
        %v2095 = vpop.f32.mrf.mxu0
        %v2096 = vadd.f32 0.0, %v2095
        %2097 = vdwg.mxu0
        %v2099 = vsel %vm980, %v2046, 0
        %v2102 = vsel %vm980, %v2049, 0
        %v2105 = vsel %vm980, %v2052, 0
        %v2108 = vsel %vm980, %v2090, 0
        %v2111 = vsel %vm980, %v2093, 0
        %v2114 = vsel %vm980, %v2096, 0
        %2116 = vmatpush.msra.mxu0 0.0
        %2117 = vmatpush.msra.mxu0 0.0
        %2118 = vmatpush.msra.mxu0 0.0
        %2119 = vmatpush.msra.mxu0 0.0
        %2120 = vmatpush.msra.mxu0 0.0
        %2121 = vmatpush.msra.mxu0 0.0
        %2122 = vmatpush.msra.mxu0 0.0
        %2123 = vmatpush.msra.mxu0 0.0
        %2124 = vmatpush.msra.mxu0 0.0
        %2125 = vmatpush.msra.mxu0 0.0
        %2126 = vmatpush.msra.mxu0 0.0
        %2127 = vmatpush.msra.mxu0 0.0
        %2128 = vmatpush.msra.mxu0 %v972
        %2129 = vmatpush.msra.mxu0 %v971
        %2130 = vmatpush.msra.mxu0 %v970
        %2131 = vmatpush.msra.mxu0 %v969
        %2132 = vmatmul.f32.gmra.mxu0 %v2099
        %v2133 = vpop.f32.mrf.mxu0
        %v2134 = vadd.f32 0.0, %v2133
        %2135 = vmatmul.f32.gmra.mxu0 %v2102
        %v2136 = vpop.f32.mrf.mxu0
        %v2137 = vadd.f32 0.0, %v2136
        %2138 = vmatmul.f32.gmra.mxu0 %v2105
        %v2139 = vpop.f32.mrf.mxu0
        %v2140 = vadd.f32 0.0, %v2139
        %2141 = vmatmul.f32.gmra.mxu0 %v2108
        %v2142 = vpop.f32.mrf.mxu0
        %v2143 = vadd.f32 0.0, %v2142
        %2144 = vmatmul.f32.gmra.mxu0 %v2111
        %v2145 = vpop.f32.mrf.mxu0
        %v2146 = vadd.f32 0.0, %v2145
        %2147 = vmatmul.f32.gmra.mxu0 %v2114
        %v2148 = vpop.f32.mrf.mxu0
        %v2149 = vadd.f32 0.0, %v2148
        %2150 = vdwg.mxu0
        %v2151 = vadd.f32 %v1737, %v2134
        %v2152 = vadd.f32 %v1740, %v2137
        %v2153 = vadd.f32 %v1743, %v2140
        %v2154 = vadd.f32 %v1746, %v2143
        %v2155 = vadd.f32 %v1749, %v2146
        %v2156 = vadd.f32 %v1752, %v2149
        %2157 = vrot.lane.b32.xlu0 %v874, 32
        %v2158 = vpop.permute.xlu0 %2157
        %2159 = vrot.lane.b32.xlu0 %v877, 32
        %v2160 = vpop.permute.xlu0 %2159
        %2161 = vrot.lane.b32.xlu0 %v880, 32
        %v2162 = vpop.permute.xlu0 %2161
        %2163 = vrot.lane.b32.xlu0 %v909, 32
        %v2164 = vpop.permute.xlu0 %2163
        %2165 = vrot.lane.b32.xlu0 %v912, 32
        %v2166 = vpop.permute.xlu0 %2165
        %2167 = vrot.lane.b32.xlu0 %v915, 32
        %v2168 = vpop.permute.xlu0 %2167
        %v2169 = vsel %vm980, %v2158, 0
        %v2171 = vsel %vm980, %v2160, 0
        %v2173 = vsel %vm980, %v2162, 0
        %v2175 = vsel %vm980, %v2164, 0
        %v2177 = vsel %vm980, %v2166, 0
        %v2179 = vsel %vm980, %v2168, 0
        %2181 = vmatpush.xpose.msra.mxu0 0.0
        %2182 = vmatpush.xpose.msra.mxu0 0.0
        %2183 = vmatpush.xpose.msra.mxu0 0.0
        %2184 = vmatpush.xpose.msra.mxu0 0.0
        %2185 = vmatpush.xpose.msra.mxu0 0.0
        %2186 = vmatpush.xpose.msra.mxu0 0.0
        %2187 = vmatpush.xpose.msra.mxu0 0.0
        %2188 = vmatpush.xpose.msra.mxu0 0.0
        %2189 = vmatpush.xpose.msra.mxu0 0.0
        %2190 = vmatpush.xpose.msra.mxu0 0.0
        %2191 = vmatpush.xpose.msra.mxu0 0.0
        %2192 = vmatpush.xpose.msra.mxu0 0.0
        %2193 = vmatpush.xpose.msra.mxu0 0.0
        %2194 = vmatpush.xpose.msra.mxu0 %v2179
        %2195 = vmatpush.xpose.msra.mxu0 %v2177
        %2196 = vmatpush.xpose.msra.mxu0 %v2175
        %2197 = vmatmul.f32.gmra.mxu0 %v2169
        %v2198 = vpop.f32.mrf.mxu0
        %v2199 = vadd.f32 0.0, %v2198
        %2200 = vmatmul.f32.gmra.mxu0 %v2171
        %v2201 = vpop.f32.mrf.mxu0
        %v2202 = vadd.f32 0.0, %v2201
        %2203 = vmatmul.f32.gmra.mxu0 %v2173
        %v2204 = vpop.f32.mrf.mxu0
        %v2205 = vadd.f32 0.0, %v2204
        %2206 = vdwg.mxu0
        %2207 = vrot.lane.b32.xlu0 %v883, 32
        %v2208 = vpop.permute.xlu0 %2207
        %2209 = vrot.lane.b32.xlu0 %v886, 32
        %v2210 = vpop.permute.xlu0 %2209
        %2211 = vrot.lane.b32.xlu0 %v889, 32
        %v2212 = vpop.permute.xlu0 %2211
        %2213 = vrot.lane.b32.xlu0 %v918, 32
        %v2214 = vpop.permute.xlu0 %2213
        %2215 = vrot.lane.b32.xlu0 %v921, 32
        %v2216 = vpop.permute.xlu0 %2215
        %2217 = vrot.lane.b32.xlu0 %v924, 32
        %v2218 = vpop.permute.xlu0 %2217
        %v2219 = vsel %vm980, %v2208, 0
        %v2221 = vsel %vm980, %v2210, 0
        %v2223 = vsel %vm980, %v2212, 0
        %v2225 = vsel %vm980, %v2214, 0
        %v2227 = vsel %vm980, %v2216, 0
        %v2229 = vsel %vm980, %v2218, 0
        %2231 = vmatpush.xpose.msra.mxu0 0.0
        %2232 = vmatpush.xpose.msra.mxu0 0.0
        %2233 = vmatpush.xpose.msra.mxu0 0.0
        %2234 = vmatpush.xpose.msra.mxu0 0.0
        %2235 = vmatpush.xpose.msra.mxu0 0.0
        %2236 = vmatpush.xpose.msra.mxu0 0.0
        %2237 = vmatpush.xpose.msra.mxu0 0.0
        %2238 = vmatpush.xpose.msra.mxu0 0.0
        %2239 = vmatpush.xpose.msra.mxu0 0.0
        %2240 = vmatpush.xpose.msra.mxu0 0.0
        %2241 = vmatpush.xpose.msra.mxu0 0.0
        %2242 = vmatpush.xpose.msra.mxu0 0.0
        %2243 = vmatpush.xpose.msra.mxu0 0.0
        %2244 = vmatpush.xpose.msra.mxu0 %v2229
        %2245 = vmatpush.xpose.msra.mxu0 %v2227
        %2246 = vmatpush.xpose.msra.mxu0 %v2225
        %2247 = vmatmul.f32.gmra.mxu0 %v2219
        %v2248 = vpop.f32.mrf.mxu0
        %v2249 = vadd.f32 0.0, %v2248
        %2250 = vmatmul.f32.gmra.mxu0 %v2221
        %v2251 = vpop.f32.mrf.mxu0
        %v2252 = vadd.f32 0.0, %v2251
        %2253 = vmatmul.f32.gmra.mxu0 %v2223
        %v2254 = vpop.f32.mrf.mxu0
        %v2255 = vadd.f32 0.0, %v2254
        %2256 = vdwg.mxu0
        %v2257 = vmul.f32 %v2199, 0.17677669
        %v2258 = vmul.f32 %v2202, 0.17677669
        %v2259 = vmul.f32 %v2205, 0.17677669
        %v2260 = vmul.f32 %v2249, 0.17677669
        %v2261 = vmul.f32 %v2252, 0.17677669
        %v2262 = vmul.f32 %v2255, 0.17677669
        %v2263 = vsel %vm1076, %v2257, -1e+30
        %v2264 = vsel %vm1076, %v2258, -1e+30
        %v2265 = vsel %vm1076, %v2259, -1e+30
        %v2266 = vsel %vm1076, %v2260, -1e+30
        %v2267 = vsel %vm1076, %v2261, -1e+30
        %v2268 = vsel %vm1076, %v2262, -1e+30
        %v2269 = vsel %vm1083, %v2263, -inf
        %2270 = vmax.xlane.f32.xlu0 %v2269
        %v2271 = vpop.xlane.xlu0 %2270
        %v2272 = vsel %vm1083, %v2264, -inf
        %2273 = vmax.xlane.f32.xlu0 %v2272
        %v2274 = vpop.xlane.xlu0 %2273
        %v2275 = vsel %vm1083, %v2265, -inf
        %2276 = vmax.xlane.f32.xlu0 %v2275
        %v2277 = vpop.xlane.xlu0 %2276
        %v2278 = vsel %vm1083, %v2266, -inf
        %2279 = vmax.xlane.f32.xlu0 %v2278
        %v2280 = vpop.xlane.xlu0 %2279
        %v2281 = vsel %vm1083, %v2267, -inf
        %2282 = vmax.xlane.f32.xlu0 %v2281
        %v2283 = vpop.xlane.xlu0 %2282
        %v2284 = vsel %vm1083, %v2268, -inf
        %2285 = vmax.xlane.f32.xlu0 %v2284
        %v2286 = vpop.xlane.xlu0 %2285
        %v2287 = vsub.f32 %v2263, %v2271
        %v2288 = vsub.f32 %v2264, %v2274
        %v2289 = vsub.f32 %v2265, %v2277
        %v2290 = vsub.f32 %v2266, %v2280
        %v2291 = vsub.f32 %v2267, %v2283
        %v2292 = vsub.f32 %v2268, %v2286
        %v2293 = vmul.f32 %v2287, 1.442695
        %v2294 = vpow.pop %v2293
        %v2295 = vmul.f32 %v2288, 1.442695
        %v2296 = vpow.pop %v2295
        %v2297 = vmul.f32 %v2289, 1.442695
        %v2298 = vpow.pop %v2297
        %v2299 = vmul.f32 %v2290, 1.442695
        %v2300 = vpow.pop %v2299
        %v2301 = vmul.f32 %v2291, 1.442695
        %v2302 = vpow.pop %v2301
        %v2303 = vmul.f32 %v2292, 1.442695
        %v2304 = vpow.pop %v2303
        %v2305 = vsel %vm1083, %v2294, 0.0
        %2306 = vadd.xlane.f32.xlu0 %v2305
        %v2307 = vpop.xlane.xlu0 %2306
        %v2308 = vsel %vm1083, %v2296, 0.0
        %2309 = vadd.xlane.f32.xlu0 %v2308
        %v2310 = vpop.xlane.xlu0 %2309
        %v2311 = vsel %vm1083, %v2298, 0.0
        %2312 = vadd.xlane.f32.xlu0 %v2311
        %v2313 = vpop.xlane.xlu0 %2312
        %v2314 = vsel %vm1083, %v2300, 0.0
        %2315 = vadd.xlane.f32.xlu0 %v2314
        %v2316 = vpop.xlane.xlu0 %2315
        %v2317 = vsel %vm1083, %v2302, 0.0
        %2318 = vadd.xlane.f32.xlu0 %v2317
        %v2319 = vpop.xlane.xlu0 %2318
        %v2320 = vsel %vm1083, %v2304, 0.0
        %2321 = vadd.xlane.f32.xlu0 %v2320
        %v2322 = vpop.xlane.xlu0 %2321
        %v2323 = vrcp.pop %v2307
        %v2324 = vmul.f32 %v2307, %v2323
        %v2325 = vsub.f32 1.0, %v2324
        %v2326 = vmul.f32 %v2323, %v2325
        %v2327 = vadd.f32 %v2323, %v2326
        %vm2328 = vweird.f32 %v2307
        %vm2329 = vweird.f32 %v2323
        %vm2330 = vmor %vm2328, %vm2329
        %v2331 = vsel %vm2330, %v2323, %v2327
        %v2332 = vand.u32 2147483647, %v2307
        %vm2333 = vcmp.eq.f32.partialorder %v2332, 8.507059e+37
        %v2334 = vand.u32 %v2307, 2147483648
        %v2335 = vor.u32 1.1754944e-38, %v2334
        %v2336 = vsel %vm2333, %v2335, %v2331
        %v2337 = vmul.f32 %v2294, %v2336
        %v2338 = vrcp.pop %v2310
        %v2339 = vmul.f32 %v2310, %v2338
        %v2340 = vsub.f32 1.0, %v2339
        %v2341 = vmul.f32 %v2338, %v2340
        %v2342 = vadd.f32 %v2338, %v2341
        %vm2343 = vweird.f32 %v2310
        %vm2344 = vweird.f32 %v2338
        %vm2345 = vmor %vm2343, %vm2344
        %v2346 = vsel %vm2345, %v2338, %v2342
        %v2347 = vand.u32 2147483647, %v2310
        %vm2348 = vcmp.eq.f32.partialorder %v2347, 8.507059e+37
        %v2349 = vand.u32 %v2310, 2147483648
        %v2350 = vor.u32 1.1754944e-38, %v2349
        %v2351 = vsel %vm2348, %v2350, %v2346
        %v2352 = vmul.f32 %v2296, %v2351
        %v2353 = vrcp.pop %v2313
        %v2354 = vmul.f32 %v2313, %v2353
        %v2355 = vsub.f32 1.0, %v2354
        %v2356 = vmul.f32 %v2353, %v2355
        %v2357 = vadd.f32 %v2353, %v2356
        %vm2358 = vweird.f32 %v2313
        %vm2359 = vweird.f32 %v2353
        %vm2360 = vmor %vm2358, %vm2359
        %v2361 = vsel %vm2360, %v2353, %v2357
        %v2362 = vand.u32 2147483647, %v2313
        %vm2363 = vcmp.eq.f32.partialorder %v2362, 8.507059e+37
        %v2364 = vand.u32 %v2313, 2147483648
        %v2365 = vor.u32 1.1754944e-38, %v2364
        %v2366 = vsel %vm2363, %v2365, %v2361
        %v2367 = vmul.f32 %v2298, %v2366
        %v2368 = vrcp.pop %v2316
        %v2369 = vmul.f32 %v2316, %v2368
        %v2370 = vsub.f32 1.0, %v2369
        %v2371 = vmul.f32 %v2368, %v2370
        %v2372 = vadd.f32 %v2368, %v2371
        %vm2373 = vweird.f32 %v2316
        %vm2374 = vweird.f32 %v2368
        %vm2375 = vmor %vm2373, %vm2374
        %v2376 = vsel %vm2375, %v2368, %v2372
        %v2377 = vand.u32 2147483647, %v2316
        %vm2378 = vcmp.eq.f32.partialorder %v2377, 8.507059e+37
        %v2379 = vand.u32 %v2316, 2147483648
        %v2380 = vor.u32 1.1754944e-38, %v2379
        %v2381 = vsel %vm2378, %v2380, %v2376
        %v2382 = vmul.f32 %v2300, %v2381
        %v2383 = vrcp.pop %v2319
        %v2384 = vmul.f32 %v2319, %v2383
        %v2385 = vsub.f32 1.0, %v2384
        %v2386 = vmul.f32 %v2383, %v2385
        %v2387 = vadd.f32 %v2383, %v2386
        %vm2388 = vweird.f32 %v2319
        %vm2389 = vweird.f32 %v2383
        %vm2390 = vmor %vm2388, %vm2389
        %v2391 = vsel %vm2390, %v2383, %v2387
        %v2392 = vand.u32 2147483647, %v2319
        %vm2393 = vcmp.eq.f32.partialorder %v2392, 8.507059e+37
        %v2394 = vand.u32 %v2319, 2147483648
        %v2395 = vor.u32 1.1754944e-38, %v2394
        %v2396 = vsel %vm2393, %v2395, %v2391
        %v2397 = vmul.f32 %v2302, %v2396
        %v2398 = vrcp.pop %v2322
        %v2399 = vmul.f32 %v2322, %v2398
        %v2400 = vsub.f32 1.0, %v2399
        %v2401 = vmul.f32 %v2398, %v2400
        %v2402 = vadd.f32 %v2398, %v2401
        %vm2403 = vweird.f32 %v2322
        %vm2404 = vweird.f32 %v2398
        %vm2405 = vmor %vm2403, %vm2404
        %v2406 = vsel %vm2405, %v2398, %v2402
        %v2407 = vand.u32 2147483647, %v2322
        %vm2408 = vcmp.eq.f32.partialorder %v2407, 8.507059e+37
        %v2409 = vand.u32 %v2322, 2147483648
        %v2410 = vor.u32 1.1754944e-38, %v2409
        %v2411 = vsel %vm2408, %v2410, %v2406
        %v2412 = vmul.f32 %v2304, %v2411
        %2413 = vrot.lane.b32.xlu0 %v944, 32
        %v2414 = vpop.permute.xlu0 %2413
        %2415 = vrot.lane.b32.xlu0 %v947, 32
        %v2416 = vpop.permute.xlu0 %2415
        %2417 = vrot.lane.b32.xlu0 %v950, 32
        %v2418 = vpop.permute.xlu0 %2417
        %v2423 = vsel %vm1083, %v2337, 0
        %v2426 = vsel %vm1083, %v2352, 0
        %v2429 = vsel %vm1083, %v2367, 0
        %2431 = vmatpush.msra.mxu0 0.0
        %2432 = vmatpush.msra.mxu0 0.0
        %2433 = vmatpush.msra.mxu0 0.0
        %2434 = vmatpush.msra.mxu0 0.0
        %2435 = vmatpush.msra.mxu0 0.0
        %2436 = vmatpush.msra.mxu0 0.0
        %2437 = vmatpush.msra.mxu0 0.0
        %2438 = vmatpush.msra.mxu0 0.0
        %2439 = vmatpush.msra.mxu0 0.0
        %2440 = vmatpush.msra.mxu0 0.0
        %2441 = vmatpush.msra.mxu0 0.0
        %2442 = vmatpush.msra.mxu0 0.0
        %2443 = vmatpush.msra.mxu0 0.0
        %2444 = vmatpush.msra.mxu0 %v2418
        %2445 = vmatpush.msra.mxu0 %v2416
        %2446 = vmatpush.msra.mxu0 %v2414
        %2447 = vmatmul.f32.gmra.mxu0 %v2423
        %v2448 = vpop.f32.mrf.mxu0
        %v2449 = vadd.f32 0.0, %v2448
        %2450 = vmatmul.f32.gmra.mxu0 %v2426
        %v2451 = vpop.f32.mrf.mxu0
        %v2452 = vadd.f32 0.0, %v2451
        %2453 = vmatmul.f32.gmra.mxu0 %v2429
        %v2454 = vpop.f32.mrf.mxu0
        %v2455 = vadd.f32 0.0, %v2454
        %2456 = vdwg.mxu0
        %2457 = vrot.lane.b32.xlu0 %v953, 32
        %v2458 = vpop.permute.xlu0 %2457
        %2459 = vrot.lane.b32.xlu0 %v956, 32
        %v2460 = vpop.permute.xlu0 %2459
        %2461 = vrot.lane.b32.xlu0 %v959, 32
        %v2462 = vpop.permute.xlu0 %2461
        %v2467 = vsel %vm1083, %v2382, 0
        %v2470 = vsel %vm1083, %v2397, 0
        %v2473 = vsel %vm1083, %v2412, 0
        %2475 = vmatpush.msra.mxu0 0.0
        %2476 = vmatpush.msra.mxu0 0.0
        %2477 = vmatpush.msra.mxu0 0.0
        %2478 = vmatpush.msra.mxu0 0.0
        %2479 = vmatpush.msra.mxu0 0.0
        %2480 = vmatpush.msra.mxu0 0.0
        %2481 = vmatpush.msra.mxu0 0.0
        %2482 = vmatpush.msra.mxu0 0.0
        %2483 = vmatpush.msra.mxu0 0.0
        %2484 = vmatpush.msra.mxu0 0.0
        %2485 = vmatpush.msra.mxu0 0.0
        %2486 = vmatpush.msra.mxu0 0.0
        %2487 = vmatpush.msra.mxu0 0.0
        %2488 = vmatpush.msra.mxu0 %v2462
        %2489 = vmatpush.msra.mxu0 %v2460
        %2490 = vmatpush.msra.mxu0 %v2458
        %2491 = vmatmul.f32.gmra.mxu0 %v2467
        %v2492 = vpop.f32.mrf.mxu0
        %v2493 = vadd.f32 0.0, %v2492
        %2494 = vmatmul.f32.gmra.mxu0 %v2470
        %v2495 = vpop.f32.mrf.mxu0
        %v2496 = vadd.f32 0.0, %v2495
        %2497 = vmatmul.f32.gmra.mxu0 %v2473
        %v2498 = vpop.f32.mrf.mxu0
        %v2499 = vadd.f32 0.0, %v2498
        %2500 = vdwg.mxu0
        %v2502 = vsel %vm980, %v2449, 0
        %v2505 = vsel %vm980, %v2452, 0
        %v2508 = vsel %vm980, %v2455, 0
        %v2511 = vsel %vm980, %v2493, 0
        %v2514 = vsel %vm980, %v2496, 0
        %v2517 = vsel %vm980, %v2499, 0
        %2519 = vmatpush.msra.mxu0 0.0
        %2520 = vmatpush.msra.mxu0 0.0
        %2521 = vmatpush.msra.mxu0 0.0
        %2522 = vmatpush.msra.mxu0 0.0
        %2523 = vmatpush.msra.mxu0 0.0
        %2524 = vmatpush.msra.mxu0 0.0
        %2525 = vmatpush.msra.mxu0 0.0
        %2526 = vmatpush.msra.mxu0 0.0
        %2527 = vmatpush.msra.mxu0 0.0
        %2528 = vmatpush.msra.mxu0 0.0
        %2529 = vmatpush.msra.mxu0 0.0
        %2530 = vmatpush.msra.mxu0 0.0
        %2531 = vmatpush.msra.mxu0 %v976
        %2532 = vmatpush.msra.mxu0 %v975
        %2533 = vmatpush.msra.mxu0 %v974
        %2534 = vmatpush.msra.mxu0 %v973
        %2535 = vmatmul.f32.gmra.mxu0 %v2502
        %v2536 = vpop.f32.mrf.mxu0
        %v2537 = vadd.f32 0.0, %v2536
        %2538 = vmatmul.f32.gmra.mxu0 %v2505
        %v2539 = vpop.f32.mrf.mxu0
        %v2540 = vadd.f32 0.0, %v2539
        %2541 = vmatmul.f32.gmra.mxu0 %v2508
        %v2542 = vpop.f32.mrf.mxu0
        %v2543 = vadd.f32 0.0, %v2542
        %2544 = vmatmul.f32.gmra.mxu0 %v2511
        %v2545 = vpop.f32.mrf.mxu0
        %v2546 = vadd.f32 0.0, %v2545
        %2547 = vmatmul.f32.gmra.mxu0 %v2514
        %v2548 = vpop.f32.mrf.mxu0
        %v2549 = vadd.f32 0.0, %v2548
        %2550 = vmatmul.f32.gmra.mxu0 %v2517
        %v2551 = vpop.f32.mrf.mxu0
        %v2552 = vadd.f32 0.0, %v2551
        %2553 = vdwg.mxu0
        %v2554 = vadd.f32 %v2151, %v2537
        %v2555 = vadd.f32 %v2152, %v2540
        %v2556 = vadd.f32 %v2153, %v2543
        %v2557 = vadd.f32 %v2154, %v2546
        %v2558 = vadd.f32 %v2155, %v2549
        %v2559 = vadd.f32 %v2156, %v2552
        %v2560 = vadd.f32 %v647, %v2554
        %v2561 = vadd.f32 %v648, %v2555
        %v2562 = vadd.f32 %v649, %v2556
        %v2563 = vadd.f32 %v650, %v2557
        %v2564 = vadd.f32 %v651, %v2558
        %v2565 = vadd.f32 %v652, %v2559
        %v2566 = vld [vmem:[%s607] sm:$0x1]
        %v2568 = vperm.slane %v2566, 0
        %v2570 = vadd.f32 %v2560, %v2568
        %v2571 = vadd.f32 %v2561, %v2568
        %v2572 = vadd.f32 %v2562, %v2568
        %v2573 = vadd.f32 %v2563, %v2568
        %v2574 = vadd.f32 %v2564, %v2568
        %v2575 = vadd.f32 %v2565, %v2568
        %2576 = vadd.xlane.f32.xlu0 %v2570
        %v2577 = vpop.xlane.xlu0 %2576
        %2578 = vadd.xlane.f32.xlu0 %v2571
        %v2579 = vpop.xlane.xlu0 %2578
        %2580 = vadd.xlane.f32.xlu0 %v2572
        %v2581 = vpop.xlane.xlu0 %2580
        %2582 = vadd.xlane.f32.xlu0 %v2573
        %v2583 = vpop.xlane.xlu0 %2582
        %2584 = vadd.xlane.f32.xlu0 %v2574
        %v2585 = vpop.xlane.xlu0 %2584
        %2586 = vadd.xlane.f32.xlu0 %v2575
        %v2587 = vpop.xlane.xlu0 %2586
        %v2588 = vmul.f32 %v2577, %v673
        %v2589 = vmul.f32 %v2579, %v673
        %v2590 = vmul.f32 %v2581, %v673
        %v2591 = vmul.f32 %v2583, %v673
        %v2592 = vmul.f32 %v2585, %v673
        %v2593 = vmul.f32 %v2587, %v673
        %v2594 = vsub.f32 %v2570, %v2588
        %v2595 = vsub.f32 %v2571, %v2589
        %v2596 = vsub.f32 %v2572, %v2590
        %v2597 = vsub.f32 %v2573, %v2591
        %v2598 = vsub.f32 %v2574, %v2592
        %v2599 = vsub.f32 %v2575, %v2593
        %v2600 = vmul.f32 %v2594, %v2594
        %v2601 = vmul.f32 %v2595, %v2595
        %v2602 = vmul.f32 %v2596, %v2596
        %v2603 = vmul.f32 %v2597, %v2597
        %v2604 = vmul.f32 %v2598, %v2598
        %v2605 = vmul.f32 %v2599, %v2599
        %2606 = vadd.xlane.f32.xlu0 %v2600
        %v2607 = vpop.xlane.xlu0 %2606
        %2608 = vadd.xlane.f32.xlu0 %v2601
        %v2609 = vpop.xlane.xlu0 %2608
        %2610 = vadd.xlane.f32.xlu0 %v2602
        %v2611 = vpop.xlane.xlu0 %2610
        %2612 = vadd.xlane.f32.xlu0 %v2603
        %v2613 = vpop.xlane.xlu0 %2612
        %2614 = vadd.xlane.f32.xlu0 %v2604
        %v2615 = vpop.xlane.xlu0 %2614
        %2616 = vadd.xlane.f32.xlu0 %v2605
        %v2617 = vpop.xlane.xlu0 %2616
        %v2618 = vmul.f32 %v2607, %v673
        %v2619 = vmul.f32 %v2609, %v673
        %v2620 = vmul.f32 %v2611, %v673
        %v2621 = vmul.f32 %v2613, %v673
        %v2622 = vmul.f32 %v2615, %v673
        %v2623 = vmul.f32 %v2617, %v673
        %v2624 = vadd.f32 %v2618, 1e-05
        %v2625 = vadd.f32 %v2619, 1e-05
        %v2626 = vadd.f32 %v2620, 1e-05
        %v2627 = vadd.f32 %v2621, 1e-05
        %v2628 = vadd.f32 %v2622, 1e-05
        %v2629 = vadd.f32 %v2623, 1e-05
        %v2630 = vrsqrt.pop %v2624
        %v2631 = vmul.f32 %v2630, %v2624
        %v2632 = vmul.f32 %v2631, %v2630
        %v2633 = vmul.f32 0.5, %v2632
        %v2634 = vsub.f32 1.5, %v2633
        %v2635 = vmul.f32 %v2630, %v2634
        %vm2636 = vweird.f32 %v2624
        %vm2637 = vweird.f32 %v2630
        %vm2638 = vmor %vm2636, %vm2637
        %v2639 = vsel %vm2638, %v2630, %v2635
        %v2640 = vrsqrt.pop %v2625
        %v2641 = vmul.f32 %v2640, %v2625
        %v2642 = vmul.f32 %v2641, %v2640
        %v2643 = vmul.f32 0.5, %v2642
        %v2644 = vsub.f32 1.5, %v2643
        %v2645 = vmul.f32 %v2640, %v2644
        %vm2646 = vweird.f32 %v2625
        %vm2647 = vweird.f32 %v2640
        %vm2648 = vmor %vm2646, %vm2647
        %v2649 = vsel %vm2648, %v2640, %v2645
        %v2650 = vrsqrt.pop %v2626
        %v2651 = vmul.f32 %v2650, %v2626
        %v2652 = vmul.f32 %v2651, %v2650
        %v2653 = vmul.f32 0.5, %v2652
        %v2654 = vsub.f32 1.5, %v2653
        %v2655 = vmul.f32 %v2650, %v2654
        %vm2656 = vweird.f32 %v2626
        %vm2657 = vweird.f32 %v2650
        %vm2658 = vmor %vm2656, %vm2657
        %v2659 = vsel %vm2658, %v2650, %v2655
        %v2660 = vrsqrt.pop %v2627
        %v2661 = vmul.f32 %v2660, %v2627
        %v2662 = vmul.f32 %v2661, %v2660
        %v2663 = vmul.f32 0.5, %v2662
        %v2664 = vsub.f32 1.5, %v2663
        %v2665 = vmul.f32 %v2660, %v2664
        %vm2666 = vweird.f32 %v2627
        %vm2667 = vweird.f32 %v2660
        %vm2668 = vmor %vm2666, %vm2667
        %v2669 = vsel %vm2668, %v2660, %v2665
        %v2670 = vrsqrt.pop %v2628
        %v2671 = vmul.f32 %v2670, %v2628
        %v2672 = vmul.f32 %v2671, %v2670
        %v2673 = vmul.f32 0.5, %v2672
        %v2674 = vsub.f32 1.5, %v2673
        %v2675 = vmul.f32 %v2670, %v2674
        %vm2676 = vweird.f32 %v2628
        %vm2677 = vweird.f32 %v2670
        %vm2678 = vmor %vm2676, %vm2677
        %v2679 = vsel %vm2678, %v2670, %v2675
        %v2680 = vrsqrt.pop %v2629
        %v2681 = vmul.f32 %v2680, %v2629
        %v2682 = vmul.f32 %v2681, %v2680
        %v2683 = vmul.f32 0.5, %v2682
        %v2684 = vsub.f32 1.5, %v2683
        %v2685 = vmul.f32 %v2680, %v2684
        %vm2686 = vweird.f32 %v2629
        %vm2687 = vweird.f32 %v2680
        %vm2688 = vmor %vm2686, %vm2687
        %v2689 = vsel %vm2688, %v2680, %v2685
        %v2690 = vmul.f32 %v2594, %v2639
        %v2691 = vmul.f32 %v2595, %v2649
        %v2692 = vmul.f32 %v2596, %v2659
        %v2693 = vmul.f32 %v2597, %v2669
        %v2694 = vmul.f32 %v2598, %v2679
        %v2695 = vmul.f32 %v2599, %v2689
        %v2696 = vmul.f32 %v2690, %v783
        %v2697 = vmul.f32 %v2691, %v783
        %v2698 = vmul.f32 %v2692, %v783
        %v2699 = vmul.f32 %v2693, %v783
        %v2700 = vmul.f32 %v2694, %v783
        %v2701 = vmul.f32 %v2695, %v783
        %v2702 = vadd.f32 %v2696, %v792
        %v2703 = vadd.f32 %v2697, %v792
        %v2704 = vadd.f32 %v2698, %v792
        %v2705 = vadd.f32 %v2699, %v792
        %v2706 = vadd.f32 %v2700, %v792
        %v2707 = vadd.f32 %v2701, %v792
        %v2708 = vld [vmem:[%s610] sm:$0x1]
        %v2709 = vld [vmem:[%s613] sm:$0x1]
        %2710 = vadd.xlane.f32.xlu0 %v2702
        %v2711 = vpop.xlane.xlu0 %2710
        %2712 = vadd.xlane.f32.xlu0 %v2703
        %v2713 = vpop.xlane.xlu0 %2712
        %2714 = vadd.xlane.f32.xlu0 %v2704
        %v2715 = vpop.xlane.xlu0 %2714
        %2716 = vadd.xlane.f32.xlu0 %v2705
        %v2717 = vpop.xlane.xlu0 %2716
        %2718 = vadd.xlane.f32.xlu0 %v2706
        %v2719 = vpop.xlane.xlu0 %2718
        %2720 = vadd.xlane.f32.xlu0 %v2707
        %v2721 = vpop.xlane.xlu0 %2720
        %v2722 = vmul.f32 %v2711, %v673
        %v2723 = vmul.f32 %v2713, %v673
        %v2724 = vmul.f32 %v2715, %v673
        %v2725 = vmul.f32 %v2717, %v673
        %v2726 = vmul.f32 %v2719, %v673
        %v2727 = vmul.f32 %v2721, %v673
        %v2728 = vsub.f32 %v2702, %v2722
        %v2729 = vsub.f32 %v2703, %v2723
        %v2730 = vsub.f32 %v2704, %v2724
        %v2731 = vsub.f32 %v2705, %v2725
        %v2732 = vsub.f32 %v2706, %v2726
        %v2733 = vsub.f32 %v2707, %v2727
        %v2734 = vmul.f32 %v2728, %v2728
        %v2735 = vmul.f32 %v2729, %v2729
        %v2736 = vmul.f32 %v2730, %v2730
        %v2737 = vmul.f32 %v2731, %v2731
        %v2738 = vmul.f32 %v2732, %v2732
        %v2739 = vmul.f32 %v2733, %v2733
        %2740 = vadd.xlane.f32.xlu0 %v2734
        %v2741 = vpop.xlane.xlu0 %2740
        %2742 = vadd.xlane.f32.xlu0 %v2735
        %v2743 = vpop.xlane.xlu0 %2742
        %2744 = vadd.xlane.f32.xlu0 %v2736
        %v2745 = vpop.xlane.xlu0 %2744
        %2746 = vadd.xlane.f32.xlu0 %v2737
        %v2747 = vpop.xlane.xlu0 %2746
        %2748 = vadd.xlane.f32.xlu0 %v2738
        %v2749 = vpop.xlane.xlu0 %2748
        %2750 = vadd.xlane.f32.xlu0 %v2739
        %v2751 = vpop.xlane.xlu0 %2750
        %v2752 = vmul.f32 %v2741, %v673
        %v2753 = vmul.f32 %v2743, %v673
        %v2754 = vmul.f32 %v2745, %v673
        %v2755 = vmul.f32 %v2747, %v673
        %v2756 = vmul.f32 %v2749, %v673
        %v2757 = vmul.f32 %v2751, %v673
        %v2758 = vadd.f32 %v2752, 1e-05
        %v2759 = vadd.f32 %v2753, 1e-05
        %v2760 = vadd.f32 %v2754, 1e-05
        %v2761 = vadd.f32 %v2755, 1e-05
        %v2762 = vadd.f32 %v2756, 1e-05
        %v2763 = vadd.f32 %v2757, 1e-05
        %v2764 = vrsqrt.pop %v2758
        %v2765 = vmul.f32 %v2764, %v2758
        %v2766 = vmul.f32 %v2765, %v2764
        %v2767 = vmul.f32 0.5, %v2766
        %v2768 = vsub.f32 1.5, %v2767
        %v2769 = vmul.f32 %v2764, %v2768
        %vm2770 = vweird.f32 %v2758
        %vm2771 = vweird.f32 %v2764
        %vm2772 = vmor %vm2770, %vm2771
        %v2773 = vsel %vm2772, %v2764, %v2769
        %v2774 = vrsqrt.pop %v2759
        %v2775 = vmul.f32 %v2774, %v2759
        %v2776 = vmul.f32 %v2775, %v2774
        %v2777 = vmul.f32 0.5, %v2776
        %v2778 = vsub.f32 1.5, %v2777
        %v2779 = vmul.f32 %v2774, %v2778
        %vm2780 = vweird.f32 %v2759
        %vm2781 = vweird.f32 %v2774
        %vm2782 = vmor %vm2780, %vm2781
        %v2783 = vsel %vm2782, %v2774, %v2779
        %v2784 = vrsqrt.pop %v2760
        %v2785 = vmul.f32 %v2784, %v2760
        %v2786 = vmul.f32 %v2785, %v2784
        %v2787 = vmul.f32 0.5, %v2786
        %v2788 = vsub.f32 1.5, %v2787
        %v2789 = vmul.f32 %v2784, %v2788
        %vm2790 = vweird.f32 %v2760
        %vm2791 = vweird.f32 %v2784
        %vm2792 = vmor %vm2790, %vm2791
        %v2793 = vsel %vm2792, %v2784, %v2789
        %v2794 = vrsqrt.pop %v2761
        %v2795 = vmul.f32 %v2794, %v2761
        %v2796 = vmul.f32 %v2795, %v2794
        %v2797 = vmul.f32 0.5, %v2796
        %v2798 = vsub.f32 1.5, %v2797
        %v2799 = vmul.f32 %v2794, %v2798
        %vm2800 = vweird.f32 %v2761
        %vm2801 = vweird.f32 %v2794
        %vm2802 = vmor %vm2800, %vm2801
        %v2803 = vsel %vm2802, %v2794, %v2799
        %v2804 = vrsqrt.pop %v2762
        %v2805 = vmul.f32 %v2804, %v2762
        %v2806 = vmul.f32 %v2805, %v2804
        %v2807 = vmul.f32 0.5, %v2806
        %v2808 = vsub.f32 1.5, %v2807
        %v2809 = vmul.f32 %v2804, %v2808
        %vm2810 = vweird.f32 %v2762
        %vm2811 = vweird.f32 %v2804
        %vm2812 = vmor %vm2810, %vm2811
        %v2813 = vsel %vm2812, %v2804, %v2809
        %v2814 = vrsqrt.pop %v2763
        %v2815 = vmul.f32 %v2814, %v2763
        %v2816 = vmul.f32 %v2815, %v2814
        %v2817 = vmul.f32 0.5, %v2816
        %v2818 = vsub.f32 1.5, %v2817
        %v2819 = vmul.f32 %v2814, %v2818
        %vm2820 = vweird.f32 %v2763
        %vm2821 = vweird.f32 %v2814
        %vm2822 = vmor %vm2820, %vm2821
        %v2823 = vsel %vm2822, %v2814, %v2819
        %v2824 = vmul.f32 %v2728, %v2773
        %v2825 = vmul.f32 %v2729, %v2783
        %v2826 = vmul.f32 %v2730, %v2793
        %v2827 = vmul.f32 %v2731, %v2803
        %v2828 = vmul.f32 %v2732, %v2813
        %v2829 = vmul.f32 %v2733, %v2823
        %v2831 = vperm.slane %v2708, 0
        %v2833 = vmul.f32 %v2824, %v2831
        %v2834 = vmul.f32 %v2825, %v2831
        %v2835 = vmul.f32 %v2826, %v2831
        %v2836 = vmul.f32 %v2827, %v2831
        %v2837 = vmul.f32 %v2828, %v2831
        %v2838 = vmul.f32 %v2829, %v2831
        %v2840 = vperm.slane %v2709, 0
        %v2842 = vadd.f32 %v2833, %v2840
        %v2843 = vadd.f32 %v2834, %v2840
        %v2844 = vadd.f32 %v2835, %v2840
        %v2845 = vadd.f32 %v2836, %v2840
        %v2846 = vadd.f32 %v2837, %v2840
        %v2847 = vadd.f32 %v2838, %v2840
        %v2848 = vld [vmem:[%s618] sm:$0xff]
        %v2849 = vld [vmem:[%s618 + $0x8] sm:$0xff]
        %v2850 = vld [vmem:[%s618 + $0x10] sm:$0xff]
        %v2851 = vld [vmem:[%s618 + $0x18] sm:$0xff]
        %v2852 = vld [vmem:[%s618 + $0x20] sm:$0xff]
        %v2853 = vld [vmem:[%s618 + $0x28] sm:$0xff]
        %v2854 = vld [vmem:[%s618 + $0x30] sm:$0xff]
        %v2855 = vld [vmem:[%s618 + $0x38] sm:$0xff]
        %v2856 = vld [vmem:[%s618 + $0x40] sm:$0xff]
        %v2857 = vld [vmem:[%s618 + $0x48] sm:$0xff]
        %v2858 = vld [vmem:[%s618 + $0x50] sm:$0xff]
        %v2859 = vld [vmem:[%s618 + $0x58] sm:$0xff]
        %v2860 = vld [vmem:[%s618 + $0x60] sm:$0xff]
        %v2861 = vld [vmem:[%s618 + $0x68] sm:$0xff]
        %v2862 = vld [vmem:[%s618 + $0x70] sm:$0xff]
        %v2863 = vld [vmem:[%s618 + $0x78] sm:$0xff]
        %v2864 = vld [vmem:[%s618 + $0x80] sm:$0xff]
        %v2865 = vld [vmem:[%s618 + $0x88] sm:$0xff]
        %v2866 = vld [vmem:[%s618 + $0x90] sm:$0xff]
        %v2867 = vld [vmem:[%s618 + $0x98] sm:$0xff]
        %v2868 = vld [vmem:[%s618 + $0xa0] sm:$0xff]
        %v2869 = vld [vmem:[%s618 + $0xa8] sm:$0xff]
        %v2870 = vld [vmem:[%s618 + $0xb0] sm:$0xff]
        %v2871 = vld [vmem:[%s618 + $0xb8] sm:$0xff]
        %v2872 = vld [vmem:[%s618 + $0xc0] sm:$0xff]
        %v2873 = vld [vmem:[%s618 + $0xc8] sm:$0xff]
        %v2874 = vld [vmem:[%s618 + $0xd0] sm:$0xff]
        %v2875 = vld [vmem:[%s618 + $0xd8] sm:$0xff]
        %v2876 = vld [vmem:[%s618 + $0xe0] sm:$0xff]
        %v2877 = vld [vmem:[%s618 + $0xe8] sm:$0xff]
        %v2878 = vld [vmem:[%s618 + $0xf0] sm:$0xff]
        %v2879 = vld [vmem:[%s618 + $0xf8] sm:$0xff]
        %v2880 = vld [vmem:[%s622] sm:$0x3]
        %v2882 = vperm.slane %v2880, 0
        %v2883 = vperm.slane %v2880, 1
        %2886 = vmatpush.msra.mxu0 %v2878
        %2887 = vmatpush.msra.mxu0 %v2876
        %2888 = vmatpush.msra.mxu0 %v2874
        %2889 = vmatpush.msra.mxu0 %v2872
        %2890 = vmatpush.msra.mxu0 %v2870
        %2891 = vmatpush.msra.mxu0 %v2868
        %2892 = vmatpush.msra.mxu0 %v2866
        %2893 = vmatpush.msra.mxu0 %v2864
        %2894 = vmatpush.msra.mxu0 %v2862
        %2895 = vmatpush.msra.mxu0 %v2860
        %2896 = vmatpush.msra.mxu0 %v2858
        %2897 = vmatpush.msra.mxu0 %v2856
        %2898 = vmatpush.msra.mxu0 %v2854
        %2899 = vmatpush.msra.mxu0 %v2852
        %2900 = vmatpush.msra.mxu0 %v2850
        %2901 = vmatpush.msra.mxu0 %v2848
        %2902 = vmatmul.f32.gmra.mxu0 %v2842
        %v2903 = vpop.f32.mrf.mxu0
        %v2904 = vadd.f32 %v2882, %v2903
        %2905 = vmatmul.f32.gmra.mxu0 %v2843
        %v2906 = vpop.f32.mrf.mxu0
        %v2907 = vadd.f32 %v2882, %v2906
        %2908 = vmatmul.f32.gmra.mxu0 %v2844
        %v2909 = vpop.f32.mrf.mxu0
        %v2910 = vadd.f32 %v2882, %v2909
        %2911 = vmatmul.f32.gmra.mxu0 %v2845
        %v2912 = vpop.f32.mrf.mxu0
        %v2913 = vadd.f32 %v2882, %v2912
        %2914 = vmatmul.f32.gmra.mxu0 %v2846
        %v2915 = vpop.f32.mrf.mxu0
        %v2916 = vadd.f32 %v2882, %v2915
        %2917 = vmatmul.f32.gmra.mxu0 %v2847
        %v2918 = vpop.f32.mrf.mxu0
        %v2919 = vadd.f32 %v2882, %v2918
        %2920 = vdwg.mxu0
        %2921 = vmatpush.msra.mxu0 %v2879
        %2922 = vmatpush.msra.mxu0 %v2877
        %2923 = vmatpush.msra.mxu0 %v2875
        %2924 = vmatpush.msra.mxu0 %v2873
        %2925 = vmatpush.msra.mxu0 %v2871
        %2926 = vmatpush.msra.mxu0 %v2869
        %2927 = vmatpush.msra.mxu0 %v2867
        %2928 = vmatpush.msra.mxu0 %v2865
        %2929 = vmatpush.msra.mxu0 %v2863
        %2930 = vmatpush.msra.mxu0 %v2861
        %2931 = vmatpush.msra.mxu0 %v2859
        %2932 = vmatpush.msra.mxu0 %v2857
        %2933 = vmatpush.msra.mxu0 %v2855
        %2934 = vmatpush.msra.mxu0 %v2853
        %2935 = vmatpush.msra.mxu0 %v2851
        %2936 = vmatpush.msra.mxu0 %v2849
        %2937 = vmatmul.f32.gmra.mxu0 %v2842
        %v2938 = vpop.f32.mrf.mxu0
        %v2939 = vadd.f32 %v2883, %v2938
        %2940 = vmatmul.f32.gmra.mxu0 %v2843
        %v2941 = vpop.f32.mrf.mxu0
        %v2942 = vadd.f32 %v2883, %v2941
        %2943 = vmatmul.f32.gmra.mxu0 %v2844
        %v2944 = vpop.f32.mrf.mxu0
        %v2945 = vadd.f32 %v2883, %v2944
        %2946 = vmatmul.f32.gmra.mxu0 %v2845
        %v2947 = vpop.f32.mrf.mxu0
        %v2948 = vadd.f32 %v2883, %v2947
        %2949 = vmatmul.f32.gmra.mxu0 %v2846
        %v2950 = vpop.f32.mrf.mxu0
        %v2951 = vadd.f32 %v2883, %v2950
        %2952 = vmatmul.f32.gmra.mxu0 %v2847
        %v2953 = vpop.f32.mrf.mxu0
        %v2954 = vadd.f32 %v2883, %v2953
        %2955 = vdwg.mxu0
        %v2956 = vmul.f32 %v2904, 0.5
        %v2957 = vmul.f32 %v2939, 0.5
        %v2958 = vmul.f32 %v2907, 0.5
        %v2959 = vmul.f32 %v2942, 0.5
        %v2960 = vmul.f32 %v2910, 0.5
        %v2961 = vmul.f32 %v2945, 0.5
        %v2962 = vmul.f32 %v2913, 0.5
        %v2963 = vmul.f32 %v2948, 0.5
        %v2964 = vmul.f32 %v2916, 0.5
        %v2965 = vmul.f32 %v2951, 0.5
        %v2966 = vmul.f32 %v2919, 0.5
        %v2967 = vmul.f32 %v2954, 0.5
        %v2968 = vmul.f32 %v2904, 0.044715
        %v2969 = vmul.f32 %v2939, 0.044715
        %v2970 = vmul.f32 %v2907, 0.044715
        %v2971 = vmul.f32 %v2942, 0.044715
        %v2972 = vmul.f32 %v2910, 0.044715
        %v2973 = vmul.f32 %v2945, 0.044715
        %v2974 = vmul.f32 %v2913, 0.044715
        %v2975 = vmul.f32 %v2948, 0.044715
        %v2976 = vmul.f32 %v2916, 0.044715
        %v2977 = vmul.f32 %v2951, 0.044715
        %v2978 = vmul.f32 %v2919, 0.044715
        %v2979 = vmul.f32 %v2954, 0.044715
        %v2980 = vmul.f32 %v2968, %v2904
        %v2981 = vmul.f32 %v2969, %v2939
        %v2982 = vmul.f32 %v2970, %v2907
        %v2983 = vmul.f32 %v2971, %v2942
        %v2984 = vmul.f32 %v2972, %v2910
        %v2985 = vmul.f32 %v2973, %v2945
        %v2986 = vmul.f32 %v2974, %v2913
        %v2987 = vmul.f32 %v2975, %v2948
        %v2988 = vmul.f32 %v2976, %v2916
        %v2989 = vmul.f32 %v2977, %v2951
        %v2990 = vmul.f32 %v2978, %v2919
        %v2991 = vmul.f32 %v2979, %v2954
        %v2992 = vmul.f32 %v2980, %v2904
        %v2993 = vmul.f32 %v2981, %v2939
        %v2994 = vmul.f32 %v2982, %v2907
        %v2995 = vmul.f32 %v2983, %v2942
        %v2996 = vmul.f32 %v2984, %v2910
        %v2997 = vmul.f32 %v2985, %v2945
        %v2998 = vmul.f32 %v2986, %v2913
        %v2999 = vmul.f32 %v2987, %v2948
        %v3000 = vmul.f32 %v2988, %v2916
        %v3001 = vmul.f32 %v2989, %v2951
        %v3002 = vmul.f32 %v2990, %v2919
        %v3003 = vmul.f32 %v2991, %v2954
        %v3004 = vadd.f32 %v2904, %v2992
        %v3005 = vadd.f32 %v2939, %v2993
        %v3006 = vadd.f32 %v2907, %v2994
        %v3007 = vadd.f32 %v2942, %v2995
        %v3008 = vadd.f32 %v2910, %v2996
        %v3009 = vadd.f32 %v2945, %v2997
        %v3010 = vadd.f32 %v2913, %v2998
        %v3011 = vadd.f32 %v2948, %v2999
        %v3012 = vadd.f32 %v2916, %v3000
        %v3013 = vadd.f32 %v2951, %v3001
        %v3014 = vadd.f32 %v2919, %v3002
        %v3015 = vadd.f32 %v2954, %v3003
        %v3016 = vmul.f32 %v3004, 0.7978846
        %v3017 = vmul.f32 %v3005, 0.7978846
        %v3018 = vmul.f32 %v3006, 0.7978846
        %v3019 = vmul.f32 %v3007, 0.7978846
        %v3020 = vmul.f32 %v3008, 0.7978846
        %v3021 = vmul.f32 %v3009, 0.7978846
        %v3022 = vmul.f32 %v3010, 0.7978846
        %v3023 = vmul.f32 %v3011, 0.7978846
        %v3024 = vmul.f32 %v3012, 0.7978846
        %v3025 = vmul.f32 %v3013, 0.7978846
        %v3026 = vmul.f32 %v3014, 0.7978846
        %v3027 = vmul.f32 %v3015, 0.7978846
        %v3028 = vtanh.pop %v3016
        %v3029 = vtanh.pop %v3017
        %v3030 = vtanh.pop %v3018
        %v3031 = vtanh.pop %v3019
        %v3032 = vtanh.pop %v3020
        %v3033 = vtanh.pop %v3021
        %v3034 = vtanh.pop %v3022
        %v3035 = vtanh.pop %v3023
        %v3036 = vtanh.pop %v3024
        %v3037 = vtanh.pop %v3025
        %v3038 = vtanh.pop %v3026
        %v3039 = vtanh.pop %v3027
        %v3040 = vadd.f32 %v3028, 1.0
        %v3041 = vadd.f32 %v3029, 1.0
        %v3042 = vadd.f32 %v3030, 1.0
        %v3043 = vadd.f32 %v3031, 1.0
        %v3044 = vadd.f32 %v3032, 1.0
        %v3045 = vadd.f32 %v3033, 1.0
        %v3046 = vadd.f32 %v3034, 1.0
        %v3047 = vadd.f32 %v3035, 1.0
        %v3048 = vadd.f32 %v3036, 1.0
        %v3049 = vadd.f32 %v3037, 1.0
        %v3050 = vadd.f32 %v3038, 1.0
        %v3051 = vadd.f32 %v3039, 1.0
        %v3052 = vmul.f32 %v2956, %v3040
        %v3053 = vmul.f32 %v2957, %v3041
        %v3054 = vmul.f32 %v2958, %v3042
        %v3055 = vmul.f32 %v2959, %v3043
        %v3056 = vmul.f32 %v2960, %v3044
        %v3057 = vmul.f32 %v2961, %v3045
        %v3058 = vmul.f32 %v2962, %v3046
        %v3059 = vmul.f32 %v2963, %v3047
        %v3060 = vmul.f32 %v2964, %v3048
        %v3061 = vmul.f32 %v2965, %v3049
        %v3062 = vmul.f32 %v2966, %v3050
        %v3063 = vmul.f32 %v2967, %v3051
        %v3064 = vld [vmem:[%s627] sm:$0xff]
        %v3065 = vld [vmem:[%s627 + $0x8] sm:$0xff]
        %v3066 = vld [vmem:[%s627 + $0x10] sm:$0xff]
        %v3067 = vld [vmem:[%s627 + $0x18] sm:$0xff]
        %v3068 = vld [vmem:[%s627 + $0x20] sm:$0xff]
        %v3069 = vld [vmem:[%s627 + $0x28] sm:$0xff]
        %v3070 = vld [vmem:[%s627 + $0x30] sm:$0xff]
        %v3071 = vld [vmem:[%s627 + $0x38] sm:$0xff]
        %v3072 = vld [vmem:[%s627 + $0x40] sm:$0xff]
        %v3073 = vld [vmem:[%s627 + $0x48] sm:$0xff]
        %v3074 = vld [vmem:[%s627 + $0x50] sm:$0xff]
        %v3075 = vld [vmem:[%s627 + $0x58] sm:$0xff]
        %v3076 = vld [vmem:[%s627 + $0x60] sm:$0xff]
        %v3077 = vld [vmem:[%s627 + $0x68] sm:$0xff]
        %v3078 = vld [vmem:[%s627 + $0x70] sm:$0xff]
        %v3079 = vld [vmem:[%s627 + $0x78] sm:$0xff]
        %v3080 = vld [vmem:[%s627 + $0x80] sm:$0xff]
        %v3081 = vld [vmem:[%s627 + $0x88] sm:$0xff]
        %v3082 = vld [vmem:[%s627 + $0x90] sm:$0xff]
        %v3083 = vld [vmem:[%s627 + $0x98] sm:$0xff]
        %v3084 = vld [vmem:[%s627 + $0xa0] sm:$0xff]
        %v3085 = vld [vmem:[%s627 + $0xa8] sm:$0xff]
        %v3086 = vld [vmem:[%s627 + $0xb0] sm:$0xff]
        %v3087 = vld [vmem:[%s627 + $0xb8] sm:$0xff]
        %v3088 = vld [vmem:[%s627 + $0xc0] sm:$0xff]
        %v3089 = vld [vmem:[%s627 + $0xc8] sm:$0xff]
        %v3090 = vld [vmem:[%s627 + $0xd0] sm:$0xff]
        %v3091 = vld [vmem:[%s627 + $0xd8] sm:$0xff]
        %v3092 = vld [vmem:[%s627 + $0xe0] sm:$0xff]
        %v3093 = vld [vmem:[%s627 + $0xe8] sm:$0xff]
        %v3094 = vld [vmem:[%s627 + $0xf0] sm:$0xff]
        %v3095 = vld [vmem:[%s627 + $0xf8] sm:$0xff]
        %v3096 = vld [vmem:[%s630] sm:$0x1]
        %v3098 = vperm.slane %v3096, 0
        %3100 = vmatpush.msra.mxu0 %v3079
        %3101 = vmatpush.msra.mxu0 %v3078
        %3102 = vmatpush.msra.mxu0 %v3077
        %3103 = vmatpush.msra.mxu0 %v3076
        %3104 = vmatpush.msra.mxu0 %v3075
        %3105 = vmatpush.msra.mxu0 %v3074
        %3106 = vmatpush.msra.mxu0 %v3073
        %3107 = vmatpush.msra.mxu0 %v3072
        %3108 = vmatpush.msra.mxu0 %v3071
        %3109 = vmatpush.msra.mxu0 %v3070
        %3110 = vmatpush.msra.mxu0 %v3069
        %3111 = vmatpush.msra.mxu0 %v3068
        %3112 = vmatpush.msra.mxu0 %v3067
        %3113 = vmatpush.msra.mxu0 %v3066
        %3114 = vmatpush.msra.mxu0 %v3065
        %3115 = vmatpush.msra.mxu0 %v3064
        %3116 = vmatmul.f32.gmra.mxu0 %v3052
        %v3117 = vpop.f32.mrf.mxu0
        %v3118 = vadd.f32 %v3098, %v3117
        %3119 = vmatmul.f32.gmra.mxu0 %v3054
        %v3120 = vpop.f32.mrf.mxu0
        %v3121 = vadd.f32 %v3098, %v3120
        %3122 = vmatmul.f32.gmra.mxu0 %v3056
        %v3123 = vpop.f32.mrf.mxu0
        %v3124 = vadd.f32 %v3098, %v3123
        %3125 = vmatmul.f32.gmra.mxu0 %v3058
        %v3126 = vpop.f32.mrf.mxu0
        %v3127 = vadd.f32 %v3098, %v3126
        %3128 = vmatmul.f32.gmra.mxu0 %v3060
        %v3129 = vpop.f32.mrf.mxu0
        %v3130 = vadd.f32 %v3098, %v3129
        %3131 = vmatmul.f32.gmra.mxu0 %v3062
        %v3132 = vpop.f32.mrf.mxu0
        %v3133 = vadd.f32 %v3098, %v3132
        %3134 = vdwg.mxu0
        %3135 = vmatpush.msra.mxu0 %v3095
        %3136 = vmatpush.msra.mxu0 %v3094
        %3137 = vmatpush.msra.mxu0 %v3093
        %3138 = vmatpush.msra.mxu0 %v3092
        %3139 = vmatpush.msra.mxu0 %v3091
        %3140 = vmatpush.msra.mxu0 %v3090
        %3141 = vmatpush.msra.mxu0 %v3089
        %3142 = vmatpush.msra.mxu0 %v3088
        %3143 = vmatpush.msra.mxu0 %v3087
        %3144 = vmatpush.msra.mxu0 %v3086
        %3145 = vmatpush.msra.mxu0 %v3085
        %3146 = vmatpush.msra.mxu0 %v3084
        %3147 = vmatpush.msra.mxu0 %v3083
        %3148 = vmatpush.msra.mxu0 %v3082
        %3149 = vmatpush.msra.mxu0 %v3081
        %3150 = vmatpush.msra.mxu0 %v3080
        %3151 = vmatmul.f32.gmra.mxu0 %v3053
        %v3152 = vpop.f32.mrf.mxu0
        %v3153 = vadd.f32 %v3118, %v3152
        %3154 = vmatmul.f32.gmra.mxu0 %v3055
        %v3155 = vpop.f32.mrf.mxu0
        %v3156 = vadd.f32 %v3121, %v3155
        %3157 = vmatmul.f32.gmra.mxu0 %v3057
        %v3158 = vpop.f32.mrf.mxu0
        %v3159 = vadd.f32 %v3124, %v3158
        %3160 = vmatmul.f32.gmra.mxu0 %v3059
        %v3161 = vpop.f32.mrf.mxu0
        %v3162 = vadd.f32 %v3127, %v3161
        %3163 = vmatmul.f32.gmra.mxu0 %v3061
        %v3164 = vpop.f32.mrf.mxu0
        %v3165 = vadd.f32 %v3130, %v3164
        %3166 = vmatmul.f32.gmra.mxu0 %v3063
        %v3167 = vpop.f32.mrf.mxu0
        %v3168 = vadd.f32 %v3133, %v3167
        %3169 = vdwg.mxu0
        %v3170 = vadd.f32 %v2570, %v3153
        %v3171 = vadd.f32 %v2571, %v3156
        %v3172 = vadd.f32 %v2572, %v3159
        %v3173 = vadd.f32 %v2573, %v3162
        %v3174 = vadd.f32 %v2574, %v3165
        %v3175 = vadd.f32 %v2575, %v3168
        %3176 = vst [vmem:[#allocation2] sm:$0xff] %v3170
        %3177 = vst [vmem:[#allocation2 + $0x8] sm:$0xff] %v3171
        %3178 = vst [vmem:[#allocation2 + $0x10] sm:$0xff] %v3172
        %3179 = vst [vmem:[#allocation2 + $0x18] sm:$0xff] %v3173
        %3180 = vst [vmem:[#allocation2 + $0x20] sm:$0xff] %v3174
        %3181 = vst [vmem:[#allocation2 + $0x28] sm:$0xff] %v3175
        %v3184 = vrot.slane %v3173, 7
        %vm3185 = vcmask 1041409
        %v3186 = vsel %vm3185, %v3184, %v3170
        %vm3188 = vcmask 1041408
        %v3189 = vsel %vm3188, %v3186, 0.0
        %3190 = vadd.xlane.f32.xlu0 %v3189
        %v3191 = vpop.xlane.xlu0 %3190
        %v3192 = vmul.f32 %v3191, %v673
        %v3194 = vrot.slane %v3192, 1
        %v3197 = vsub.f32 %v3170, %v3192
        %v3198 = vsub.f32 %v3173, %v3194
        %v3199 = vmul.f32 %v3197, %v3197
        %v3200 = vmul.f32 %v3198, %v3198
        %v3203 = vrot.slane %v3200, 7
        %v3204 = vsel %vm3185, %v3203, %v3199
        %v3206 = vsel %vm3188, %v3204, 0.0
        %3207 = vadd.xlane.f32.xlu0 %v3206
        %v3208 = vpop.xlane.xlu0 %3207
        %v3209 = vmul.f32 %v3208, %v673
        %v3210 = vadd.f32 %v3209, 1e-05
        %v3211 = vrsqrt.pop %v3210
        %v3212 = vmul.f32 %v3211, %v3210
        %v3213 = vmul.f32 %v3212, %v3211
        %v3214 = vmul.f32 0.5, %v3213
        %v3215 = vsub.f32 1.5, %v3214
        %v3216 = vmul.f32 %v3211, %v3215
        %vm3217 = vweird.f32 %v3210
        %vm3218 = vweird.f32 %v3211
        %vm3219 = vmor %vm3217, %vm3218
        %v3220 = vsel %vm3219, %v3211, %v3216
        %v3222 = vrot.slane %v3220, 1
        %v3225 = vmul.f32 %v3197, %v3220
        %v3226 = vmul.f32 %v3198, %v3222
        %v3227 = vmul.f32 %v3225, %v783
        %v3228 = vmul.f32 %v3226, %v783
        %v3229 = vadd.f32 %v3227, %v792
        %v3230 = vadd.f32 %v3228, %v792
        %v3231 = vld [vmem:[%s3] sm:$0xff]
        %v3232 = vld [vmem:[%s3 + $0x8] sm:$0xff]
        %v3233 = vld [vmem:[%s3 + $0x10] sm:$0xff]
        %v3234 = vld [vmem:[%s3 + $0x18] sm:$0xff]
        %v3235 = vld [vmem:[%s3 + $0x20] sm:$0xff]
        %v3236 = vld [vmem:[%s3 + $0x28] sm:$0xff]
        %v3237 = vld [vmem:[%s3 + $0x30] sm:$0xff]
        %v3238 = vld [vmem:[%s3 + $0x38] sm:$0xff]
        %v3239 = vld [vmem:[%s3 + $0x40] sm:$0xff]
        %v3240 = vld [vmem:[%s3 + $0x48] sm:$0xff]
        %v3241 = vld [vmem:[%s3 + $0x50] sm:$0xff]
        %v3242 = vld [vmem:[%s3 + $0x58] sm:$0xff]
        %v3243 = vld [vmem:[%s3 + $0x60] sm:$0xff]
        %v3244 = vld [vmem:[%s3 + $0x68] sm:$0xff]
        %v3245 = vld [vmem:[%s3 + $0x70] sm:$0xff]
        %v3246 = vld [vmem:[%s3 + $0x78] sm:$0xff]
        %v3247 = vld [vmem:[%s4] sm:$0x1]
        %v3249 = vperm.slane %v3247, 0
        %v3253 = vrot.slane %v3230, 7
        %v3254 = vsel %vm3185, %v3253, %v3229
        %3256 = vmatpush.msra.mxu0 %v3246
        %3257 = vmatpush.msra.mxu0 %v3245
        %3258 = vmatpush.msra.mxu0 %v3244
        %3259 = vmatpush.msra.mxu0 %v3243
        %3260 = vmatpush.msra.mxu0 %v3242
        %3261 = vmatpush.msra.mxu0 %v3241
        %3262 = vmatpush.msra.mxu0 %v3240
        %3263 = vmatpush.msra.mxu0 %v3239
        %3264 = vmatpush.msra.mxu0 %v3238
        %3265 = vmatpush.msra.mxu0 %v3237
        %3266 = vmatpush.msra.mxu0 %v3236
        %3267 = vmatpush.msra.mxu0 %v3235
        %3268 = vmatpush.msra.mxu0 %v3234
        %3269 = vmatpush.msra.mxu0 %v3233
        %3270 = vmatpush.msra.mxu0 %v3232
        %3271 = vmatpush.msra.mxu0 %v3231
        %3272 = vmatmul.f32.gmra.mxu0 %v3254
        %v3273 = vpop.f32.mrf.mxu0
        %v3274 = vadd.f32 %v3249, %v3273
        %3275 = vdwg.mxu0
        %vm3276 = vcmask 74752
        %3277 = vst.msk [vmem:[#allocation3] sm:$0x3] %vm3276, %v3274
        // Predicated region
        $region85: #{vit_forward_pallas.3} parent=79 // pred_check
          %p3278 = pneg %p405
        $region86: #{vit_forward_pallas.3} parent=79 // pred_check_branch
          %3280 = sbr.rel (%p3278) target = $region88
        $region87: #{vit_forward_pallas.3} parent=79 // pred_region
          %3282 = vsyncadd [#allocation4], 0
          %s3284 = sshll.u32 [#allocation3], 4
          %s3285 = int_to_ptr.vmem [resolvable:$true] %s3284
          %s3286 = sshll.u32 %s15, 4
          %s3287 = int_to_ptr.hbm [resolvable:$true] %s3286
          %3289 = dma.vmem_to_hbm [thread:$0]  %s3285, 32, %s3287, [#allocation4]
        $region88: #{vit_forward_pallas.3} parent=79 // pred_fallthru
          _
        // Predicated region
        $region89: #{vit_forward_pallas.3} parent=79 // pred_check
          %p3290 = pneg %p405
        $region90: #{vit_forward_pallas.3} parent=79 // pred_check_branch
          %3292 = sbr.rel (%p3290) target = $region92
        $region91: #{vit_forward_pallas.3} parent=79 // pred_region
          %3294 = dma.done [#allocation4], 32
        $region92: #{vit_forward_pallas.3} parent=79 // pred_fallthru
          _
      $region80: #{vit_forward_pallas.3} parent=5 // pred_fallthru
        _
      %p3295 = scmp.le.s32.totalorder 2, %s22
      // Predicated region
      $region93: #{vit_forward_pallas.3} parent=5 // pred_check
        %p3296 = pneg %p3295
      $region94: #{vit_forward_pallas.3} parent=5 // pred_check_branch
        %3298 = sbr.rel (%p3296) target = $region96
      $region95: #{vit_forward_pallas.3} parent=5 // pred_region
        %s3299 = ssub.s32 %s22, 2
      $region96: #{vit_forward_pallas.3} parent=5 // pred_fallthru
        _
    $region6: #{vit_forward_pallas.3} parent=1 // loop_footer
      %s26 = sadd.s32 1, %s22
    $region7: #{vit_forward_pallas.3} parent=1 // loop_footer_branch
      %21 = sbr.rel target = $region3
    $region8: #{vit_forward_pallas.3} parent=1 // loop_exit
      _
    %3300 = vsyncpa [#allocation4], 1
    %s3301 = scalar_lea.sflag [#allocation4], 1
    %3302 = vsyncpa %s3301, 1

</llo_original>
